<compile_context>
chip_gen: v7x
topology: tpu7x:2x2x1
jax: 0.10.0
libtpu: 0.0.40
codegen_flags: <defaults>
</compile_context>

<pallas_src>
import jax
import jax.numpy as jnp
from jax.experimental import pallas as pl
from jax.experimental.pallas import tpu as pltpu


# ---------------------------------------------------------------------------
# Shared in-kernel math: gated + thresholded softmax attention for GB groups
# ---------------------------------------------------------------------------
def _attn_core(q, k, wq, wk, w1, w2a_t, w2b, bq, bk):
    GB, L, _ = q.shape

    # similarity: batched MXU matmul over the GB groups
    sim = jnp.einsum('gid,gjd->gij', q, k,
                     preferred_element_type=jnp.float32)                # (GB, L, L)

    # pc_proj gating: 1-wide outputs -> VPU/XLU lane reductions (not the MXU)
    sigma_q = jnp.sum(q * wq, axis=-1, keepdims=True) + bq              # (GB, L, 1)
    sigma_k = jnp.sum(k * wk, axis=-1) + bk                             # (GB, L)
    Sigma = sigma_q * sigma_k[:, None, :]                               # (GB, L, L)

    # sim with its diagonal zeroed (sim - diag_embed(diag(sim)))
    rows = jax.lax.broadcasted_iota(jnp.int32, (1, L, L), 1)
    cols = jax.lax.broadcasted_iota(jnp.int32, (1, L, L), 2)
    sim_norm = jnp.where(rows == cols, jnp.float32(0.0), sim)           # (GB, L, L)

    # threshold theta: mlp1 (lane reduce), mlp2 = dense MXU matmul over all GB
    # groups at once -> LeakyReLU(0.1) -> lane reduce
    theta = jnp.sum(sim_norm * w1, axis=-1)                             # (GB, L)
    h1 = jnp.dot(theta, w2a_t, preferred_element_type=jnp.float32)      # (GB, L)
    h1 = jnp.where(h1 >= 0, h1, 0.1 * h1)
    theta_s = jnp.sum(h1 * w2b, axis=-1, keepdims=True)[:, :, None]     # (GB, 1, 1)

    # gated softmax + threshold mask
    sim_g = sim * Sigma
    m = jnp.max(sim_g, axis=-1, keepdims=True)
    e = jnp.exp(sim_g - m)
    soft = e * pl.reciprocal(jnp.sum(e, axis=-1, keepdims=True), approx=False)
    return soft * (sim_g > theta_s).astype(jnp.float32)                 # (GB, L, L)


# ---------------------------------------------------------------------------
# Kernel 1: attention only (matches the PyTorch `Attention` module output)
# ---------------------------------------------------------------------------
def _attention_kernel(q_ref, k_ref, wq_ref, wk_ref, w1_ref, w2a_t_ref,
                      w2b_ref, bq_ref, bk_ref, o_ref):
    attn = _attn_core(q_ref[...], k_ref[...], wq_ref[...], wk_ref[...],
                      w1_ref[...], w2a_t_ref[...], w2b_ref[...],
                      bq_ref[0], bk_ref[0])
    o_ref[...] = attn.astype(o_ref.dtype)


# ---------------------------------------------------------------------------
# Kernel 2: fused attention @ v (used by the FA forward; (G,L,L) stays in VMEM)
# ---------------------------------------------------------------------------
def _attention_av_kernel(q_ref, k_ref, v_ref, wq_ref, wk_ref, w1_ref, w2a_t_ref,
                         w2b_ref, bq_ref, bk_ref, o_ref):
    attn = _attn_core(q_ref[...], k_ref[...], wq_ref[...], wk_ref[...],
                      w1_ref[...], w2a_t_ref[...], w2b_ref[...],
                      bq_ref[0], bk_ref[0])
    out = jnp.einsum('gij,gjd->gid', attn, v_ref[...],
                     preferred_element_type=jnp.float32)                # (GB, L, Dv)
    o_ref[...] = out.astype(o_ref.dtype)


# ---------------------------------------------------------------------------
# Wrappers
# ---------------------------------------------------------------------------
def _pad_groups(arrs, G, GB):
    """Pad the leading (group) axis of each array up to a multiple of GB."""
    n_steps = -(-G // GB)
    Gp = n_steps * GB
    if Gp != G:
        pad = Gp - G
        arrs = [jnp.concatenate(
            [a, jnp.zeros((pad,) + a.shape[1:], a.dtype)], axis=0) for a in arrs]
    return arrs, n_steps, Gp


def _weight_specs(D, L):
    const = lambda shape: pl.BlockSpec(shape, lambda g: (0,) * len(shape))
    smem = lambda: pl.BlockSpec(memory_space=pltpu.MemorySpace.SMEM)
    return [
        const((1, D)),    # pc_proj_q.weight
        const((1, D)),    # pc_proj_k.weight
        const((1, L)),    # mlp1[0].weight
        const((L, L)),    # mlp2[0].weight^T (pre-transposed)
        const((1, L)),    # mlp2[2].weight
        smem(),           # bias_pc_proj_q (scalar, SMEM)
        smem(),           # bias_pc_proj_k (scalar, SMEM)
    ]


def _weight_args(p):
    return (jnp.asarray(p['wq'], jnp.float32), jnp.asarray(p['wk'], jnp.float32),
            jnp.asarray(p['w1'], jnp.float32),
            jnp.asarray(p['w2a'], jnp.float32).T,   # pre-transpose: theta @ W2a^T
            jnp.asarray(p['w2b'], jnp.float32),
            jnp.asarray(p['bq'], jnp.float32).reshape(1),
            jnp.asarray(p['bk'], jnp.float32).reshape(1))


def attention_pallas(q, k, p, *, group_block=64):
    """Gated/thresholded attention.  q, k: (b, h, B, L, D) -> (b, h, B, L, L)."""
    b, h, B, L, D = q.shape
    G = b * h * B
    qf = q.reshape(G, L, D).astype(jnp.float32)
    kf = k.reshape(G, L, D).astype(jnp.float32)

    GB = max(1, min(int(group_block), G))
    (qf, kf), n_steps, Gp = _pad_groups([qf, kf], G, GB)

    out = pl.pallas_call(
        _attention_kernel,
        out_shape=jax.ShapeDtypeStruct((Gp, L, L), jnp.float32),
        grid_spec=pltpu.PrefetchScalarGridSpec(
            num_scalar_prefetch=0,
            grid=(n_steps,),
            in_specs=[
                pl.BlockSpec((GB, L, D), lambda g: (g, 0, 0)),   # q block
                pl.BlockSpec((GB, L, D), lambda g: (g, 0, 0)),   # k block
            ] + _weight_specs(D, L),
            out_specs=pl.BlockSpec((GB, L, L), lambda g: (g, 0, 0)),
        ),
        compiler_params=pltpu.CompilerParams(
            dimension_semantics=("parallel",),        # shards over v7x's 2 TCs
            vmem_limit_bytes=64 * 1024 * 1024),
    )(qf, kf, *_weight_args(p))

    return out[:G].reshape(b, h, B, L, L)


def attention_out_pallas(q, k, v, p, *, group_block=64):
    """Fused gated/thresholded attention followed by attn @ v.

    q, k: (b, h, B, L, D);  v: (b, h, B, L, Dv)  ->  (b, h, B, L, Dv).
    """
    b, h, B, L, D = q.shape
    Dv = v.shape[-1]
    G = b * h * B
    qf = q.reshape(G, L, D).astype(jnp.float32)
    kf = k.reshape(G, L, D).astype(jnp.float32)
    vf = v.reshape(G, L, Dv).astype(jnp.float32)

    GB = max(1, min(int(group_block), G))
    (qf, kf, vf), n_steps, Gp = _pad_groups([qf, kf, vf], G, GB)

    out = pl.pallas_call(
        _attention_av_kernel,
        out_shape=jax.ShapeDtypeStruct((Gp, L, Dv), jnp.float32),
        grid_spec=pltpu.PrefetchScalarGridSpec(
            num_scalar_prefetch=0,
            grid=(n_steps,),
            in_specs=[
                pl.BlockSpec((GB, L, D), lambda g: (g, 0, 0)),    # q block
                pl.BlockSpec((GB, L, D), lambda g: (g, 0, 0)),    # k block
                pl.BlockSpec((GB, L, Dv), lambda g: (g, 0, 0)),   # v block
            ] + _weight_specs(D, L),
            out_specs=pl.BlockSpec((GB, L, Dv), lambda g: (g, 0, 0)),
        ),
        compiler_params=pltpu.CompilerParams(
            dimension_semantics=("parallel",),
            vmem_limit_bytes=64 * 1024 * 1024),
    )(qf, kf, vf, *_weight_args(p))

    return out[:G].reshape(b, h, B, L, Dv)


# ---------------------------------------------------------------------------
# Pure-JAX reference for the Attention core
# ---------------------------------------------------------------------------
def attention_ref(q, k, p, return_gate=False):
    L = q.shape[-2]
    Sigma_q = jnp.einsum('bhBid,od->bhBio', q, p['wq']) + p['bq'][0]
    Sigma_k = jnp.einsum('bhBjd,od->bhBjo', k, p['wk']) + p['bk'][0]
    sim = jnp.einsum('bhBid,bhBjd->bhBij', q, k)
    Sigma = jnp.einsum('bhBio,bhBjo->bhBij', Sigma_q, Sigma_k)
    sim_norm = jnp.where(jnp.eye(L, dtype=bool), 0.0, sim)
    theta = jnp.einsum('bhBij,oj->bhBio', sim_norm, p['w1'])[..., 0]
    h1 = jnp.einsum('bhBi,oi->bhBo', theta, p['w2a'])
    h1 = jnp.where(h1 >= 0, h1, 0.1 * h1)
    theta = jnp.einsum('bhBi,oi->bhBo', h1, p['w2b'])[..., None]
    sim_g = sim * Sigma
    attn = jax.nn.softmax(sim_g, axis=-1) * (sim_g > theta).astype(jnp.float32)
    if return_gate:
        return attn, sim_g, theta
    return attn


# ---------------------------------------------------------------------------
# FA wrapper (window partition / projections / merge), attention core pluggable
# ---------------------------------------------------------------------------
def _window_partition(x, window_size, shift):
    b, c, B, H, W = x.shape
    b0, b1 = window_size
    if shift:
        x = jnp.roll(x, 4, axis=3)
        x = jnp.roll(x, 4, axis=4)
    hn, wn = H // b0, W // b1
    # 'b c B (h b0) (w b1) -> (b h w) (b0 b1) B c'
    xw = x.reshape(b, c, B, hn, b0, wn, b1).transpose(0, 3, 5, 4, 6, 2, 1)
    return xw.reshape(b * hn * wn, b0 * b1, B, c), (b, c, B, H, W, hn, wn)


def _window_merge(out, meta, window_size, shift):
    b, c, B, H, W, hn, wn = meta
    b0, b1 = window_size
    # '(b h w) (b0 b1) B c -> b c B (h b0) (w b1)'
    out = out.reshape(b, hn, wn, b0, b1, B, c).transpose(0, 6, 5, 1, 3, 2, 4)
    out = out.reshape(b, c, B, H, W)
    if shift:
        out = jnp.roll(out, -4, axis=3)
        out = jnp.roll(out, -4, axis=4)
    return out


def _fa_qkv(x_inp, params, heads_qk, heads_v):
    qk = jnp.einsum('gnBc,oc->gnBo', x_inp, params['w_qk'])
    rank = params['w_qk'].shape[0] // 2
    q, k = qk[..., :rank], qk[..., rank:]
    v = jnp.einsum('gnBc,oc->gnBo', x_inp, params['w_v'])

    def heads(t, h):   # 'g n B (h d) -> g h B n d'
        g, n, B_, hd = t.shape
        return t.reshape(g, n, B_, h, hd // h).transpose(0, 3, 2, 1, 4)

    return heads(q, heads_qk), heads(k, heads_qk), heads(v, heads_v)


def fa_forward(x, params, *, heads_qk, heads_v, window_size=(8, 8), shift=True,
               attention_fn=None, group_block=64):
    """FA forward.  attention_fn=None -> fused Pallas attn@v kernel (fastest).
    attention_fn=attention_pallas / attention_ref -> unfused attention core
    followed by an XLA einsum (for validation)."""
    x_inp, meta = _window_partition(x, window_size, shift)
    q, k, v = _fa_qkv(x_inp, params, heads_qk, heads_v)
    if attention_fn is None and q.shape[1] == v.shape[1]:
        # Fused path: the (G, L, L) attention tensor never leaves VMEM.
        out = attention_out_pallas(q, k, v, params['attn'],
                                   group_block=group_block)
    else:
        fn = attention_fn if attention_fn is not None else attention_pallas
        attn = fn(q, k, params['attn'])
        out = jnp.einsum('ghBij,ghBjd->ghBid', attn, v)
    g, h, B_, n, d = out.shape
    out = out.transpose(0, 3, 2, 1, 4).reshape(g, n, B_, h * d)   # 'g h B n d -> g n B (h d)'
    out = jnp.einsum('gnBc,oc->gnBo', out, params['w_out']) + params['b_out']
    return _window_merge(out, meta, window_size, shift)


# ---------------------------------------------------------------------------
if __name__ == "__main__":
    # Small but module-consistent config: window 8x8 -> 64 tokens per window
    dim, dim_head, sq_dim = 32, 16, 32
    heads_qk = sq_dim // dim_head      # 2
    heads_v = dim // dim_head          # 2
    window_size = (8, 8)
    L = window_size[0] * window_size[1]        # 64 tokens
    b, B, H, W = 2, 2, 8, 8

    key = jax.random.PRNGKey(0)
    ks = jax.random.split(key, 12)
    x = jax.random.normal(ks[0], (b, dim, B, H, W), dtype=jnp.float32)

    params = {
        'w_qk': jax.random.normal(ks[1], (2 * sq_dim, dim), jnp.float32) * (dim ** -0.5),
        'w_v': jax.random.normal(ks[2], (dim, dim), jnp.float32) * (dim ** -0.5),
        'w_out': jax.random.normal(ks[3], (dim, dim), jnp.float32) * (dim ** -0.5),
        'b_out': jax.random.normal(ks[4], (dim,), jnp.float32) * 0.1,
        'attn': {
            'wq': jax.random.normal(ks[5], (1, dim_head), jnp.float32) * 0.1,
            'bq': jnp.ones((1,), jnp.float32),
            'wk': jax.random.normal(ks[6], (1, dim_head), jnp.float32) * 0.1,
            'bk': jnp.ones((1,), jnp.float32),
            'w1': jax.random.normal(ks[7], (1, L), jnp.float32) * 0.1,
            'w2a': jax.random.normal(ks[8], (L, L), jnp.float32) * 0.1,
            'w2b': jax.random.normal(ks[9], (1, L), jnp.float32) * 0.1,
        },
    }

    # (1) Direct check of the Pallas attention core vs the pure-JAX reference.
    # The strict '>' gate is bit-exact sensitive, so elements whose gate
    # argument sits within float noise of the threshold are excluded from the
    # elementwise comparison (the mask is built from the reference only).
    q_t = jax.random.normal(ks[10], (b, heads_qk, B, L, dim_head), jnp.float32)
    k_t = jax.random.normal(ks[11], (b, heads_qk, B, L, dim_head), jnp.float32)
    attn_r, sim_g_r, theta_r = attention_ref(q_t, k_t, params['attn'], return_gate=True)
    safe = jnp.abs(sim_g_r - theta_r) > 1e-4
    assert float(jnp.mean(~safe)) < 1e-2, "degenerate test data near gate threshold"

    for gb in (64, 3):   # single-step path, and multi-step + padded-group path
        attn_p = jax.block_until_ready(
            attention_pallas(q_t, k_t, params['attn'], group_block=gb))
        assert attn_p.shape == (b, heads_qk, B, L, L)
        err = float(jnp.max(jnp.where(safe, jnp.abs(attn_p - attn_r), 0.0)))
        assert err < 1e-5, f"attention mismatch (group_block={gb}): {err}"

    # (2) Full FA forward with the fused Pallas attn@v kernel.
    out = jax.block_until_ready(
        fa_forward(x, params, heads_qk=heads_qk, heads_v=heads_v,
                   window_size=window_size, shift=True))
    assert out.shape == (b, dim, B, H, W)
    assert bool(jnp.all(jnp.isfinite(out)))

    # End-to-end comparisons (skipped only if some gate argument is within
    # float noise of its threshold, where a 1-ulp delta legitimately flips '>').
    x_inp, _ = _window_partition(x, window_size, shift=True)
    q_fa, k_fa, _ = _fa_qkv(x_inp, params, heads_qk, heads_v)
    _, sg, th = attention_ref(q_fa, k_fa, params['attn'], return_gate=True)
    if float(jnp.min(jnp.abs(sg - th))) > 1e-4:
        out_ref = fa_forward(x, params, heads_qk=heads_qk, heads_v=heads_v,
                             window_size=window_size, shift=True,
                             attention_fn=attention_ref)
        err = float(jnp.max(jnp.abs(out - out_ref)))
        assert err < 1e-4, f"FA end-to-end (fused) max abs err {err}"

        out_unfused = fa_forward(x, params, heads_qk=heads_qk, heads_v=heads_v,
                                 window_size=window_size, shift=True,
                                 attention_fn=attention_pallas)
        err2 = float(jnp.max(jnp.abs(out - out_unfused)))
        assert err2 < 1e-4, f"fused vs unfused Pallas mismatch {err2}"

    print("KERNEL_OK")
</pallas_src>

<mosaic_0001>
module attributes {stable_mosaic.version = 11 : i64} {
  func.func @_attention_kernel(%arg0: i32, %arg1: memref<8x64x16xf32, #tpu.memory_space<vmem>>, %arg2: memref<8x64x16xf32, #tpu.memory_space<vmem>>, %arg3: memref<1x16xf32, #tpu.memory_space<vmem>>, %arg4: memref<1x16xf32, #tpu.memory_space<vmem>>, %arg5: memref<1x64xf32, #tpu.memory_space<vmem>>, %arg6: memref<64x64xf32, #tpu.memory_space<vmem>>, %arg7: memref<1x64xf32, #tpu.memory_space<vmem>>, %arg8: memref<1xf32, #tpu.memory_space<smem>>, %arg9: memref<1xf32, #tpu.memory_space<smem>>, %arg10: memref<8x64x64xf32, #tpu.memory_space<vmem>>) attributes {dimension_semantics = [#tpu.dimension_semantics<parallel>], iteration_bounds = array<i64: 1>, scalar_prefetch = 0 : i64, scratch_operands = 0 : i64, tpu.core_type = #tpu.core_type<tc>, window_params = [{transform_indices = @transform_0, window_bounds = array<i64: 8, 64, 16>}, {transform_indices = @transform_1, window_bounds = array<i64: 8, 64, 16>}, {pipeline_mode = #tpu.pipeline_mode<synchronous>, transform_indices = @transform_2, window_bounds = array<i64: 1, 16>}, {pipeline_mode = #tpu.pipeline_mode<synchronous>, transform_indices = @transform_3, window_bounds = array<i64: 1, 16>}, {pipeline_mode = #tpu.pipeline_mode<synchronous>, transform_indices = @transform_4, window_bounds = array<i64: 1, 64>}, {pipeline_mode = #tpu.pipeline_mode<synchronous>, transform_indices = @transform_5, window_bounds = array<i64: 64, 64>}, {pipeline_mode = #tpu.pipeline_mode<synchronous>, transform_indices = @transform_6, window_bounds = array<i64: 1, 64>}, {transform_indices = @transform_7, window_bounds = array<i64: 1>}, {transform_indices = @transform_8, window_bounds = array<i64: 1>}, {transform_indices = @transform_9, window_bounds = array<i64: 8, 64, 64>}]} {
    %c0 = arith.constant 0 : index
    %c0_0 = arith.constant 0 : index
    %c0_1 = arith.constant 0 : index
    %0 = vector.load %arg1[%c0, %c0_0, %c0_1] : memref<8x64x16xf32, #tpu.memory_space<vmem>>, vector<8x64x16xf32>
    %c0_2 = arith.constant 0 : index
    %c0_3 = arith.constant 0 : index
    %c0_4 = arith.constant 0 : index
    %1 = vector.load %arg2[%c0_2, %c0_3, %c0_4] : memref<8x64x16xf32, #tpu.memory_space<vmem>>, vector<8x64x16xf32>
    %c0_5 = arith.constant 0 : index
    %c0_6 = arith.constant 0 : index
    %2 = vector.load %arg3[%c0_5, %c0_6] : memref<1x16xf32, #tpu.memory_space<vmem>>, vector<1x16xf32>
    %c0_7 = arith.constant 0 : index
    %c0_8 = arith.constant 0 : index
    %3 = vector.load %arg4[%c0_7, %c0_8] : memref<1x16xf32, #tpu.memory_space<vmem>>, vector<1x16xf32>
    %c0_9 = arith.constant 0 : index
    %c0_10 = arith.constant 0 : index
    %4 = vector.load %arg5[%c0_9, %c0_10] : memref<1x64xf32, #tpu.memory_space<vmem>>, vector<1x64xf32>
    %c0_11 = arith.constant 0 : index
    %c0_12 = arith.constant 0 : index
    %5 = vector.load %arg6[%c0_11, %c0_12] : memref<64x64xf32, #tpu.memory_space<vmem>>, vector<64x64xf32>
    %c0_13 = arith.constant 0 : index
    %c0_14 = arith.constant 0 : index
    %6 = vector.load %arg7[%c0_13, %c0_14] : memref<1x64xf32, #tpu.memory_space<vmem>>, vector<1x64xf32>
    %c0_15 = arith.constant 0 : index
    %7 = memref.load %arg8[%c0_15] : memref<1xf32, #tpu.memory_space<smem>>
    %c0_16 = arith.constant 0 : index
    %8 = memref.load %arg9[%c0_16] : memref<1xf32, #tpu.memory_space<smem>>
    "tpu.trace_start"() <{level = 10 : i32, message = "gid,gjd->gij"}> : () -> ()
    %cst = arith.constant dense<0.000000e+00> : vector<8x64x64xf32>
    %9 = tpu.matmul %0, %1, %cst {dimension_numbers = #tpu.dot_dimension_numbers<[2], [2], [1], [1], [0, 0, 0, 1, 1, 1], [0], [0]>} : vector<8x64x16xf32>, vector<8x64x16xf32>, vector<8x64x64xf32> -> vector<8x64x64xf32>
    "tpu.trace_stop"() : () -> ()
    %10 = vector.shape_cast %2 : vector<1x16xf32> to vector<1x1x16xf32>
    %11 = vector.broadcast %10 : vector<1x1x16xf32> to vector<8x64x16xf32>
    %12 = arith.mulf %0, %11 : vector<8x64x16xf32>
    %cst_17 = arith.constant dense<0.000000e+00> : vector<8x64xf32>
    %13 = vector.multi_reduction <add>, %12, %cst_17 [2] : vector<8x64x16xf32> to vector<8x64xf32>
    %14 = vector.shape_cast %13 : vector<8x64xf32> to vector<8x64x1xf32>
    %15 = vector.broadcast %7 : f32 to vector<8x64x1xf32>
    %16 = arith.addf %14, %15 : vector<8x64x1xf32>
    %17 = vector.shape_cast %3 : vector<1x16xf32> to vector<1x1x16xf32>
    %18 = vector.broadcast %17 : vector<1x1x16xf32> to vector<8x64x16xf32>
    %19 = arith.mulf %1, %18 : vector<8x64x16xf32>
    %cst_18 = arith.constant dense<0.000000e+00> : vector<8x64xf32>
    %20 = vector.multi_reduction <add>, %19, %cst_18 [2] : vector<8x64x16xf32> to vector<8x64xf32>
    %21 = vector.broadcast %8 : f32 to vector<8x64xf32>
    %22 = arith.addf %20, %21 : vector<8x64xf32>
    %23 = vector.shape_cast %22 : vector<8x64xf32> to vector<8x1x64xf32>
    %24 = vector.broadcast %16 : vector<8x64x1xf32> to vector<8x64x64xf32>
    %25 = vector.broadcast %23 : vector<8x1x64xf32> to vector<8x64x64xf32>
    %26 = arith.mulf %24, %25 : vector<8x64x64xf32>
    %27 = tpu.iota {dimensions = array<i32: 1>} : vector<1x64x64xi32>
    %28 = tpu.iota {dimensions = array<i32: 2>} : vector<1x64x64xi32>
    %29 = arith.cmpi eq, %27, %28 : vector<1x64x64xi32>
    %cst_19 = arith.constant 0.000000e+00 : f32
    %30 = vector.shape_cast %29 : vector<1x64x64xi1> to vector<1x64x64xi1>
    %31 = vector.broadcast %30 : vector<1x64x64xi1> to vector<8x64x64xi1>
    %32 = vector.broadcast %cst_19 : f32 to vector<8x64x64xf32>
    %33 = arith.select %31, %32, %9 : vector<8x64x64xi1>, vector<8x64x64xf32>
    %34 = vector.shape_cast %4 : vector<1x64xf32> to vector<1x1x64xf32>
    %35 = vector.broadcast %34 : vector<1x1x64xf32> to vector<8x64x64xf32>
    %36 = arith.mulf %33, %35 : vector<8x64x64xf32>
    %cst_20 = arith.constant dense<0.000000e+00> : vector<8x64xf32>
    %37 = vector.multi_reduction <add>, %36, %cst_20 [2] : vector<8x64x64xf32> to vector<8x64xf32>
    %cst_21 = arith.constant dense<0.000000e+00> : vector<8x64xf32>
    %38 = tpu.matmul %37, %5, %cst_21 {dimension_numbers = #tpu.dot_dimension_numbers<[1], [0], [0], [1], [0, 0, 1, 1], [], []>} : vector<8x64xf32>, vector<64x64xf32>, vector<8x64xf32> -> vector<8x64xf32>
    %cst_22 = arith.constant 0.000000e+00 : f32
    %39 = vector.broadcast %cst_22 : f32 to vector<8x64xf32>
    %40 = arith.cmpf oge, %38, %39 : vector<8x64xf32>
    %cst_23 = arith.constant 1.000000e-01 : f32
    %41 = vector.broadcast %cst_23 : f32 to vector<8x64xf32>
    %42 = arith.mulf %41, %38 : vector<8x64xf32>
    %43 = arith.select %40, %38, %42 : vector<8x64xi1>, vector<8x64xf32>
    %44 = vector.broadcast %6 : vector<1x64xf32> to vector<8x64xf32>
    %45 = arith.mulf %43, %44 : vector<8x64xf32>
    %cst_24 = arith.constant dense<0.000000e+00> : vector<8xf32>
    %46 = vector.multi_reduction <add>, %45, %cst_24 [1] : vector<8x64xf32> to vector<8xf32>
    %47 = vector.shape_cast %46 : vector<8xf32> to vector<8x1xf32>
    %48 = vector.shape_cast %47 : vector<8x1xf32> to vector<8x1x1xf32>
    %49 = arith.mulf %9, %26 : vector<8x64x64xf32>
    %cst_25 = arith.constant dense<0xFF800000> : vector<8x64xf32>
    %50 = vector.multi_reduction <maximumf>, %49, %cst_25 [2] : vector<8x64x64xf32> to vector<8x64xf32>
    %51 = vector.shape_cast %50 : vector<8x64xf32> to vector<8x64x1xf32>
    %52 = vector.broadcast %51 : vector<8x64x1xf32> to vector<8x64x64xf32>
    %53 = arith.subf %49, %52 : vector<8x64x64xf32>
    %54 = math.exp %53 : vector<8x64x64xf32>
    %cst_26 = arith.constant dense<0.000000e+00> : vector<8x64xf32>
    %55 = vector.multi_reduction <add>, %54, %cst_26 [2] : vector<8x64x64xf32> to vector<8x64xf32>
    %56 = vector.shape_cast %55 : vector<8x64xf32> to vector<8x64x1xf32>
    %57 = tpu.reciprocal %56 : vector<8x64x1xf32> -> vector<8x64x1xf32>
    %58 = vector.broadcast %57 : vector<8x64x1xf32> to vector<8x64x64xf32>
    %59 = arith.mulf %54, %58 : vector<8x64x64xf32>
    %60 = vector.broadcast %48 : vector<8x1x1xf32> to vector<8x64x64xf32>
    %61 = arith.cmpf ogt, %49, %60 : vector<8x64x64xf32>
    %62 = arith.extui %61 : vector<8x64x64xi1> to vector<8x64x64xi32>
    %63 = arith.sitofp %62 : vector<8x64x64xi32> to vector<8x64x64xf32>
    %64 = arith.mulf %59, %63 : vector<8x64x64xf32>
    %c0_27 = arith.constant 0 : index
    %c0_28 = arith.constant 0 : index
    %c0_29 = arith.constant 0 : index
    %65 = vector.load %arg10[%c0_27, %c0_28, %c0_29] : memref<8x64x64xf32, #tpu.memory_space<vmem>>, vector<8x64x64xf32>
    tpu.vector_store %arg10[%c0_27, %c0_28, %c0_29], %64 {strides = array<i32>} : memref<8x64x64xf32, #tpu.memory_space<vmem>>, vector<8x64x64xf32>,
    return
  }
  func.func @transform_0(%arg0: i32) -> (i32, i32, i32) {
    %c0_i32 = arith.constant 0 : i32
    %c0_i32_0 = arith.constant 0 : i32
    %c0_i32_1 = arith.constant 0 : i32
    return %arg0, %c0_i32, %c0_i32_0 : i32, i32, i32
  }
  func.func @transform_1(%arg0: i32) -> (i32, i32, i32) {
    %c0_i32 = arith.constant 0 : i32
    %c0_i32_0 = arith.constant 0 : i32
    %c0_i32_1 = arith.constant 0 : i32
    return %arg0, %c0_i32, %c0_i32_0 : i32, i32, i32
  }
  func.func @transform_2(%arg0: i32) -> (i32, i32) {
    %c0_i32 = arith.constant 0 : i32
    %c0_i32_0 = arith.constant 0 : i32
    %c0_i32_1 = arith.constant 0 : i32
    return %c0_i32, %c0_i32_0 : i32, i32
  }
  func.func @transform_3(%arg0: i32) -> (i32, i32) {
    %c0_i32 = arith.constant 0 : i32
    %c0_i32_0 = arith.constant 0 : i32
    %c0_i32_1 = arith.constant 0 : i32
    return %c0_i32, %c0_i32_0 : i32, i32
  }
  func.func @transform_4(%arg0: i32) -> (i32, i32) {
    %c0_i32 = arith.constant 0 : i32
    %c0_i32_0 = arith.constant 0 : i32
    %c0_i32_1 = arith.constant 0 : i32
    return %c0_i32, %c0_i32_0 : i32, i32
  }
  func.func @transform_5(%arg0: i32) -> (i32, i32) {
    %c0_i32 = arith.constant 0 : i32
    %c0_i32_0 = arith.constant 0 : i32
    %c0_i32_1 = arith.constant 0 : i32
    return %c0_i32, %c0_i32_0 : i32, i32
  }
  func.func @transform_6(%arg0: i32) -> (i32, i32) {
    %c0_i32 = arith.constant 0 : i32
    %c0_i32_0 = arith.constant 0 : i32
    %c0_i32_1 = arith.constant 0 : i32
    return %c0_i32, %c0_i32_0 : i32, i32
  }
  func.func @transform_7(%arg0: i32) -> i32 {
    %c0_i32 = arith.constant 0 : i32
    %c0_i32_0 = arith.constant 0 : i32
    return %c0_i32 : i32
  }
  func.func @transform_8(%arg0: i32) -> i32 {
    %c0_i32 = arith.constant 0 : i32
    %c0_i32_0 = arith.constant 0 : i32
    return %c0_i32 : i32
  }
  func.func @transform_9(%arg0: i32) -> (i32, i32, i32) {
    %c0_i32 = arith.constant 0 : i32
    %c0_i32_0 = arith.constant 0 : i32
    %c0_i32_1 = arith.constant 0 : i32
    return %arg0, %c0_i32, %c0_i32_0 : i32, i32, i32
  }
}

</mosaic_0001>

<llo_original>
// kernel: tpu_custom_call.1
$region0: #{tpu_custom_call.1}
  #allocation0 [shape = 'u32[]', space=smem, size = 0x4, offset = 0x4, fixed_abs, tag = 'smem constant byte address 0x4 - core index']
  #allocation1 [shape = 'u32[144,128]{1,0:T(1,128)}', space=vmem, size = 0x12000, scoped, tag = 'internal scratch']
  #allocation2 [shape = 'f32[1]{0:T(128)S(6)}', space=smem, size = 0x200, scoped, tag = 'scoped memory for tpu_custom_call.1']
  #allocation3 [shape = 'f32[1]{0:T(128)S(6)}', space=smem, size = 0x200, scoped, tag = 'scoped memory for tpu_custom_call.1']
  %s0 = inlined_call_operand.hbm [shape: f32[8,64,16], index: 0, kind: input, shape index: {}]
  %s1 = inlined_call_operand.hbm [shape: f32[8,64,16], index: 1, kind: input, shape index: {}]
  %s2 = inlined_call_operand.hbm [shape: f32[1,16], index: 2, kind: input, shape index: {}]
  %s3 = inlined_call_operand.hbm [shape: f32[1,16], index: 3, kind: input, shape index: {}]
  %s4 = inlined_call_operand.hbm [shape: f32[1,64], index: 4, kind: input, shape index: {}]
  %s5 = inlined_call_operand.hbm [shape: f32[64,64], index: 5, kind: input, shape index: {}]
  %s6 = inlined_call_operand.hbm [shape: f32[1,64], index: 6, kind: input, shape index: {}]
  %s7 = inlined_call_operand.<no memory space> [shape: f32[1], index: 7, kind: input, shape index: {}]
  %s8 = inlined_call_operand.<no memory space> [shape: f32[1], index: 8, kind: input, shape index: {}]
  %s9 = inlined_call_operand.hbm [shape: f32[8,64,64], index: 9, kind: output, shape index: {}]
  %s10 = sld [smem:[#allocation0]]
  $region74: #{tpu_custom_call.1} parent=0
    _
  %s12 = ssub.s32 1, %s10
  %s13 = scalar_select 0, %s12, %s10
  %14 = sst [smem:[#allocation2]] %s7
  %15 = sst [smem:[#allocation3]] %s8
  $region1: #{tpu_custom_call.1} parent=0
    #allocation4 [shape = 'u8[262144]{0}', space=vmem, size = 0x40000, scoped, tag = 'input window, operand 0, single buffered']
    #allocation5 [shape = 's32[1]{0}', space=sflag, size = 0x4, scoped, tag = 'scoped memory for tpu_custom_call.1']
    #allocation6 [shape = 's32[1]{0}', space=sflag, size = 0x4, scoped, tag = 'scoped memory for tpu_custom_call.1']
    #allocation7 [shape = 'u8[262144]{0}', space=vmem, size = 0x40000, scoped, tag = 'input window, operand 1, single buffered']
    #allocation8 [shape = 's32[1]{0}', space=sflag, size = 0x4, scoped, tag = 'scoped memory for tpu_custom_call.1']
    #allocation9 [shape = 'u8[512]{0}', space=vmem, size = 0x400, scoped, tag = 'input window, operand 2, single buffered']
    #allocation10 [shape = 'u8[512]{0}', space=vmem, size = 0x400, scoped, tag = 'input window, operand 3, single buffered']
    #allocation11 [shape = 's32[1]{0}', space=sflag, size = 0x4, scoped, tag = 'scoped memory for tpu_custom_call.1']
    #allocation12 [shape = 'u8[512]{0}', space=vmem, size = 0x400, scoped, tag = 'input window, operand 4, single buffered']
    #allocation13 [shape = 'u8[32768]{0}', space=vmem, size = 0x8000, scoped, tag = 'input window, operand 5, single buffered']
    #allocation14 [shape = 's32[1]{0}', space=sflag, size = 0x4, scoped, tag = 'scoped memory for tpu_custom_call.1']
    #allocation15 [shape = 'u8[512]{0}', space=vmem, size = 0x400, scoped, tag = 'input window, operand 6, single buffered']
    #allocation16 [shape = 'u8[262144]{0}', space=vmem, size = 0x40000, scoped, tag = 'output window, operand 0, single buffered']
    %16 = vsyncpa [#allocation5], 0
    %17 = vsyncpa [#allocation8], 0
    %18 = vsyncpa [#allocation11], 0
    %19 = vsyncpa [#allocation14], 0
    %20 = vsyncpa [#allocation6], 0
    // Predicated region
    $region2: #{tpu_custom_call.1} parent=1 // pred_check
      _
    $region3: #{tpu_custom_call.1} parent=1 // pred_check_branch
      %22 = sbr.rel (0) target = $region5
    $region4: #{tpu_custom_call.1} parent=1 // pred_region
      %s24 = ssub.s32 8192, 8192
      %25 = vsyncadd [#allocation5], %s24
      %s26 = sshll.u32 [#allocation4], 4
      %s27 = int_to_ptr.vmem [resolvable:$true] %s26
      %32 = dma.hbm_to_vmem [thread:$0]  %s0, 8192, %s27, [#allocation5], 128, 128, 8
    $region5: #{tpu_custom_call.1} parent=1 // pred_fallthru
      _
    // Predicated region
    $region6: #{tpu_custom_call.1} parent=1 // pred_check
      _
    $region7: #{tpu_custom_call.1} parent=1 // pred_check_branch
      %34 = sbr.rel (0) target = $region9
    $region8: #{tpu_custom_call.1} parent=1 // pred_region
      %s36 = ssub.s32 8192, 8192
      %37 = vsyncadd [#allocation8], %s36
      %s38 = sshll.u32 [#allocation7], 4
      %s39 = int_to_ptr.vmem [resolvable:$true] %s38
      %44 = dma.hbm_to_vmem [thread:$0]  %s1, 8192, %s39, [#allocation8], 128, 128, 8
    $region9: #{tpu_custom_call.1} parent=1 // pred_fallthru
      _
    // Predicated region
    $region10: #{tpu_custom_call.1} parent=1 // pred_check
      _
    $region11: #{tpu_custom_call.1} parent=1 // pred_check_branch
      %46 = sbr.rel (0) target = $region13
    $region12: #{tpu_custom_call.1} parent=1 // pred_region
      %s48 = ssub.s32 16, 16
      %49 = vsyncadd [#allocation8], %s48
      %s51 = sshll.u32 [#allocation9], 4
      %s52 = int_to_ptr.vmem [resolvable:$true] %s51
      %54 = dma.hbm_to_vmem [thread:$0]  %s2, 16, %s52, [#allocation8]
    $region13: #{tpu_custom_call.1} parent=1 // pred_fallthru
      _
    // Predicated region
    $region14: #{tpu_custom_call.1} parent=1 // pred_check
      _
    $region15: #{tpu_custom_call.1} parent=1 // pred_check_branch
      %56 = sbr.rel (0) target = $region17
    $region16: #{tpu_custom_call.1} parent=1 // pred_region
      %s58 = ssub.s32 16, 16
      %59 = vsyncadd [#allocation11], %s58
      %s61 = sshll.u32 [#allocation10], 4
      %s62 = int_to_ptr.vmem [resolvable:$true] %s61
      %64 = dma.hbm_to_vmem [thread:$0]  %s3, 16, %s62, [#allocation11]
    $region17: #{tpu_custom_call.1} parent=1 // pred_fallthru
      _
    // Predicated region
    $region18: #{tpu_custom_call.1} parent=1 // pred_check
      _
    $region19: #{tpu_custom_call.1} parent=1 // pred_check_branch
      %66 = sbr.rel (0) target = $region21
    $region20: #{tpu_custom_call.1} parent=1 // pred_region
      %s68 = ssub.s32 16, 16
      %69 = vsyncadd [#allocation11], %s68
      %s71 = sshll.u32 [#allocation12], 4
      %s72 = int_to_ptr.vmem [resolvable:$true] %s71
      %74 = dma.hbm_to_vmem [thread:$0]  %s4, 16, %s72, [#allocation11]
    $region21: #{tpu_custom_call.1} parent=1 // pred_fallthru
      _
    // Predicated region
    $region22: #{tpu_custom_call.1} parent=1 // pred_check
      _
    $region23: #{tpu_custom_call.1} parent=1 // pred_check_branch
      %76 = sbr.rel (0) target = $region25
    $region24: #{tpu_custom_call.1} parent=1 // pred_region
      %s78 = ssub.s32 1024, 1024
      %79 = vsyncadd [#allocation14], %s78
      %s80 = sshll.u32 [#allocation13], 4
      %s81 = int_to_ptr.vmem [resolvable:$true] %s80
      %86 = dma.hbm_to_vmem [thread:$0]  %s5, 1024, %s81, [#allocation14], 128, 128, 8
    $region25: #{tpu_custom_call.1} parent=1 // pred_fallthru
      _
    // Predicated region
    $region26: #{tpu_custom_call.1} parent=1 // pred_check
      _
    $region27: #{tpu_custom_call.1} parent=1 // pred_check_branch
      %88 = sbr.rel (0) target = $region29
    $region28: #{tpu_custom_call.1} parent=1 // pred_region
      %s90 = ssub.s32 16, 16
      %91 = vsyncadd [#allocation14], %s90
      %s93 = sshll.u32 [#allocation15], 4
      %s94 = int_to_ptr.vmem [resolvable:$true] %s93
      %96 = dma.hbm_to_vmem [thread:$0]  %s6, 16, %s94, [#allocation14]
    $region29: #{tpu_custom_call.1} parent=1 // pred_fallthru
      _
    // Predicated region
    $region30: #{tpu_custom_call.1} parent=1 // pred_check
      _
    $region31: #{tpu_custom_call.1} parent=1 // pred_check_branch
      %98 = sbr.rel (0) target = $region33
    $region32: #{tpu_custom_call.1} parent=1 // pred_region
      _
    $region33: #{tpu_custom_call.1} parent=1 // pred_fallthru
      _
    // Predicated region
    $region34: #{tpu_custom_call.1} parent=1 // pred_check
      _
    $region35: #{tpu_custom_call.1} parent=1 // pred_check_branch
      %100 = sbr.rel (0) target = $region37
    $region36: #{tpu_custom_call.1} parent=1 // pred_region
      _
    $region37: #{tpu_custom_call.1} parent=1 // pred_fallthru
      _
    // Predicated region
    $region38: #{tpu_custom_call.1} parent=1 // pred_check
      _
    $region39: #{tpu_custom_call.1} parent=1 // pred_check_branch
      %102 = sbr.rel (0) target = $region41
    $region40: #{tpu_custom_call.1} parent=1 // pred_region
      %103 = dma.done [#allocation5], 8192
    $region41: #{tpu_custom_call.1} parent=1 // pred_fallthru
      _
    // Predicated region
    $region42: #{tpu_custom_call.1} parent=1 // pred_check
      _
    $region43: #{tpu_custom_call.1} parent=1 // pred_check_branch
      %105 = sbr.rel (0) target = $region45
    $region44: #{tpu_custom_call.1} parent=1 // pred_region
      %106 = dma.done [#allocation8], 8192
    $region45: #{tpu_custom_call.1} parent=1 // pred_fallthru
      _
    // Predicated region
    $region46: #{tpu_custom_call.1} parent=1 // pred_check
      _
    $region47: #{tpu_custom_call.1} parent=1 // pred_check_branch
      %108 = sbr.rel (0) target = $region49
    $region48: #{tpu_custom_call.1} parent=1 // pred_region
      %109 = dma.done [#allocation8], 16
    $region49: #{tpu_custom_call.1} parent=1 // pred_fallthru
      _
    // Predicated region
    $region50: #{tpu_custom_call.1} parent=1 // pred_check
      _
    $region51: #{tpu_custom_call.1} parent=1 // pred_check_branch
      %111 = sbr.rel (0) target = $region53
    $region52: #{tpu_custom_call.1} parent=1 // pred_region
      %112 = dma.done [#allocation11], 16
    $region53: #{tpu_custom_call.1} parent=1 // pred_fallthru
      _
    // Predicated region
    $region54: #{tpu_custom_call.1} parent=1 // pred_check
      _
    $region55: #{tpu_custom_call.1} parent=1 // pred_check_branch
      %114 = sbr.rel (0) target = $region57
    $region56: #{tpu_custom_call.1} parent=1 // pred_region
      %115 = dma.done [#allocation11], 16
    $region57: #{tpu_custom_call.1} parent=1 // pred_fallthru
      _
    // Predicated region
    $region58: #{tpu_custom_call.1} parent=1 // pred_check
      _
    $region59: #{tpu_custom_call.1} parent=1 // pred_check_branch
      %117 = sbr.rel (0) target = $region61
    $region60: #{tpu_custom_call.1} parent=1 // pred_region
      %118 = dma.done [#allocation14], 1024
    $region61: #{tpu_custom_call.1} parent=1 // pred_fallthru
      _
    // Predicated region
    $region62: #{tpu_custom_call.1} parent=1 // pred_check
      _
    $region63: #{tpu_custom_call.1} parent=1 // pred_check_branch
      %120 = sbr.rel (0) target = $region65
    $region64: #{tpu_custom_call.1} parent=1 // pred_region
      %121 = dma.done [#allocation14], 16
    $region65: #{tpu_custom_call.1} parent=1 // pred_fallthru
      _
    %v122 = vld [vmem:[#allocation4] sm:$0xff]
    %v123 = vld [vmem:[#allocation4 + $0x8] sm:$0xff]
    %v124 = vld [vmem:[#allocation4 + $0x10] sm:$0xff]
    %v125 = vld [vmem:[#allocation4 + $0x18] sm:$0xff]
    %v126 = vld [vmem:[#allocation4 + $0x20] sm:$0xff]
    %v127 = vld [vmem:[#allocation4 + $0x28] sm:$0xff]
    %v128 = vld [vmem:[#allocation4 + $0x30] sm:$0xff]
    %v129 = vld [vmem:[#allocation4 + $0x38] sm:$0xff]
    %v130 = vld [vmem:[#allocation4 + $0x40] sm:$0xff]
    %v131 = vld [vmem:[#allocation4 + $0x48] sm:$0xff]
    %v132 = vld [vmem:[#allocation4 + $0x50] sm:$0xff]
    %v133 = vld [vmem:[#allocation4 + $0x58] sm:$0xff]
    %v134 = vld [vmem:[#allocation4 + $0x60] sm:$0xff]
    %v135 = vld [vmem:[#allocation4 + $0x68] sm:$0xff]
    %v136 = vld [vmem:[#allocation4 + $0x70] sm:$0xff]
    %v137 = vld [vmem:[#allocation4 + $0x78] sm:$0xff]
    %v138 = vld [vmem:[#allocation4 + $0x80] sm:$0xff]
    %v139 = vld [vmem:[#allocation4 + $0x88] sm:$0xff]
    %v140 = vld [vmem:[#allocation4 + $0x90] sm:$0xff]
    %v141 = vld [vmem:[#allocation4 + $0x98] sm:$0xff]
    %v142 = vld [vmem:[#allocation4 + $0xa0] sm:$0xff]
    %v143 = vld [vmem:[#allocation4 + $0xa8] sm:$0xff]
    %v144 = vld [vmem:[#allocation4 + $0xb0] sm:$0xff]
    %v145 = vld [vmem:[#allocation4 + $0xb8] sm:$0xff]
    %v146 = vld [vmem:[#allocation4 + $0xc0] sm:$0xff]
    %v147 = vld [vmem:[#allocation4 + $0xc8] sm:$0xff]
    %v148 = vld [vmem:[#allocation4 + $0xd0] sm:$0xff]
    %v149 = vld [vmem:[#allocation4 + $0xd8] sm:$0xff]
    %v150 = vld [vmem:[#allocation4 + $0xe0] sm:$0xff]
    %v151 = vld [vmem:[#allocation4 + $0xe8] sm:$0xff]
    %v152 = vld [vmem:[#allocation4 + $0xf0] sm:$0xff]
    %v153 = vld [vmem:[#allocation4 + $0xf8] sm:$0xff]
    %v154 = vld [vmem:[#allocation4 + $0x100] sm:$0xff]
    %v155 = vld [vmem:[#allocation4 + $0x108] sm:$0xff]
    %v156 = vld [vmem:[#allocation4 + $0x110] sm:$0xff]
    %v157 = vld [vmem:[#allocation4 + $0x118] sm:$0xff]
    %v158 = vld [vmem:[#allocation4 + $0x120] sm:$0xff]
    %v159 = vld [vmem:[#allocation4 + $0x128] sm:$0xff]
    %v160 = vld [vmem:[#allocation4 + $0x130] sm:$0xff]
    %v161 = vld [vmem:[#allocation4 + $0x138] sm:$0xff]
    %v162 = vld [vmem:[#allocation4 + $0x140] sm:$0xff]
    %v163 = vld [vmem:[#allocation4 + $0x148] sm:$0xff]
    %v164 = vld [vmem:[#allocation4 + $0x150] sm:$0xff]
    %v165 = vld [vmem:[#allocation4 + $0x158] sm:$0xff]
    %v166 = vld [vmem:[#allocation4 + $0x160] sm:$0xff]
    %v167 = vld [vmem:[#allocation4 + $0x168] sm:$0xff]
    %v168 = vld [vmem:[#allocation4 + $0x170] sm:$0xff]
    %v169 = vld [vmem:[#allocation4 + $0x178] sm:$0xff]
    %v170 = vld [vmem:[#allocation4 + $0x180] sm:$0xff]
    %v171 = vld [vmem:[#allocation4 + $0x188] sm:$0xff]
    %v172 = vld [vmem:[#allocation4 + $0x190] sm:$0xff]
    %v173 = vld [vmem:[#allocation4 + $0x198] sm:$0xff]
    %v174 = vld [vmem:[#allocation4 + $0x1a0] sm:$0xff]
    %v175 = vld [vmem:[#allocation4 + $0x1a8] sm:$0xff]
    %v176 = vld [vmem:[#allocation4 + $0x1b0] sm:$0xff]
    %v177 = vld [vmem:[#allocation4 + $0x1b8] sm:$0xff]
    %v178 = vld [vmem:[#allocation4 + $0x1c0] sm:$0xff]
    %v179 = vld [vmem:[#allocation4 + $0x1c8] sm:$0xff]
    %v180 = vld [vmem:[#allocation4 + $0x1d0] sm:$0xff]
    %v181 = vld [vmem:[#allocation4 + $0x1d8] sm:$0xff]
    %v182 = vld [vmem:[#allocation4 + $0x1e0] sm:$0xff]
    %v183 = vld [vmem:[#allocation4 + $0x1e8] sm:$0xff]
    %v184 = vld [vmem:[#allocation4 + $0x1f0] sm:$0xff]
    %v185 = vld [vmem:[#allocation4 + $0x1f8] sm:$0xff]
    %v186 = vld [vmem:[#allocation7] sm:$0xff]
    %v187 = vld [vmem:[#allocation7 + $0x8] sm:$0xff]
    %v188 = vld [vmem:[#allocation7 + $0x10] sm:$0xff]
    %v189 = vld [vmem:[#allocation7 + $0x18] sm:$0xff]
    %v190 = vld [vmem:[#allocation7 + $0x20] sm:$0xff]
    %v191 = vld [vmem:[#allocation7 + $0x28] sm:$0xff]
    %v192 = vld [vmem:[#allocation7 + $0x30] sm:$0xff]
    %v193 = vld [vmem:[#allocation7 + $0x38] sm:$0xff]
    %v194 = vld [vmem:[#allocation7 + $0x40] sm:$0xff]
    %v195 = vld [vmem:[#allocation7 + $0x48] sm:$0xff]
    %v196 = vld [vmem:[#allocation7 + $0x50] sm:$0xff]
    %v197 = vld [vmem:[#allocation7 + $0x58] sm:$0xff]
    %v198 = vld [vmem:[#allocation7 + $0x60] sm:$0xff]
    %v199 = vld [vmem:[#allocation7 + $0x68] sm:$0xff]
    %v200 = vld [vmem:[#allocation7 + $0x70] sm:$0xff]
    %v201 = vld [vmem:[#allocation7 + $0x78] sm:$0xff]
    %v202 = vld [vmem:[#allocation7 + $0x80] sm:$0xff]
    %v203 = vld [vmem:[#allocation7 + $0x88] sm:$0xff]
    %v204 = vld [vmem:[#allocation7 + $0x90] sm:$0xff]
    %v205 = vld [vmem:[#allocation7 + $0x98] sm:$0xff]
    %v206 = vld [vmem:[#allocation7 + $0xa0] sm:$0xff]
    %v207 = vld [vmem:[#allocation7 + $0xa8] sm:$0xff]
    %v208 = vld [vmem:[#allocation7 + $0xb0] sm:$0xff]
    %v209 = vld [vmem:[#allocation7 + $0xb8] sm:$0xff]
    %v210 = vld [vmem:[#allocation7 + $0xc0] sm:$0xff]
    %v211 = vld [vmem:[#allocation7 + $0xc8] sm:$0xff]
    %v212 = vld [vmem:[#allocation7 + $0xd0] sm:$0xff]
    %v213 = vld [vmem:[#allocation7 + $0xd8] sm:$0xff]
    %v214 = vld [vmem:[#allocation7 + $0xe0] sm:$0xff]
    %v215 = vld [vmem:[#allocation7 + $0xe8] sm:$0xff]
    %v216 = vld [vmem:[#allocation7 + $0xf0] sm:$0xff]
    %v217 = vld [vmem:[#allocation7 + $0xf8] sm:$0xff]
    %v218 = vld [vmem:[#allocation7 + $0x100] sm:$0xff]
    %v219 = vld [vmem:[#allocation7 + $0x108] sm:$0xff]
    %v220 = vld [vmem:[#allocation7 + $0x110] sm:$0xff]
    %v221 = vld [vmem:[#allocation7 + $0x118] sm:$0xff]
    %v222 = vld [vmem:[#allocation7 + $0x120] sm:$0xff]
    %v223 = vld [vmem:[#allocation7 + $0x128] sm:$0xff]
    %v224 = vld [vmem:[#allocation7 + $0x130] sm:$0xff]
    %v225 = vld [vmem:[#allocation7 + $0x138] sm:$0xff]
    %v226 = vld [vmem:[#allocation7 + $0x140] sm:$0xff]
    %v227 = vld [vmem:[#allocation7 + $0x148] sm:$0xff]
    %v228 = vld [vmem:[#allocation7 + $0x150] sm:$0xff]
    %v229 = vld [vmem:[#allocation7 + $0x158] sm:$0xff]
    %v230 = vld [vmem:[#allocation7 + $0x160] sm:$0xff]
    %v231 = vld [vmem:[#allocation7 + $0x168] sm:$0xff]
    %v232 = vld [vmem:[#allocation7 + $0x170] sm:$0xff]
    %v233 = vld [vmem:[#allocation7 + $0x178] sm:$0xff]
    %v234 = vld [vmem:[#allocation7 + $0x180] sm:$0xff]
    %v235 = vld [vmem:[#allocation7 + $0x188] sm:$0xff]
    %v236 = vld [vmem:[#allocation7 + $0x190] sm:$0xff]
    %v237 = vld [vmem:[#allocation7 + $0x198] sm:$0xff]
    %v238 = vld [vmem:[#allocation7 + $0x1a0] sm:$0xff]
    %v239 = vld [vmem:[#allocation7 + $0x1a8] sm:$0xff]
    %v240 = vld [vmem:[#allocation7 + $0x1b0] sm:$0xff]
    %v241 = vld [vmem:[#allocation7 + $0x1b8] sm:$0xff]
    %v242 = vld [vmem:[#allocation7 + $0x1c0] sm:$0xff]
    %v243 = vld [vmem:[#allocation7 + $0x1c8] sm:$0xff]
    %v244 = vld [vmem:[#allocation7 + $0x1d0] sm:$0xff]
    %v245 = vld [vmem:[#allocation7 + $0x1d8] sm:$0xff]
    %v246 = vld [vmem:[#allocation7 + $0x1e0] sm:$0xff]
    %v247 = vld [vmem:[#allocation7 + $0x1e8] sm:$0xff]
    %v248 = vld [vmem:[#allocation7 + $0x1f0] sm:$0xff]
    %v249 = vld [vmem:[#allocation7 + $0x1f8] sm:$0xff]
    %v250 = vld [vmem:[#allocation9] sm:$0x1]
    %v251 = vld [vmem:[#allocation10] sm:$0x1]
    %v252 = vld [vmem:[#allocation12] sm:$0x1]
    %v253 = vld [vmem:[#allocation13] sm:$0xff]
    %v254 = vld [vmem:[#allocation13 + $0x8] sm:$0xff]
    %v255 = vld [vmem:[#allocation13 + $0x10] sm:$0xff]
    %v256 = vld [vmem:[#allocation13 + $0x18] sm:$0xff]
    %v257 = vld [vmem:[#allocation13 + $0x20] sm:$0xff]
    %v258 = vld [vmem:[#allocation13 + $0x28] sm:$0xff]
    %v259 = vld [vmem:[#allocation13 + $0x30] sm:$0xff]
    %v260 = vld [vmem:[#allocation13 + $0x38] sm:$0xff]
    %v261 = vld [vmem:[#allocation15] sm:$0x1]
    %s262 = sld [smem:[#allocation2]]
    %s263 = sld [smem:[#allocation3]]
    %vm264 = vcmask 130048
    %v266 = vsel %vm264, %v122, 0
    %v269 = vsel %vm264, %v123, 0
    %v272 = vsel %vm264, %v124, 0
    %v275 = vsel %vm264, %v125, 0
    %v278 = vsel %vm264, %v126, 0
    %v281 = vsel %vm264, %v127, 0
    %v284 = vsel %vm264, %v128, 0
    %v287 = vsel %vm264, %v129, 0
    %v290 = vsel %vm264, %v186, 0
    %v293 = vsel %vm264, %v187, 0
    %v296 = vsel %vm264, %v188, 0
    %v299 = vsel %vm264, %v189, 0
    %v302 = vsel %vm264, %v190, 0
    %v305 = vsel %vm264, %v191, 0
    %v308 = vsel %vm264, %v192, 0
    %v311 = vsel %vm264, %v193, 0
    %313 = vmatprep.subr.mxu0 0.0
    %314 = vmatpush1.xpose.msra.mxu0 %v290
    %315 = vmatprep.subr.mxu0 0.0
    %316 = vmatpush1.xpose.msra.mxu0 %v293
    %317 = vmatprep.subr.mxu0 0.0
    %318 = vmatpush1.xpose.msra.mxu0 %v296
    %319 = vmatprep.subr.mxu0 0.0
    %320 = vmatpush1.xpose.msra.mxu0 %v299
    %321 = vmatprep.subr.mxu0 0.0
    %322 = vmatpush1.xpose.msra.mxu0 %v302
    %323 = vmatprep.subr.mxu0 0.0
    %324 = vmatpush1.xpose.msra.mxu0 %v305
    %325 = vmatprep.subr.mxu0 0.0
    %326 = vmatpush1.xpose.msra.mxu0 %v308
    %327 = vmatprep.subr.mxu0 0.0
    %328 = vmatpush1.xpose.msra.mxu0 %v311
    %329 = vmatprep.subr.mxu0 0.0
    %330 = vmatpush1.xpose.msra.mxu0 0.0
    %331 = vmatprep.subr.mxu0 0.0
    %332 = vmatpush1.xpose.msra.mxu0 0.0
    %333 = vmatprep.subr.mxu0 0.0
    %334 = vmatpush1.xpose.msra.mxu0 0.0
    %335 = vmatprep.subr.mxu0 0.0
    %336 = vmatpush1.xpose.msra.mxu0 0.0
    %337 = vmatprep.subr.mxu0 0.0
    %338 = vmatpush1.xpose.msra.mxu0 0.0
    %339 = vmatprep.subr.mxu0 0.0
    %340 = vmatpush1.xpose.msra.mxu0 0.0
    %341 = vmatprep.subr.mxu0 0.0
    %342 = vmatpush1.xpose.msra.mxu0 0.0
    %343 = vmatprep.subr.mxu0 0.0
    %344 = vmatpush1.xpose.msra.mxu0 0.0
    %345 = vmatprep.subr.mxu0 0.0
    %346 = vmatpush1.xpose.msra.mxu0 0.0
    %347 = vmatprep.subr.mxu0 0.0
    %348 = vmatpush1.xpose.msra.mxu0 0.0
    %349 = vmatprep.subr.mxu0 0.0
    %350 = vmatpush1.xpose.msra.mxu0 0.0
    %351 = vmatprep.subr.mxu0 0.0
    %352 = vmatpush1.xpose.msra.mxu0 0.0
    %353 = vmatprep.subr.mxu0 0.0
    %354 = vmatpush1.xpose.msra.mxu0 0.0
    %355 = vmatprep.subr.mxu0 0.0
    %356 = vmatpush1.xpose.msra.mxu0 0.0
    %357 = vmatprep.subr.mxu0 0.0
    %358 = vmatpush1.xpose.msra.mxu0 0.0
    %359 = vmatprep.subr.mxu0 0.0
    %360 = vmatpush1.xpose.msra.mxu0 0.0
    %361 = vmatprep.subr.mxu0 0.0
    %362 = vmatpush1.xpose.msra.mxu0 0.0
    %363 = vmatprep.subr.mxu0 0.0
    %364 = vmatpush1.xpose.msra.mxu0 0.0
    %365 = vmatprep.subr.mxu0 0.0
    %366 = vmatpush1.xpose.msra.mxu0 0.0
    %367 = vmatprep.subr.mxu0 0.0
    %368 = vmatpush1.xpose.msra.mxu0 0.0
    %369 = vmatprep.subr.mxu0 0.0
    %370 = vmatpush1.xpose.msra.mxu0 0.0
    %371 = vmatprep.subr.mxu0 0.0
    %372 = vmatpush1.xpose.msra.mxu0 0.0
    %373 = vmatprep.subr.mxu0 0.0
    %374 = vmatpush1.xpose.msra.mxu0 0.0
    %375 = vmatprep.subr.mxu0 0.0
    %376 = vmatpush1.xpose.msra.mxu0 0.0
    %377 = vmatprep.mubr.f32.mxu0 0.0
    %378 = vmatmul.mubr.f32.gmra.mrb[0].mxu0 %v266
    %v379 = vpop.f32.mrb[0].mxu0
    %v380 = vadd.f32 0.0, %v379
    %v381 = vpop.f32.mrb[0].mxu0
    %382 = vmatprep.mubr.f32.mxu0 0.0
    %383 = vmatmul.mubr.f32.gmra.mrb[0].mxu0 %v269
    %v384 = vpop.f32.mrb[0].mxu0
    %v385 = vadd.f32 0.0, %v384
    %v386 = vpop.f32.mrb[0].mxu0
    %387 = vmatprep.mubr.f32.mxu0 0.0
    %388 = vmatmul.mubr.f32.gmra.mrb[0].mxu0 %v272
    %v389 = vpop.f32.mrb[0].mxu0
    %v390 = vadd.f32 0.0, %v389
    %v391 = vpop.f32.mrb[0].mxu0
    %392 = vmatprep.mubr.f32.mxu0 0.0
    %393 = vmatmul.mubr.f32.gmra.mrb[0].mxu0 %v275
    %v394 = vpop.f32.mrb[0].mxu0
    %v395 = vadd.f32 0.0, %v394
    %v396 = vpop.f32.mrb[0].mxu0
    %397 = vmatprep.mubr.f32.mxu0 0.0
    %398 = vmatmul.mubr.f32.gmra.mrb[0].mxu0 %v278
    %v399 = vpop.f32.mrb[0].mxu0
    %v400 = vadd.f32 0.0, %v399
    %v401 = vpop.f32.mrb[0].mxu0
    %402 = vmatprep.mubr.f32.mxu0 0.0
    %403 = vmatmul.mubr.f32.gmra.mrb[0].mxu0 %v281
    %v404 = vpop.f32.mrb[0].mxu0
    %v405 = vadd.f32 0.0, %v404
    %v406 = vpop.f32.mrb[0].mxu0
    %407 = vmatprep.mubr.f32.mxu0 0.0
    %408 = vmatmul.mubr.f32.gmra.mrb[0].mxu0 %v284
    %v409 = vpop.f32.mrb[0].mxu0
    %v410 = vadd.f32 0.0, %v409
    %v411 = vpop.f32.mrb[0].mxu0
    %412 = vmatprep.mubr.f32.mxu0 0.0
    %413 = vmatmul.mubr.f32.gmra.mrb[0].mxu0 %v287
    %v414 = vpop.f32.mrb[0].mxu0
    %v415 = vadd.f32 0.0, %v414
    %v416 = vpop.f32.mrb[0].mxu0
    %417 = vdwg.mxu0
    %v419 = vsel %vm264, %v130, 0
    %v422 = vsel %vm264, %v131, 0
    %v425 = vsel %vm264, %v132, 0
    %v428 = vsel %vm264, %v133, 0
    %v431 = vsel %vm264, %v134, 0
    %v434 = vsel %vm264, %v135, 0
    %v437 = vsel %vm264, %v136, 0
    %v440 = vsel %vm264, %v137, 0
    %v443 = vsel %vm264, %v194, 0
    %v446 = vsel %vm264, %v195, 0
    %v449 = vsel %vm264, %v196, 0
    %v452 = vsel %vm264, %v197, 0
    %v455 = vsel %vm264, %v198, 0
    %v458 = vsel %vm264, %v199, 0
    %v461 = vsel %vm264, %v200, 0
    %v464 = vsel %vm264, %v201, 0
    %466 = vmatprep.subr.mxu0 0.0
    %467 = vmatpush1.xpose.msra.mxu0 %v443
    %468 = vmatprep.subr.mxu0 0.0
    %469 = vmatpush1.xpose.msra.mxu0 %v446
    %470 = vmatprep.subr.mxu0 0.0
    %471 = vmatpush1.xpose.msra.mxu0 %v449
    %472 = vmatprep.subr.mxu0 0.0
    %473 = vmatpush1.xpose.msra.mxu0 %v452
    %474 = vmatprep.subr.mxu0 0.0
    %475 = vmatpush1.xpose.msra.mxu0 %v455
    %476 = vmatprep.subr.mxu0 0.0
    %477 = vmatpush1.xpose.msra.mxu0 %v458
    %478 = vmatprep.subr.mxu0 0.0
    %479 = vmatpush1.xpose.msra.mxu0 %v461
    %480 = vmatprep.subr.mxu0 0.0
    %481 = vmatpush1.xpose.msra.mxu0 %v464
    %482 = vmatprep.subr.mxu0 0.0
    %483 = vmatpush1.xpose.msra.mxu0 0.0
    %484 = vmatprep.subr.mxu0 0.0
    %485 = vmatpush1.xpose.msra.mxu0 0.0
    %486 = vmatprep.subr.mxu0 0.0
    %487 = vmatpush1.xpose.msra.mxu0 0.0
    %488 = vmatprep.subr.mxu0 0.0
    %489 = vmatpush1.xpose.msra.mxu0 0.0
    %490 = vmatprep.subr.mxu0 0.0
    %491 = vmatpush1.xpose.msra.mxu0 0.0
    %492 = vmatprep.subr.mxu0 0.0
    %493 = vmatpush1.xpose.msra.mxu0 0.0
    %494 = vmatprep.subr.mxu0 0.0
    %495 = vmatpush1.xpose.msra.mxu0 0.0
    %496 = vmatprep.subr.mxu0 0.0
    %497 = vmatpush1.xpose.msra.mxu0 0.0
    %498 = vmatprep.subr.mxu0 0.0
    %499 = vmatpush1.xpose.msra.mxu0 0.0
    %500 = vmatprep.subr.mxu0 0.0
    %501 = vmatpush1.xpose.msra.mxu0 0.0
    %502 = vmatprep.subr.mxu0 0.0
    %503 = vmatpush1.xpose.msra.mxu0 0.0
    %504 = vmatprep.subr.mxu0 0.0
    %505 = vmatpush1.xpose.msra.mxu0 0.0
    %506 = vmatprep.subr.mxu0 0.0
    %507 = vmatpush1.xpose.msra.mxu0 0.0
    %508 = vmatprep.subr.mxu0 0.0
    %509 = vmatpush1.xpose.msra.mxu0 0.0
    %510 = vmatprep.subr.mxu0 0.0
    %511 = vmatpush1.xpose.msra.mxu0 0.0
    %512 = vmatprep.subr.mxu0 0.0
    %513 = vmatpush1.xpose.msra.mxu0 0.0
    %514 = vmatprep.subr.mxu0 0.0
    %515 = vmatpush1.xpose.msra.mxu0 0.0
    %516 = vmatprep.subr.mxu0 0.0
    %517 = vmatpush1.xpose.msra.mxu0 0.0
    %518 = vmatprep.subr.mxu0 0.0
    %519 = vmatpush1.xpose.msra.mxu0 0.0
    %520 = vmatprep.subr.mxu0 0.0
    %521 = vmatpush1.xpose.msra.mxu0 0.0
    %522 = vmatprep.subr.mxu0 0.0
    %523 = vmatpush1.xpose.msra.mxu0 0.0
    %524 = vmatprep.subr.mxu0 0.0
    %525 = vmatpush1.xpose.msra.mxu0 0.0
    %526 = vmatprep.subr.mxu0 0.0
    %527 = vmatpush1.xpose.msra.mxu0 0.0
    %528 = vmatprep.subr.mxu0 0.0
    %529 = vmatpush1.xpose.msra.mxu0 0.0
    %530 = vmatprep.mubr.f32.mxu0 0.0
    %531 = vmatmul.mubr.f32.gmra.mrb[0].mxu0 %v419
    %v532 = vpop.f32.mrb[0].mxu0
    %v533 = vadd.f32 0.0, %v532
    %v534 = vpop.f32.mrb[0].mxu0
    %535 = vmatprep.mubr.f32.mxu0 0.0
    %536 = vmatmul.mubr.f32.gmra.mrb[0].mxu0 %v422
    %v537 = vpop.f32.mrb[0].mxu0
    %v538 = vadd.f32 0.0, %v537
    %v539 = vpop.f32.mrb[0].mxu0
    %540 = vmatprep.mubr.f32.mxu0 0.0
    %541 = vmatmul.mubr.f32.gmra.mrb[0].mxu0 %v425
    %v542 = vpop.f32.mrb[0].mxu0
    %v543 = vadd.f32 0.0, %v542
    %v544 = vpop.f32.mrb[0].mxu0
    %545 = vmatprep.mubr.f32.mxu0 0.0
    %546 = vmatmul.mubr.f32.gmra.mrb[0].mxu0 %v428
    %v547 = vpop.f32.mrb[0].mxu0
    %v548 = vadd.f32 0.0, %v547
    %v549 = vpop.f32.mrb[0].mxu0
    %550 = vmatprep.mubr.f32.mxu0 0.0
    %551 = vmatmul.mubr.f32.gmra.mrb[0].mxu0 %v431
    %v552 = vpop.f32.mrb[0].mxu0
    %v553 = vadd.f32 0.0, %v552
    %v554 = vpop.f32.mrb[0].mxu0
    %555 = vmatprep.mubr.f32.mxu0 0.0
    %556 = vmatmul.mubr.f32.gmra.mrb[0].mxu0 %v434
    %v557 = vpop.f32.mrb[0].mxu0
    %v558 = vadd.f32 0.0, %v557
    %v559 = vpop.f32.mrb[0].mxu0
    %560 = vmatprep.mubr.f32.mxu0 0.0
    %561 = vmatmul.mubr.f32.gmra.mrb[0].mxu0 %v437
    %v562 = vpop.f32.mrb[0].mxu0
    %v563 = vadd.f32 0.0, %v562
    %v564 = vpop.f32.mrb[0].mxu0
    %565 = vmatprep.mubr.f32.mxu0 0.0
    %566 = vmatmul.mubr.f32.gmra.mrb[0].mxu0 %v440
    %v567 = vpop.f32.mrb[0].mxu0
    %v568 = vadd.f32 0.0, %v567
    %v569 = vpop.f32.mrb[0].mxu0
    %570 = vdwg.mxu0
    %v572 = vsel %vm264, %v138, 0
    %v575 = vsel %vm264, %v139, 0
    %v578 = vsel %vm264, %v140, 0
    %v581 = vsel %vm264, %v141, 0
    %v584 = vsel %vm264, %v142, 0
    %v587 = vsel %vm264, %v143, 0
    %v590 = vsel %vm264, %v144, 0
    %v593 = vsel %vm264, %v145, 0
    %v596 = vsel %vm264, %v202, 0
    %v599 = vsel %vm264, %v203, 0
    %v602 = vsel %vm264, %v204, 0
    %v605 = vsel %vm264, %v205, 0
    %v608 = vsel %vm264, %v206, 0
    %v611 = vsel %vm264, %v207, 0
    %v614 = vsel %vm264, %v208, 0
    %v617 = vsel %vm264, %v209, 0
    %619 = vmatprep.subr.mxu0 0.0
    %620 = vmatpush1.xpose.msra.mxu0 %v596
    %621 = vmatprep.subr.mxu0 0.0
    %622 = vmatpush1.xpose.msra.mxu0 %v599
    %623 = vmatprep.subr.mxu0 0.0
    %624 = vmatpush1.xpose.msra.mxu0 %v602
    %625 = vmatprep.subr.mxu0 0.0
    %626 = vmatpush1.xpose.msra.mxu0 %v605
    %627 = vmatprep.subr.mxu0 0.0
    %628 = vmatpush1.xpose.msra.mxu0 %v608
    %629 = vmatprep.subr.mxu0 0.0
    %630 = vmatpush1.xpose.msra.mxu0 %v611
    %631 = vmatprep.subr.mxu0 0.0
    %632 = vmatpush1.xpose.msra.mxu0 %v614
    %633 = vmatprep.subr.mxu0 0.0
    %634 = vmatpush1.xpose.msra.mxu0 %v617
    %635 = vmatprep.subr.mxu0 0.0
    %636 = vmatpush1.xpose.msra.mxu0 0.0
    %637 = vmatprep.subr.mxu0 0.0
    %638 = vmatpush1.xpose.msra.mxu0 0.0
    %639 = vmatprep.subr.mxu0 0.0
    %640 = vmatpush1.xpose.msra.mxu0 0.0
    %641 = vmatprep.subr.mxu0 0.0
    %642 = vmatpush1.xpose.msra.mxu0 0.0
    %643 = vmatprep.subr.mxu0 0.0
    %644 = vmatpush1.xpose.msra.mxu0 0.0
    %645 = vmatprep.subr.mxu0 0.0
    %646 = vmatpush1.xpose.msra.mxu0 0.0
    %647 = vmatprep.subr.mxu0 0.0
    %648 = vmatpush1.xpose.msra.mxu0 0.0
    %649 = vmatprep.subr.mxu0 0.0
    %650 = vmatpush1.xpose.msra.mxu0 0.0
    %651 = vmatprep.subr.mxu0 0.0
    %652 = vmatpush1.xpose.msra.mxu0 0.0
    %653 = vmatprep.subr.mxu0 0.0
    %654 = vmatpush1.xpose.msra.mxu0 0.0
    %655 = vmatprep.subr.mxu0 0.0
    %656 = vmatpush1.xpose.msra.mxu0 0.0
    %657 = vmatprep.subr.mxu0 0.0
    %658 = vmatpush1.xpose.msra.mxu0 0.0
    %659 = vmatprep.subr.mxu0 0.0
    %660 = vmatpush1.xpose.msra.mxu0 0.0
    %661 = vmatprep.subr.mxu0 0.0
    %662 = vmatpush1.xpose.msra.mxu0 0.0
    %663 = vmatprep.subr.mxu0 0.0
    %664 = vmatpush1.xpose.msra.mxu0 0.0
    %665 = vmatprep.subr.mxu0 0.0
    %666 = vmatpush1.xpose.msra.mxu0 0.0
    %667 = vmatprep.subr.mxu0 0.0
    %668 = vmatpush1.xpose.msra.mxu0 0.0
    %669 = vmatprep.subr.mxu0 0.0
    %670 = vmatpush1.xpose.msra.mxu0 0.0
    %671 = vmatprep.subr.mxu0 0.0
    %672 = vmatpush1.xpose.msra.mxu0 0.0
    %673 = vmatprep.subr.mxu0 0.0
    %674 = vmatpush1.xpose.msra.mxu0 0.0
    %675 = vmatprep.subr.mxu0 0.0
    %676 = vmatpush1.xpose.msra.mxu0 0.0
    %677 = vmatprep.subr.mxu0 0.0
    %678 = vmatpush1.xpose.msra.mxu0 0.0
    %679 = vmatprep.subr.mxu0 0.0
    %680 = vmatpush1.xpose.msra.mxu0 0.0
    %681 = vmatprep.subr.mxu0 0.0
    %682 = vmatpush1.xpose.msra.mxu0 0.0
    %683 = vmatprep.mubr.f32.mxu0 0.0
    %684 = vmatmul.mubr.f32.gmra.mrb[0].mxu0 %v572
    %v685 = vpop.f32.mrb[0].mxu0
    %v686 = vadd.f32 0.0, %v685
    %v687 = vpop.f32.mrb[0].mxu0
    %688 = vmatprep.mubr.f32.mxu0 0.0
    %689 = vmatmul.mubr.f32.gmra.mrb[0].mxu0 %v575
    %v690 = vpop.f32.mrb[0].mxu0
    %v691 = vadd.f32 0.0, %v690
    %v692 = vpop.f32.mrb[0].mxu0
    %693 = vmatprep.mubr.f32.mxu0 0.0
    %694 = vmatmul.mubr.f32.gmra.mrb[0].mxu0 %v578
    %v695 = vpop.f32.mrb[0].mxu0
    %v696 = vadd.f32 0.0, %v695
    %v697 = vpop.f32.mrb[0].mxu0
    %698 = vmatprep.mubr.f32.mxu0 0.0
    %699 = vmatmul.mubr.f32.gmra.mrb[0].mxu0 %v581
    %v700 = vpop.f32.mrb[0].mxu0
    %v701 = vadd.f32 0.0, %v700
    %v702 = vpop.f32.mrb[0].mxu0
    %703 = vmatprep.mubr.f32.mxu0 0.0
    %704 = vmatmul.mubr.f32.gmra.mrb[0].mxu0 %v584
    %v705 = vpop.f32.mrb[0].mxu0
    %v706 = vadd.f32 0.0, %v705
    %v707 = vpop.f32.mrb[0].mxu0
    %708 = vmatprep.mubr.f32.mxu0 0.0
    %709 = vmatmul.mubr.f32.gmra.mrb[0].mxu0 %v587
    %v710 = vpop.f32.mrb[0].mxu0
    %v711 = vadd.f32 0.0, %v710
    %v712 = vpop.f32.mrb[0].mxu0
    %713 = vmatprep.mubr.f32.mxu0 0.0
    %714 = vmatmul.mubr.f32.gmra.mrb[0].mxu0 %v590
    %v715 = vpop.f32.mrb[0].mxu0
    %v716 = vadd.f32 0.0, %v715
    %v717 = vpop.f32.mrb[0].mxu0
    %718 = vmatprep.mubr.f32.mxu0 0.0
    %719 = vmatmul.mubr.f32.gmra.mrb[0].mxu0 %v593
    %v720 = vpop.f32.mrb[0].mxu0
    %v721 = vadd.f32 0.0, %v720
    %v722 = vpop.f32.mrb[0].mxu0
    %723 = vdwg.mxu0
    %v725 = vsel %vm264, %v146, 0
    %v728 = vsel %vm264, %v147, 0
    %v731 = vsel %vm264, %v148, 0
    %v734 = vsel %vm264, %v149, 0
    %v737 = vsel %vm264, %v150, 0
    %v740 = vsel %vm264, %v151, 0
    %v743 = vsel %vm264, %v152, 0
    %v746 = vsel %vm264, %v153, 0
    %v749 = vsel %vm264, %v210, 0
    %v752 = vsel %vm264, %v211, 0
    %v755 = vsel %vm264, %v212, 0
    %v758 = vsel %vm264, %v213, 0
    %v761 = vsel %vm264, %v214, 0
    %v764 = vsel %vm264, %v215, 0
    %v767 = vsel %vm264, %v216, 0
    %v770 = vsel %vm264, %v217, 0
    %772 = vmatprep.subr.mxu0 0.0
    %773 = vmatpush1.xpose.msra.mxu0 %v749
    %774 = vmatprep.subr.mxu0 0.0
    %775 = vmatpush1.xpose.msra.mxu0 %v752
    %776 = vmatprep.subr.mxu0 0.0
    %777 = vmatpush1.xpose.msra.mxu0 %v755
    %778 = vmatprep.subr.mxu0 0.0
    %779 = vmatpush1.xpose.msra.mxu0 %v758
    %780 = vmatprep.subr.mxu0 0.0
    %781 = vmatpush1.xpose.msra.mxu0 %v761
    %782 = vmatprep.subr.mxu0 0.0
    %783 = vmatpush1.xpose.msra.mxu0 %v764
    %784 = vmatprep.subr.mxu0 0.0
    %785 = vmatpush1.xpose.msra.mxu0 %v767
    %786 = vmatprep.subr.mxu0 0.0
    %787 = vmatpush1.xpose.msra.mxu0 %v770
    %788 = vmatprep.subr.mxu0 0.0
    %789 = vmatpush1.xpose.msra.mxu0 0.0
    %790 = vmatprep.subr.mxu0 0.0
    %791 = vmatpush1.xpose.msra.mxu0 0.0
    %792 = vmatprep.subr.mxu0 0.0
    %793 = vmatpush1.xpose.msra.mxu0 0.0
    %794 = vmatprep.subr.mxu0 0.0
    %795 = vmatpush1.xpose.msra.mxu0 0.0
    %796 = vmatprep.subr.mxu0 0.0
    %797 = vmatpush1.xpose.msra.mxu0 0.0
    %798 = vmatprep.subr.mxu0 0.0
    %799 = vmatpush1.xpose.msra.mxu0 0.0
    %800 = vmatprep.subr.mxu0 0.0
    %801 = vmatpush1.xpose.msra.mxu0 0.0
    %802 = vmatprep.subr.mxu0 0.0
    %803 = vmatpush1.xpose.msra.mxu0 0.0
    %804 = vmatprep.subr.mxu0 0.0
    %805 = vmatpush1.xpose.msra.mxu0 0.0
    %806 = vmatprep.subr.mxu0 0.0
    %807 = vmatpush1.xpose.msra.mxu0 0.0
    %808 = vmatprep.subr.mxu0 0.0
    %809 = vmatpush1.xpose.msra.mxu0 0.0
    %810 = vmatprep.subr.mxu0 0.0
    %811 = vmatpush1.xpose.msra.mxu0 0.0
    %812 = vmatprep.subr.mxu0 0.0
    %813 = vmatpush1.xpose.msra.mxu0 0.0
    %814 = vmatprep.subr.mxu0 0.0
    %815 = vmatpush1.xpose.msra.mxu0 0.0
    %816 = vmatprep.subr.mxu0 0.0
    %817 = vmatpush1.xpose.msra.mxu0 0.0
    %818 = vmatprep.subr.mxu0 0.0
    %819 = vmatpush1.xpose.msra.mxu0 0.0
    %820 = vmatprep.subr.mxu0 0.0
    %821 = vmatpush1.xpose.msra.mxu0 0.0
    %822 = vmatprep.subr.mxu0 0.0
    %823 = vmatpush1.xpose.msra.mxu0 0.0
    %824 = vmatprep.subr.mxu0 0.0
    %825 = vmatpush1.xpose.msra.mxu0 0.0
    %826 = vmatprep.subr.mxu0 0.0
    %827 = vmatpush1.xpose.msra.mxu0 0.0
    %828 = vmatprep.subr.mxu0 0.0
    %829 = vmatpush1.xpose.msra.mxu0 0.0
    %830 = vmatprep.subr.mxu0 0.0
    %831 = vmatpush1.xpose.msra.mxu0 0.0
    %832 = vmatprep.subr.mxu0 0.0
    %833 = vmatpush1.xpose.msra.mxu0 0.0
    %834 = vmatprep.subr.mxu0 0.0
    %835 = vmatpush1.xpose.msra.mxu0 0.0
    %836 = vmatprep.mubr.f32.mxu0 0.0
    %837 = vmatmul.mubr.f32.gmra.mrb[0].mxu0 %v725
    %v838 = vpop.f32.mrb[0].mxu0
    %v839 = vadd.f32 0.0, %v838
    %v840 = vpop.f32.mrb[0].mxu0
    %841 = vmatprep.mubr.f32.mxu0 0.0
    %842 = vmatmul.mubr.f32.gmra.mrb[0].mxu0 %v728
    %v843 = vpop.f32.mrb[0].mxu0
    %v844 = vadd.f32 0.0, %v843
    %v845 = vpop.f32.mrb[0].mxu0
    %846 = vmatprep.mubr.f32.mxu0 0.0
    %847 = vmatmul.mubr.f32.gmra.mrb[0].mxu0 %v731
    %v848 = vpop.f32.mrb[0].mxu0
    %v849 = vadd.f32 0.0, %v848
    %v850 = vpop.f32.mrb[0].mxu0
    %851 = vmatprep.mubr.f32.mxu0 0.0
    %852 = vmatmul.mubr.f32.gmra.mrb[0].mxu0 %v734
    %v853 = vpop.f32.mrb[0].mxu0
    %v854 = vadd.f32 0.0, %v853
    %v855 = vpop.f32.mrb[0].mxu0
    %856 = vmatprep.mubr.f32.mxu0 0.0
    %857 = vmatmul.mubr.f32.gmra.mrb[0].mxu0 %v737
    %v858 = vpop.f32.mrb[0].mxu0
    %v859 = vadd.f32 0.0, %v858
    %v860 = vpop.f32.mrb[0].mxu0
    %861 = vmatprep.mubr.f32.mxu0 0.0
    %862 = vmatmul.mubr.f32.gmra.mrb[0].mxu0 %v740
    %v863 = vpop.f32.mrb[0].mxu0
    %v864 = vadd.f32 0.0, %v863
    %v865 = vpop.f32.mrb[0].mxu0
    %866 = vmatprep.mubr.f32.mxu0 0.0
    %867 = vmatmul.mubr.f32.gmra.mrb[0].mxu0 %v743
    %v868 = vpop.f32.mrb[0].mxu0
    %v869 = vadd.f32 0.0, %v868
    %v870 = vpop.f32.mrb[0].mxu0
    %871 = vmatprep.mubr.f32.mxu0 0.0
    %872 = vmatmul.mubr.f32.gmra.mrb[0].mxu0 %v746
    %v873 = vpop.f32.mrb[0].mxu0
    %v874 = vadd.f32 0.0, %v873
    %v875 = vpop.f32.mrb[0].mxu0
    %876 = vdwg.mxu0
    %v878 = vsel %vm264, %v154, 0
    %v881 = vsel %vm264, %v155, 0
    %v884 = vsel %vm264, %v156, 0
    %v887 = vsel %vm264, %v157, 0
    %v890 = vsel %vm264, %v158, 0
    %v893 = vsel %vm264, %v159, 0
    %v896 = vsel %vm264, %v160, 0
    %v899 = vsel %vm264, %v161, 0
    %v902 = vsel %vm264, %v218, 0
    %v905 = vsel %vm264, %v219, 0
    %v908 = vsel %vm264, %v220, 0
    %v911 = vsel %vm264, %v221, 0
    %v914 = vsel %vm264, %v222, 0
    %v917 = vsel %vm264, %v223, 0
    %v920 = vsel %vm264, %v224, 0
    %v923 = vsel %vm264, %v225, 0
    %925 = vmatprep.subr.mxu0 0.0
    %926 = vmatpush1.xpose.msra.mxu0 %v902
    %927 = vmatprep.subr.mxu0 0.0
    %928 = vmatpush1.xpose.msra.mxu0 %v905
    %929 = vmatprep.subr.mxu0 0.0
    %930 = vmatpush1.xpose.msra.mxu0 %v908
    %931 = vmatprep.subr.mxu0 0.0
    %932 = vmatpush1.xpose.msra.mxu0 %v911
    %933 = vmatprep.subr.mxu0 0.0
    %934 = vmatpush1.xpose.msra.mxu0 %v914
    %935 = vmatprep.subr.mxu0 0.0
    %936 = vmatpush1.xpose.msra.mxu0 %v917
    %937 = vmatprep.subr.mxu0 0.0
    %938 = vmatpush1.xpose.msra.mxu0 %v920
    %939 = vmatprep.subr.mxu0 0.0
    %940 = vmatpush1.xpose.msra.mxu0 %v923
    %941 = vmatprep.subr.mxu0 0.0
    %942 = vmatpush1.xpose.msra.mxu0 0.0
    %943 = vmatprep.subr.mxu0 0.0
    %944 = vmatpush1.xpose.msra.mxu0 0.0
    %945 = vmatprep.subr.mxu0 0.0
    %946 = vmatpush1.xpose.msra.mxu0 0.0
    %947 = vmatprep.subr.mxu0 0.0
    %948 = vmatpush1.xpose.msra.mxu0 0.0
    %949 = vmatprep.subr.mxu0 0.0
    %950 = vmatpush1.xpose.msra.mxu0 0.0
    %951 = vmatprep.subr.mxu0 0.0
    %952 = vmatpush1.xpose.msra.mxu0 0.0
    %953 = vmatprep.subr.mxu0 0.0
    %954 = vmatpush1.xpose.msra.mxu0 0.0
    %955 = vmatprep.subr.mxu0 0.0
    %956 = vmatpush1.xpose.msra.mxu0 0.0
    %957 = vmatprep.subr.mxu0 0.0
    %958 = vmatpush1.xpose.msra.mxu0 0.0
    %959 = vmatprep.subr.mxu0 0.0
    %960 = vmatpush1.xpose.msra.mxu0 0.0
    %961 = vmatprep.subr.mxu0 0.0
    %962 = vmatpush1.xpose.msra.mxu0 0.0
    %963 = vmatprep.subr.mxu0 0.0
    %964 = vmatpush1.xpose.msra.mxu0 0.0
    %965 = vmatprep.subr.mxu0 0.0
    %966 = vmatpush1.xpose.msra.mxu0 0.0
    %967 = vmatprep.subr.mxu0 0.0
    %968 = vmatpush1.xpose.msra.mxu0 0.0
    %969 = vmatprep.subr.mxu0 0.0
    %970 = vmatpush1.xpose.msra.mxu0 0.0
    %971 = vmatprep.subr.mxu0 0.0
    %972 = vmatpush1.xpose.msra.mxu0 0.0
    %973 = vmatprep.subr.mxu0 0.0
    %974 = vmatpush1.xpose.msra.mxu0 0.0
    %975 = vmatprep.subr.mxu0 0.0
    %976 = vmatpush1.xpose.msra.mxu0 0.0
    %977 = vmatprep.subr.mxu0 0.0
    %978 = vmatpush1.xpose.msra.mxu0 0.0
    %979 = vmatprep.subr.mxu0 0.0
    %980 = vmatpush1.xpose.msra.mxu0 0.0
    %981 = vmatprep.subr.mxu0 0.0
    %982 = vmatpush1.xpose.msra.mxu0 0.0
    %983 = vmatprep.subr.mxu0 0.0
    %984 = vmatpush1.xpose.msra.mxu0 0.0
    %985 = vmatprep.subr.mxu0 0.0
    %986 = vmatpush1.xpose.msra.mxu0 0.0
    %987 = vmatprep.subr.mxu0 0.0
    %988 = vmatpush1.xpose.msra.mxu0 0.0
    %989 = vmatprep.mubr.f32.mxu0 0.0
    %990 = vmatmul.mubr.f32.gmra.mrb[0].mxu0 %v878
    %v991 = vpop.f32.mrb[0].mxu0
    %v992 = vadd.f32 0.0, %v991
    %v993 = vpop.f32.mrb[0].mxu0
    %994 = vmatprep.mubr.f32.mxu0 0.0
    %995 = vmatmul.mubr.f32.gmra.mrb[0].mxu0 %v881
    %v996 = vpop.f32.mrb[0].mxu0
    %v997 = vadd.f32 0.0, %v996
    %v998 = vpop.f32.mrb[0].mxu0
    %999 = vmatprep.mubr.f32.mxu0 0.0
    %1000 = vmatmul.mubr.f32.gmra.mrb[0].mxu0 %v884
    %v1001 = vpop.f32.mrb[0].mxu0
    %v1002 = vadd.f32 0.0, %v1001
    %v1003 = vpop.f32.mrb[0].mxu0
    %1004 = vmatprep.mubr.f32.mxu0 0.0
    %1005 = vmatmul.mubr.f32.gmra.mrb[0].mxu0 %v887
    %v1006 = vpop.f32.mrb[0].mxu0
    %v1007 = vadd.f32 0.0, %v1006
    %v1008 = vpop.f32.mrb[0].mxu0
    %1009 = vmatprep.mubr.f32.mxu0 0.0
    %1010 = vmatmul.mubr.f32.gmra.mrb[0].mxu0 %v890
    %v1011 = vpop.f32.mrb[0].mxu0
    %v1012 = vadd.f32 0.0, %v1011
    %v1013 = vpop.f32.mrb[0].mxu0
    %1014 = vmatprep.mubr.f32.mxu0 0.0
    %1015 = vmatmul.mubr.f32.gmra.mrb[0].mxu0 %v893
    %v1016 = vpop.f32.mrb[0].mxu0
    %v1017 = vadd.f32 0.0, %v1016
    %v1018 = vpop.f32.mrb[0].mxu0
    %1019 = vmatprep.mubr.f32.mxu0 0.0
    %1020 = vmatmul.mubr.f32.gmra.mrb[0].mxu0 %v896
    %v1021 = vpop.f32.mrb[0].mxu0
    %v1022 = vadd.f32 0.0, %v1021
    %v1023 = vpop.f32.mrb[0].mxu0
    %1024 = vmatprep.mubr.f32.mxu0 0.0
    %1025 = vmatmul.mubr.f32.gmra.mrb[0].mxu0 %v899
    %v1026 = vpop.f32.mrb[0].mxu0
    %v1027 = vadd.f32 0.0, %v1026
    %v1028 = vpop.f32.mrb[0].mxu0
    %1029 = vdwg.mxu0
    %v1031 = vsel %vm264, %v162, 0
    %v1034 = vsel %vm264, %v163, 0
    %v1037 = vsel %vm264, %v164, 0
    %v1040 = vsel %vm264, %v165, 0
    %v1043 = vsel %vm264, %v166, 0
    %v1046 = vsel %vm264, %v167, 0
    %v1049 = vsel %vm264, %v168, 0
    %v1052 = vsel %vm264, %v169, 0
    %v1055 = vsel %vm264, %v226, 0
    %v1058 = vsel %vm264, %v227, 0
    %v1061 = vsel %vm264, %v228, 0
    %v1064 = vsel %vm264, %v229, 0
    %v1067 = vsel %vm264, %v230, 0
    %v1070 = vsel %vm264, %v231, 0
    %v1073 = vsel %vm264, %v232, 0
    %v1076 = vsel %vm264, %v233, 0
    %1078 = vmatprep.subr.mxu0 0.0
    %1079 = vmatpush1.xpose.msra.mxu0 %v1055
    %1080 = vmatprep.subr.mxu0 0.0
    %1081 = vmatpush1.xpose.msra.mxu0 %v1058
    %1082 = vmatprep.subr.mxu0 0.0
    %1083 = vmatpush1.xpose.msra.mxu0 %v1061
    %1084 = vmatprep.subr.mxu0 0.0
    %1085 = vmatpush1.xpose.msra.mxu0 %v1064
    %1086 = vmatprep.subr.mxu0 0.0
    %1087 = vmatpush1.xpose.msra.mxu0 %v1067
    %1088 = vmatprep.subr.mxu0 0.0
    %1089 = vmatpush1.xpose.msra.mxu0 %v1070
    %1090 = vmatprep.subr.mxu0 0.0
    %1091 = vmatpush1.xpose.msra.mxu0 %v1073
    %1092 = vmatprep.subr.mxu0 0.0
    %1093 = vmatpush1.xpose.msra.mxu0 %v1076
    %1094 = vmatprep.subr.mxu0 0.0
    %1095 = vmatpush1.xpose.msra.mxu0 0.0
    %1096 = vmatprep.subr.mxu0 0.0
    %1097 = vmatpush1.xpose.msra.mxu0 0.0
    %1098 = vmatprep.subr.mxu0 0.0
    %1099 = vmatpush1.xpose.msra.mxu0 0.0
    %1100 = vmatprep.subr.mxu0 0.0
    %1101 = vmatpush1.xpose.msra.mxu0 0.0
    %1102 = vmatprep.subr.mxu0 0.0
    %1103 = vmatpush1.xpose.msra.mxu0 0.0
    %1104 = vmatprep.subr.mxu0 0.0
    %1105 = vmatpush1.xpose.msra.mxu0 0.0
    %1106 = vmatprep.subr.mxu0 0.0
    %1107 = vmatpush1.xpose.msra.mxu0 0.0
    %1108 = vmatprep.subr.mxu0 0.0
    %1109 = vmatpush1.xpose.msra.mxu0 0.0
    %1110 = vmatprep.subr.mxu0 0.0
    %1111 = vmatpush1.xpose.msra.mxu0 0.0
    %1112 = vmatprep.subr.mxu0 0.0
    %1113 = vmatpush1.xpose.msra.mxu0 0.0
    %1114 = vmatprep.subr.mxu0 0.0
    %1115 = vmatpush1.xpose.msra.mxu0 0.0
    %1116 = vmatprep.subr.mxu0 0.0
    %1117 = vmatpush1.xpose.msra.mxu0 0.0
    %1118 = vmatprep.subr.mxu0 0.0
    %1119 = vmatpush1.xpose.msra.mxu0 0.0
    %1120 = vmatprep.subr.mxu0 0.0
    %1121 = vmatpush1.xpose.msra.mxu0 0.0
    %1122 = vmatprep.subr.mxu0 0.0
    %1123 = vmatpush1.xpose.msra.mxu0 0.0
    %1124 = vmatprep.subr.mxu0 0.0
    %1125 = vmatpush1.xpose.msra.mxu0 0.0
    %1126 = vmatprep.subr.mxu0 0.0
    %1127 = vmatpush1.xpose.msra.mxu0 0.0
    %1128 = vmatprep.subr.mxu0 0.0
    %1129 = vmatpush1.xpose.msra.mxu0 0.0
    %1130 = vmatprep.subr.mxu0 0.0
    %1131 = vmatpush1.xpose.msra.mxu0 0.0
    %1132 = vmatprep.subr.mxu0 0.0
    %1133 = vmatpush1.xpose.msra.mxu0 0.0
    %1134 = vmatprep.subr.mxu0 0.0
    %1135 = vmatpush1.xpose.msra.mxu0 0.0
    %1136 = vmatprep.subr.mxu0 0.0
    %1137 = vmatpush1.xpose.msra.mxu0 0.0
    %1138 = vmatprep.subr.mxu0 0.0
    %1139 = vmatpush1.xpose.msra.mxu0 0.0
    %1140 = vmatprep.subr.mxu0 0.0
    %1141 = vmatpush1.xpose.msra.mxu0 0.0
    %1142 = vmatprep.mubr.f32.mxu0 0.0
    %1143 = vmatmul.mubr.f32.gmra.mrb[0].mxu0 %v1031
    %v1144 = vpop.f32.mrb[0].mxu0
    %v1145 = vadd.f32 0.0, %v1144
    %v1146 = vpop.f32.mrb[0].mxu0
    %1147 = vmatprep.mubr.f32.mxu0 0.0
    %1148 = vmatmul.mubr.f32.gmra.mrb[0].mxu0 %v1034
    %v1149 = vpop.f32.mrb[0].mxu0
    %v1150 = vadd.f32 0.0, %v1149
    %v1151 = vpop.f32.mrb[0].mxu0
    %1152 = vmatprep.mubr.f32.mxu0 0.0
    %1153 = vmatmul.mubr.f32.gmra.mrb[0].mxu0 %v1037
    %v1154 = vpop.f32.mrb[0].mxu0
    %v1155 = vadd.f32 0.0, %v1154
    %v1156 = vpop.f32.mrb[0].mxu0
    %1157 = vmatprep.mubr.f32.mxu0 0.0
    %1158 = vmatmul.mubr.f32.gmra.mrb[0].mxu0 %v1040
    %v1159 = vpop.f32.mrb[0].mxu0
    %v1160 = vadd.f32 0.0, %v1159
    %v1161 = vpop.f32.mrb[0].mxu0
    %1162 = vmatprep.mubr.f32.mxu0 0.0
    %1163 = vmatmul.mubr.f32.gmra.mrb[0].mxu0 %v1043
    %v1164 = vpop.f32.mrb[0].mxu0
    %v1165 = vadd.f32 0.0, %v1164
    %v1166 = vpop.f32.mrb[0].mxu0
    %1167 = vmatprep.mubr.f32.mxu0 0.0
    %1168 = vmatmul.mubr.f32.gmra.mrb[0].mxu0 %v1046
    %v1169 = vpop.f32.mrb[0].mxu0
    %v1170 = vadd.f32 0.0, %v1169
    %v1171 = vpop.f32.mrb[0].mxu0
    %1172 = vmatprep.mubr.f32.mxu0 0.0
    %1173 = vmatmul.mubr.f32.gmra.mrb[0].mxu0 %v1049
    %v1174 = vpop.f32.mrb[0].mxu0
    %v1175 = vadd.f32 0.0, %v1174
    %v1176 = vpop.f32.mrb[0].mxu0
    %1177 = vmatprep.mubr.f32.mxu0 0.0
    %1178 = vmatmul.mubr.f32.gmra.mrb[0].mxu0 %v1052
    %v1179 = vpop.f32.mrb[0].mxu0
    %v1180 = vadd.f32 0.0, %v1179
    %v1181 = vpop.f32.mrb[0].mxu0
    %1182 = vdwg.mxu0
    %v1184 = vsel %vm264, %v170, 0
    %v1187 = vsel %vm264, %v171, 0
    %v1190 = vsel %vm264, %v172, 0
    %v1193 = vsel %vm264, %v173, 0
    %v1196 = vsel %vm264, %v174, 0
    %v1199 = vsel %vm264, %v175, 0
    %v1202 = vsel %vm264, %v176, 0
    %v1205 = vsel %vm264, %v177, 0
    %v1208 = vsel %vm264, %v234, 0
    %v1211 = vsel %vm264, %v235, 0
    %v1214 = vsel %vm264, %v236, 0
    %v1217 = vsel %vm264, %v237, 0
    %v1220 = vsel %vm264, %v238, 0
    %v1223 = vsel %vm264, %v239, 0
    %v1226 = vsel %vm264, %v240, 0
    %v1229 = vsel %vm264, %v241, 0
    %1231 = vmatprep.subr.mxu0 0.0
    %1232 = vmatpush1.xpose.msra.mxu0 %v1208
    %1233 = vmatprep.subr.mxu0 0.0
    %1234 = vmatpush1.xpose.msra.mxu0 %v1211
    %1235 = vmatprep.subr.mxu0 0.0
    %1236 = vmatpush1.xpose.msra.mxu0 %v1214
    %1237 = vmatprep.subr.mxu0 0.0
    %1238 = vmatpush1.xpose.msra.mxu0 %v1217
    %1239 = vmatprep.subr.mxu0 0.0
    %1240 = vmatpush1.xpose.msra.mxu0 %v1220
    %1241 = vmatprep.subr.mxu0 0.0
    %1242 = vmatpush1.xpose.msra.mxu0 %v1223
    %1243 = vmatprep.subr.mxu0 0.0
    %1244 = vmatpush1.xpose.msra.mxu0 %v1226
    %1245 = vmatprep.subr.mxu0 0.0
    %1246 = vmatpush1.xpose.msra.mxu0 %v1229
    %1247 = vmatprep.subr.mxu0 0.0
    %1248 = vmatpush1.xpose.msra.mxu0 0.0
    %1249 = vmatprep.subr.mxu0 0.0
    %1250 = vmatpush1.xpose.msra.mxu0 0.0
    %1251 = vmatprep.subr.mxu0 0.0
    %1252 = vmatpush1.xpose.msra.mxu0 0.0
    %1253 = vmatprep.subr.mxu0 0.0
    %1254 = vmatpush1.xpose.msra.mxu0 0.0
    %1255 = vmatprep.subr.mxu0 0.0
    %1256 = vmatpush1.xpose.msra.mxu0 0.0
    %1257 = vmatprep.subr.mxu0 0.0
    %1258 = vmatpush1.xpose.msra.mxu0 0.0
    %1259 = vmatprep.subr.mxu0 0.0
    %1260 = vmatpush1.xpose.msra.mxu0 0.0
    %1261 = vmatprep.subr.mxu0 0.0
    %1262 = vmatpush1.xpose.msra.mxu0 0.0
    %1263 = vmatprep.subr.mxu0 0.0
    %1264 = vmatpush1.xpose.msra.mxu0 0.0
    %1265 = vmatprep.subr.mxu0 0.0
    %1266 = vmatpush1.xpose.msra.mxu0 0.0
    %1267 = vmatprep.subr.mxu0 0.0
    %1268 = vmatpush1.xpose.msra.mxu0 0.0
    %1269 = vmatprep.subr.mxu0 0.0
    %1270 = vmatpush1.xpose.msra.mxu0 0.0
    %1271 = vmatprep.subr.mxu0 0.0
    %1272 = vmatpush1.xpose.msra.mxu0 0.0
    %1273 = vmatprep.subr.mxu0 0.0
    %1274 = vmatpush1.xpose.msra.mxu0 0.0
    %1275 = vmatprep.subr.mxu0 0.0
    %1276 = vmatpush1.xpose.msra.mxu0 0.0
    %1277 = vmatprep.subr.mxu0 0.0
    %1278 = vmatpush1.xpose.msra.mxu0 0.0
    %1279 = vmatprep.subr.mxu0 0.0
    %1280 = vmatpush1.xpose.msra.mxu0 0.0
    %1281 = vmatprep.subr.mxu0 0.0
    %1282 = vmatpush1.xpose.msra.mxu0 0.0
    %1283 = vmatprep.subr.mxu0 0.0
    %1284 = vmatpush1.xpose.msra.mxu0 0.0
    %1285 = vmatprep.subr.mxu0 0.0
    %1286 = vmatpush1.xpose.msra.mxu0 0.0
    %1287 = vmatprep.subr.mxu0 0.0
    %1288 = vmatpush1.xpose.msra.mxu0 0.0
    %1289 = vmatprep.subr.mxu0 0.0
    %1290 = vmatpush1.xpose.msra.mxu0 0.0
    %1291 = vmatprep.subr.mxu0 0.0
    %1292 = vmatpush1.xpose.msra.mxu0 0.0
    %1293 = vmatprep.subr.mxu0 0.0
    %1294 = vmatpush1.xpose.msra.mxu0 0.0
    %1295 = vmatprep.mubr.f32.mxu0 0.0
    %1296 = vmatmul.mubr.f32.gmra.mrb[0].mxu0 %v1184
    %v1297 = vpop.f32.mrb[0].mxu0
    %v1298 = vadd.f32 0.0, %v1297
    %v1299 = vpop.f32.mrb[0].mxu0
    %1300 = vmatprep.mubr.f32.mxu0 0.0
    %1301 = vmatmul.mubr.f32.gmra.mrb[0].mxu0 %v1187
    %v1302 = vpop.f32.mrb[0].mxu0
    %v1303 = vadd.f32 0.0, %v1302
    %v1304 = vpop.f32.mrb[0].mxu0
    %1305 = vmatprep.mubr.f32.mxu0 0.0
    %1306 = vmatmul.mubr.f32.gmra.mrb[0].mxu0 %v1190
    %v1307 = vpop.f32.mrb[0].mxu0
    %v1308 = vadd.f32 0.0, %v1307
    %v1309 = vpop.f32.mrb[0].mxu0
    %1310 = vmatprep.mubr.f32.mxu0 0.0
    %1311 = vmatmul.mubr.f32.gmra.mrb[0].mxu0 %v1193
    %v1312 = vpop.f32.mrb[0].mxu0
    %v1313 = vadd.f32 0.0, %v1312
    %v1314 = vpop.f32.mrb[0].mxu0
    %1315 = vmatprep.mubr.f32.mxu0 0.0
    %1316 = vmatmul.mubr.f32.gmra.mrb[0].mxu0 %v1196
    %v1317 = vpop.f32.mrb[0].mxu0
    %v1318 = vadd.f32 0.0, %v1317
    %v1319 = vpop.f32.mrb[0].mxu0
    %1320 = vmatprep.mubr.f32.mxu0 0.0
    %1321 = vmatmul.mubr.f32.gmra.mrb[0].mxu0 %v1199
    %v1322 = vpop.f32.mrb[0].mxu0
    %v1323 = vadd.f32 0.0, %v1322
    %v1324 = vpop.f32.mrb[0].mxu0
    %1325 = vmatprep.mubr.f32.mxu0 0.0
    %1326 = vmatmul.mubr.f32.gmra.mrb[0].mxu0 %v1202
    %v1327 = vpop.f32.mrb[0].mxu0
    %v1328 = vadd.f32 0.0, %v1327
    %v1329 = vpop.f32.mrb[0].mxu0
    %1330 = vmatprep.mubr.f32.mxu0 0.0
    %1331 = vmatmul.mubr.f32.gmra.mrb[0].mxu0 %v1205
    %v1332 = vpop.f32.mrb[0].mxu0
    %v1333 = vadd.f32 0.0, %v1332
    %v1334 = vpop.f32.mrb[0].mxu0
    %1335 = vdwg.mxu0
    %v1337 = vsel %vm264, %v178, 0
    %v1340 = vsel %vm264, %v179, 0
    %v1343 = vsel %vm264, %v180, 0
    %v1346 = vsel %vm264, %v181, 0
    %v1349 = vsel %vm264, %v182, 0
    %v1352 = vsel %vm264, %v183, 0
    %v1355 = vsel %vm264, %v184, 0
    %v1358 = vsel %vm264, %v185, 0
    %v1361 = vsel %vm264, %v242, 0
    %v1364 = vsel %vm264, %v243, 0
    %v1367 = vsel %vm264, %v244, 0
    %v1370 = vsel %vm264, %v245, 0
    %v1373 = vsel %vm264, %v246, 0
    %v1376 = vsel %vm264, %v247, 0
    %v1379 = vsel %vm264, %v248, 0
    %v1382 = vsel %vm264, %v249, 0
    %1384 = vmatprep.subr.mxu0 0.0
    %1385 = vmatpush1.xpose.msra.mxu0 %v1361
    %1386 = vmatprep.subr.mxu0 0.0
    %1387 = vmatpush1.xpose.msra.mxu0 %v1364
    %1388 = vmatprep.subr.mxu0 0.0
    %1389 = vmatpush1.xpose.msra.mxu0 %v1367
    %1390 = vmatprep.subr.mxu0 0.0
    %1391 = vmatpush1.xpose.msra.mxu0 %v1370
    %1392 = vmatprep.subr.mxu0 0.0
    %1393 = vmatpush1.xpose.msra.mxu0 %v1373
    %1394 = vmatprep.subr.mxu0 0.0
    %1395 = vmatpush1.xpose.msra.mxu0 %v1376
    %1396 = vmatprep.subr.mxu0 0.0
    %1397 = vmatpush1.xpose.msra.mxu0 %v1379
    %1398 = vmatprep.subr.mxu0 0.0
    %1399 = vmatpush1.xpose.msra.mxu0 %v1382
    %1400 = vmatprep.subr.mxu0 0.0
    %1401 = vmatpush1.xpose.msra.mxu0 0.0
    %1402 = vmatprep.subr.mxu0 0.0
    %1403 = vmatpush1.xpose.msra.mxu0 0.0
    %1404 = vmatprep.subr.mxu0 0.0
    %1405 = vmatpush1.xpose.msra.mxu0 0.0
    %1406 = vmatprep.subr.mxu0 0.0
    %1407 = vmatpush1.xpose.msra.mxu0 0.0
    %1408 = vmatprep.subr.mxu0 0.0
    %1409 = vmatpush1.xpose.msra.mxu0 0.0
    %1410 = vmatprep.subr.mxu0 0.0
    %1411 = vmatpush1.xpose.msra.mxu0 0.0
    %1412 = vmatprep.subr.mxu0 0.0
    %1413 = vmatpush1.xpose.msra.mxu0 0.0
    %1414 = vmatprep.subr.mxu0 0.0
    %1415 = vmatpush1.xpose.msra.mxu0 0.0
    %1416 = vmatprep.subr.mxu0 0.0
    %1417 = vmatpush1.xpose.msra.mxu0 0.0
    %1418 = vmatprep.subr.mxu0 0.0
    %1419 = vmatpush1.xpose.msra.mxu0 0.0
    %1420 = vmatprep.subr.mxu0 0.0
    %1421 = vmatpush1.xpose.msra.mxu0 0.0
    %1422 = vmatprep.subr.mxu0 0.0
    %1423 = vmatpush1.xpose.msra.mxu0 0.0
    %1424 = vmatprep.subr.mxu0 0.0
    %1425 = vmatpush1.xpose.msra.mxu0 0.0
    %1426 = vmatprep.subr.mxu0 0.0
    %1427 = vmatpush1.xpose.msra.mxu0 0.0
    %1428 = vmatprep.subr.mxu0 0.0
    %1429 = vmatpush1.xpose.msra.mxu0 0.0
    %1430 = vmatprep.subr.mxu0 0.0
    %1431 = vmatpush1.xpose.msra.mxu0 0.0
    %1432 = vmatprep.subr.mxu0 0.0
    %1433 = vmatpush1.xpose.msra.mxu0 0.0
    %1434 = vmatprep.subr.mxu0 0.0
    %1435 = vmatpush1.xpose.msra.mxu0 0.0
    %1436 = vmatprep.subr.mxu0 0.0
    %1437 = vmatpush1.xpose.msra.mxu0 0.0
    %1438 = vmatprep.subr.mxu0 0.0
    %1439 = vmatpush1.xpose.msra.mxu0 0.0
    %1440 = vmatprep.subr.mxu0 0.0
    %1441 = vmatpush1.xpose.msra.mxu0 0.0
    %1442 = vmatprep.subr.mxu0 0.0
    %1443 = vmatpush1.xpose.msra.mxu0 0.0
    %1444 = vmatprep.subr.mxu0 0.0
    %1445 = vmatpush1.xpose.msra.mxu0 0.0
    %1446 = vmatprep.subr.mxu0 0.0
    %1447 = vmatpush1.xpose.msra.mxu0 0.0
    %1448 = vmatprep.mubr.f32.mxu0 0.0
    %1449 = vmatmul.mubr.f32.gmra.mrb[0].mxu0 %v1337
    %v1450 = vpop.f32.mrb[0].mxu0
    %v1451 = vadd.f32 0.0, %v1450
    %v1452 = vpop.f32.mrb[0].mxu0
    %1453 = vmatprep.mubr.f32.mxu0 0.0
    %1454 = vmatmul.mubr.f32.gmra.mrb[0].mxu0 %v1340
    %v1455 = vpop.f32.mrb[0].mxu0
    %v1456 = vadd.f32 0.0, %v1455
    %v1457 = vpop.f32.mrb[0].mxu0
    %1458 = vmatprep.mubr.f32.mxu0 0.0
    %1459 = vmatmul.mubr.f32.gmra.mrb[0].mxu0 %v1343
    %v1460 = vpop.f32.mrb[0].mxu0
    %v1461 = vadd.f32 0.0, %v1460
    %v1462 = vpop.f32.mrb[0].mxu0
    %1463 = vmatprep.mubr.f32.mxu0 0.0
    %1464 = vmatmul.mubr.f32.gmra.mrb[0].mxu0 %v1346
    %v1465 = vpop.f32.mrb[0].mxu0
    %v1466 = vadd.f32 0.0, %v1465
    %v1467 = vpop.f32.mrb[0].mxu0
    %1468 = vmatprep.mubr.f32.mxu0 0.0
    %1469 = vmatmul.mubr.f32.gmra.mrb[0].mxu0 %v1349
    %v1470 = vpop.f32.mrb[0].mxu0
    %v1471 = vadd.f32 0.0, %v1470
    %v1472 = vpop.f32.mrb[0].mxu0
    %1473 = vmatprep.mubr.f32.mxu0 0.0
    %1474 = vmatmul.mubr.f32.gmra.mrb[0].mxu0 %v1352
    %v1475 = vpop.f32.mrb[0].mxu0
    %v1476 = vadd.f32 0.0, %v1475
    %v1477 = vpop.f32.mrb[0].mxu0
    %1478 = vmatprep.mubr.f32.mxu0 0.0
    %1479 = vmatmul.mubr.f32.gmra.mrb[0].mxu0 %v1355
    %v1480 = vpop.f32.mrb[0].mxu0
    %v1481 = vadd.f32 0.0, %v1480
    %v1482 = vpop.f32.mrb[0].mxu0
    %1483 = vmatprep.mubr.f32.mxu0 0.0
    %1484 = vmatmul.mubr.f32.gmra.mrb[0].mxu0 %v1358
    %v1485 = vpop.f32.mrb[0].mxu0
    %v1486 = vadd.f32 0.0, %v1485
    %v1487 = vpop.f32.mrb[0].mxu0
    %1488 = vdwg.mxu0
    %v1490 = vlaneseq
    %v1491 = vshrl.u32 %v1490, 7
    %v1492 = vsub.s32 0, %v1491
    %v1493 = vrot.slane %v250, %v1492
    %v1495 = vmul.f32 %v122, %v1493
    %v1496 = vmul.f32 %v123, %v1493
    %v1497 = vmul.f32 %v124, %v1493
    %v1498 = vmul.f32 %v125, %v1493
    %v1499 = vmul.f32 %v126, %v1493
    %v1500 = vmul.f32 %v127, %v1493
    %v1501 = vmul.f32 %v128, %v1493
    %v1502 = vmul.f32 %v129, %v1493
    %v1503 = vmul.f32 %v130, %v1493
    %v1504 = vmul.f32 %v131, %v1493
    %v1505 = vmul.f32 %v132, %v1493
    %v1506 = vmul.f32 %v133, %v1493
    %v1507 = vmul.f32 %v134, %v1493
    %v1508 = vmul.f32 %v135, %v1493
    %v1509 = vmul.f32 %v136, %v1493
    %v1510 = vmul.f32 %v137, %v1493
    %v1511 = vmul.f32 %v138, %v1493
    %v1512 = vmul.f32 %v139, %v1493
    %v1513 = vmul.f32 %v140, %v1493
    %v1514 = vmul.f32 %v141, %v1493
    %v1515 = vmul.f32 %v142, %v1493
    %v1516 = vmul.f32 %v143, %v1493
    %v1517 = vmul.f32 %v144, %v1493
    %v1518 = vmul.f32 %v145, %v1493
    %v1519 = vmul.f32 %v146, %v1493
    %v1520 = vmul.f32 %v147, %v1493
    %v1521 = vmul.f32 %v148, %v1493
    %v1522 = vmul.f32 %v149, %v1493
    %v1523 = vmul.f32 %v150, %v1493
    %v1524 = vmul.f32 %v151, %v1493
    %v1525 = vmul.f32 %v152, %v1493
    %v1526 = vmul.f32 %v153, %v1493
    %v1527 = vmul.f32 %v154, %v1493
    %v1528 = vmul.f32 %v155, %v1493
    %v1529 = vmul.f32 %v156, %v1493
    %v1530 = vmul.f32 %v157, %v1493
    %v1531 = vmul.f32 %v158, %v1493
    %v1532 = vmul.f32 %v159, %v1493
    %v1533 = vmul.f32 %v160, %v1493
    %v1534 = vmul.f32 %v161, %v1493
    %v1535 = vmul.f32 %v162, %v1493
    %v1536 = vmul.f32 %v163, %v1493
    %v1537 = vmul.f32 %v164, %v1493
    %v1538 = vmul.f32 %v165, %v1493
    %v1539 = vmul.f32 %v166, %v1493
    %v1540 = vmul.f32 %v167, %v1493
    %v1541 = vmul.f32 %v168, %v1493
    %v1542 = vmul.f32 %v169, %v1493
    %v1543 = vmul.f32 %v170, %v1493
    %v1544 = vmul.f32 %v171, %v1493
    %v1545 = vmul.f32 %v172, %v1493
    %v1546 = vmul.f32 %v173, %v1493
    %v1547 = vmul.f32 %v174, %v1493
    %v1548 = vmul.f32 %v175, %v1493
    %v1549 = vmul.f32 %v176, %v1493
    %v1550 = vmul.f32 %v177, %v1493
    %v1551 = vmul.f32 %v178, %v1493
    %v1552 = vmul.f32 %v179, %v1493
    %v1553 = vmul.f32 %v180, %v1493
    %v1554 = vmul.f32 %v181, %v1493
    %v1555 = vmul.f32 %v182, %v1493
    %v1556 = vmul.f32 %v183, %v1493
    %v1557 = vmul.f32 %v184, %v1493
    %v1558 = vmul.f32 %v185, %v1493
    %v1559 = vsel %vm264, %v1495, 0.0
    %1560 = vadd.xlane.f32.xlu0 %v1559
    %v1561 = vpop.xlane.xlu0 %1560
    %v1562 = vsel %vm264, %v1496, 0.0
    %1563 = vadd.xlane.f32.xlu0 %v1562
    %v1564 = vpop.xlane.xlu0 %1563
    %v1565 = vsel %vm264, %v1497, 0.0
    %1566 = vadd.xlane.f32.xlu0 %v1565
    %v1567 = vpop.xlane.xlu0 %1566
    %v1568 = vsel %vm264, %v1498, 0.0
    %1569 = vadd.xlane.f32.xlu0 %v1568
    %v1570 = vpop.xlane.xlu0 %1569
    %v1571 = vsel %vm264, %v1499, 0.0
    %1572 = vadd.xlane.f32.xlu0 %v1571
    %v1573 = vpop.xlane.xlu0 %1572
    %v1574 = vsel %vm264, %v1500, 0.0
    %1575 = vadd.xlane.f32.xlu0 %v1574
    %v1576 = vpop.xlane.xlu0 %1575
    %v1577 = vsel %vm264, %v1501, 0.0
    %1578 = vadd.xlane.f32.xlu0 %v1577
    %v1579 = vpop.xlane.xlu0 %1578
    %v1580 = vsel %vm264, %v1502, 0.0
    %1581 = vadd.xlane.f32.xlu0 %v1580
    %v1582 = vpop.xlane.xlu0 %1581
    %v1583 = vsel %vm264, %v1503, 0.0
    %1584 = vadd.xlane.f32.xlu0 %v1583
    %v1585 = vpop.xlane.xlu0 %1584
    %v1586 = vsel %vm264, %v1504, 0.0
    %1587 = vadd.xlane.f32.xlu0 %v1586
    %v1588 = vpop.xlane.xlu0 %1587
    %v1589 = vsel %vm264, %v1505, 0.0
    %1590 = vadd.xlane.f32.xlu0 %v1589
    %v1591 = vpop.xlane.xlu0 %1590
    %v1592 = vsel %vm264, %v1506, 0.0
    %1593 = vadd.xlane.f32.xlu0 %v1592
    %v1594 = vpop.xlane.xlu0 %1593
    %v1595 = vsel %vm264, %v1507, 0.0
    %1596 = vadd.xlane.f32.xlu0 %v1595
    %v1597 = vpop.xlane.xlu0 %1596
    %v1598 = vsel %vm264, %v1508, 0.0
    %1599 = vadd.xlane.f32.xlu0 %v1598
    %v1600 = vpop.xlane.xlu0 %1599
    %v1601 = vsel %vm264, %v1509, 0.0
    %1602 = vadd.xlane.f32.xlu0 %v1601
    %v1603 = vpop.xlane.xlu0 %1602
    %v1604 = vsel %vm264, %v1510, 0.0
    %1605 = vadd.xlane.f32.xlu0 %v1604
    %v1606 = vpop.xlane.xlu0 %1605
    %v1607 = vsel %vm264, %v1511, 0.0
    %1608 = vadd.xlane.f32.xlu0 %v1607
    %v1609 = vpop.xlane.xlu0 %1608
    %v1610 = vsel %vm264, %v1512, 0.0
    %1611 = vadd.xlane.f32.xlu0 %v1610
    %v1612 = vpop.xlane.xlu0 %1611
    %v1613 = vsel %vm264, %v1513, 0.0
    %1614 = vadd.xlane.f32.xlu0 %v1613
    %v1615 = vpop.xlane.xlu0 %1614
    %v1616 = vsel %vm264, %v1514, 0.0
    %1617 = vadd.xlane.f32.xlu0 %v1616
    %v1618 = vpop.xlane.xlu0 %1617
    %v1619 = vsel %vm264, %v1515, 0.0
    %1620 = vadd.xlane.f32.xlu0 %v1619
    %v1621 = vpop.xlane.xlu0 %1620
    %v1622 = vsel %vm264, %v1516, 0.0
    %1623 = vadd.xlane.f32.xlu0 %v1622
    %v1624 = vpop.xlane.xlu0 %1623
    %v1625 = vsel %vm264, %v1517, 0.0
    %1626 = vadd.xlane.f32.xlu0 %v1625
    %v1627 = vpop.xlane.xlu0 %1626
    %v1628 = vsel %vm264, %v1518, 0.0
    %1629 = vadd.xlane.f32.xlu0 %v1628
    %v1630 = vpop.xlane.xlu0 %1629
    %v1631 = vsel %vm264, %v1519, 0.0
    %1632 = vadd.xlane.f32.xlu0 %v1631
    %v1633 = vpop.xlane.xlu0 %1632
    %v1634 = vsel %vm264, %v1520, 0.0
    %1635 = vadd.xlane.f32.xlu0 %v1634
    %v1636 = vpop.xlane.xlu0 %1635
    %v1637 = vsel %vm264, %v1521, 0.0
    %1638 = vadd.xlane.f32.xlu0 %v1637
    %v1639 = vpop.xlane.xlu0 %1638
    %v1640 = vsel %vm264, %v1522, 0.0
    %1641 = vadd.xlane.f32.xlu0 %v1640
    %v1642 = vpop.xlane.xlu0 %1641
    %v1643 = vsel %vm264, %v1523, 0.0
    %1644 = vadd.xlane.f32.xlu0 %v1643
    %v1645 = vpop.xlane.xlu0 %1644
    %v1646 = vsel %vm264, %v1524, 0.0
    %1647 = vadd.xlane.f32.xlu0 %v1646
    %v1648 = vpop.xlane.xlu0 %1647
    %v1649 = vsel %vm264, %v1525, 0.0
    %1650 = vadd.xlane.f32.xlu0 %v1649
    %v1651 = vpop.xlane.xlu0 %1650
    %v1652 = vsel %vm264, %v1526, 0.0
    %1653 = vadd.xlane.f32.xlu0 %v1652
    %v1654 = vpop.xlane.xlu0 %1653
    %v1655 = vsel %vm264, %v1527, 0.0
    %1656 = vadd.xlane.f32.xlu0 %v1655
    %v1657 = vpop.xlane.xlu0 %1656
    %v1658 = vsel %vm264, %v1528, 0.0
    %1659 = vadd.xlane.f32.xlu0 %v1658
    %v1660 = vpop.xlane.xlu0 %1659
    %v1661 = vsel %vm264, %v1529, 0.0
    %1662 = vadd.xlane.f32.xlu0 %v1661
    %v1663 = vpop.xlane.xlu0 %1662
    %v1664 = vsel %vm264, %v1530, 0.0
    %1665 = vadd.xlane.f32.xlu0 %v1664
    %v1666 = vpop.xlane.xlu0 %1665
    %v1667 = vsel %vm264, %v1531, 0.0
    %1668 = vadd.xlane.f32.xlu0 %v1667
    %v1669 = vpop.xlane.xlu0 %1668
    %v1670 = vsel %vm264, %v1532, 0.0
    %1671 = vadd.xlane.f32.xlu0 %v1670
    %v1672 = vpop.xlane.xlu0 %1671
    %v1673 = vsel %vm264, %v1533, 0.0
    %1674 = vadd.xlane.f32.xlu0 %v1673
    %v1675 = vpop.xlane.xlu0 %1674
    %v1676 = vsel %vm264, %v1534, 0.0
    %1677 = vadd.xlane.f32.xlu0 %v1676
    %v1678 = vpop.xlane.xlu0 %1677
    %v1679 = vsel %vm264, %v1535, 0.0
    %1680 = vadd.xlane.f32.xlu0 %v1679
    %v1681 = vpop.xlane.xlu0 %1680
    %v1682 = vsel %vm264, %v1536, 0.0
    %1683 = vadd.xlane.f32.xlu0 %v1682
    %v1684 = vpop.xlane.xlu0 %1683
    %v1685 = vsel %vm264, %v1537, 0.0
    %1686 = vadd.xlane.f32.xlu0 %v1685
    %v1687 = vpop.xlane.xlu0 %1686
    %v1688 = vsel %vm264, %v1538, 0.0
    %1689 = vadd.xlane.f32.xlu0 %v1688
    %v1690 = vpop.xlane.xlu0 %1689
    %v1691 = vsel %vm264, %v1539, 0.0
    %1692 = vadd.xlane.f32.xlu0 %v1691
    %v1693 = vpop.xlane.xlu0 %1692
    %v1694 = vsel %vm264, %v1540, 0.0
    %1695 = vadd.xlane.f32.xlu0 %v1694
    %v1696 = vpop.xlane.xlu0 %1695
    %v1697 = vsel %vm264, %v1541, 0.0
    %1698 = vadd.xlane.f32.xlu0 %v1697
    %v1699 = vpop.xlane.xlu0 %1698
    %v1700 = vsel %vm264, %v1542, 0.0
    %1701 = vadd.xlane.f32.xlu0 %v1700
    %v1702 = vpop.xlane.xlu0 %1701
    %v1703 = vsel %vm264, %v1543, 0.0
    %1704 = vadd.xlane.f32.xlu0 %v1703
    %v1705 = vpop.xlane.xlu0 %1704
    %v1706 = vsel %vm264, %v1544, 0.0
    %1707 = vadd.xlane.f32.xlu0 %v1706
    %v1708 = vpop.xlane.xlu0 %1707
    %v1709 = vsel %vm264, %v1545, 0.0
    %1710 = vadd.xlane.f32.xlu0 %v1709
    %v1711 = vpop.xlane.xlu0 %1710
    %v1712 = vsel %vm264, %v1546, 0.0
    %1713 = vadd.xlane.f32.xlu0 %v1712
    %v1714 = vpop.xlane.xlu0 %1713
    %v1715 = vsel %vm264, %v1547, 0.0
    %1716 = vadd.xlane.f32.xlu0 %v1715
    %v1717 = vpop.xlane.xlu0 %1716
    %v1718 = vsel %vm264, %v1548, 0.0
    %1719 = vadd.xlane.f32.xlu0 %v1718
    %v1720 = vpop.xlane.xlu0 %1719
    %v1721 = vsel %vm264, %v1549, 0.0
    %1722 = vadd.xlane.f32.xlu0 %v1721
    %v1723 = vpop.xlane.xlu0 %1722
    %v1724 = vsel %vm264, %v1550, 0.0
    %1725 = vadd.xlane.f32.xlu0 %v1724
    %v1726 = vpop.xlane.xlu0 %1725
    %v1727 = vsel %vm264, %v1551, 0.0
    %1728 = vadd.xlane.f32.xlu0 %v1727
    %v1729 = vpop.xlane.xlu0 %1728
    %v1730 = vsel %vm264, %v1552, 0.0
    %1731 = vadd.xlane.f32.xlu0 %v1730
    %v1732 = vpop.xlane.xlu0 %1731
    %v1733 = vsel %vm264, %v1553, 0.0
    %1734 = vadd.xlane.f32.xlu0 %v1733
    %v1735 = vpop.xlane.xlu0 %1734
    %v1736 = vsel %vm264, %v1554, 0.0
    %1737 = vadd.xlane.f32.xlu0 %v1736
    %v1738 = vpop.xlane.xlu0 %1737
    %v1739 = vsel %vm264, %v1555, 0.0
    %1740 = vadd.xlane.f32.xlu0 %v1739
    %v1741 = vpop.xlane.xlu0 %1740
    %v1742 = vsel %vm264, %v1556, 0.0
    %1743 = vadd.xlane.f32.xlu0 %v1742
    %v1744 = vpop.xlane.xlu0 %1743
    %v1745 = vsel %vm264, %v1557, 0.0
    %1746 = vadd.xlane.f32.xlu0 %v1745
    %v1747 = vpop.xlane.xlu0 %1746
    %v1748 = vsel %vm264, %v1558, 0.0
    %1749 = vadd.xlane.f32.xlu0 %v1748
    %v1750 = vpop.xlane.xlu0 %1749
    %v1751 = vstv %s262
    %v1752 = vadd.f32 %v1561, %v1751
    %v1753 = vadd.f32 %v1564, %v1751
    %v1754 = vadd.f32 %v1567, %v1751
    %v1755 = vadd.f32 %v1570, %v1751
    %v1756 = vadd.f32 %v1573, %v1751
    %v1757 = vadd.f32 %v1576, %v1751
    %v1758 = vadd.f32 %v1579, %v1751
    %v1759 = vadd.f32 %v1582, %v1751
    %v1760 = vadd.f32 %v1585, %v1751
    %v1761 = vadd.f32 %v1588, %v1751
    %v1762 = vadd.f32 %v1591, %v1751
    %v1763 = vadd.f32 %v1594, %v1751
    %v1764 = vadd.f32 %v1597, %v1751
    %v1765 = vadd.f32 %v1600, %v1751
    %v1766 = vadd.f32 %v1603, %v1751
    %v1767 = vadd.f32 %v1606, %v1751
    %v1768 = vadd.f32 %v1609, %v1751
    %v1769 = vadd.f32 %v1612, %v1751
    %v1770 = vadd.f32 %v1615, %v1751
    %v1771 = vadd.f32 %v1618, %v1751
    %v1772 = vadd.f32 %v1621, %v1751
    %v1773 = vadd.f32 %v1624, %v1751
    %v1774 = vadd.f32 %v1627, %v1751
    %v1775 = vadd.f32 %v1630, %v1751
    %v1776 = vadd.f32 %v1633, %v1751
    %v1777 = vadd.f32 %v1636, %v1751
    %v1778 = vadd.f32 %v1639, %v1751
    %v1779 = vadd.f32 %v1642, %v1751
    %v1780 = vadd.f32 %v1645, %v1751
    %v1781 = vadd.f32 %v1648, %v1751
    %v1782 = vadd.f32 %v1651, %v1751
    %v1783 = vadd.f32 %v1654, %v1751
    %v1784 = vadd.f32 %v1657, %v1751
    %v1785 = vadd.f32 %v1660, %v1751
    %v1786 = vadd.f32 %v1663, %v1751
    %v1787 = vadd.f32 %v1666, %v1751
    %v1788 = vadd.f32 %v1669, %v1751
    %v1789 = vadd.f32 %v1672, %v1751
    %v1790 = vadd.f32 %v1675, %v1751
    %v1791 = vadd.f32 %v1678, %v1751
    %v1792 = vadd.f32 %v1681, %v1751
    %v1793 = vadd.f32 %v1684, %v1751
    %v1794 = vadd.f32 %v1687, %v1751
    %v1795 = vadd.f32 %v1690, %v1751
    %v1796 = vadd.f32 %v1693, %v1751
    %v1797 = vadd.f32 %v1696, %v1751
    %v1798 = vadd.f32 %v1699, %v1751
    %v1799 = vadd.f32 %v1702, %v1751
    %v1800 = vadd.f32 %v1705, %v1751
    %v1801 = vadd.f32 %v1708, %v1751
    %v1802 = vadd.f32 %v1711, %v1751
    %v1803 = vadd.f32 %v1714, %v1751
    %v1804 = vadd.f32 %v1717, %v1751
    %v1805 = vadd.f32 %v1720, %v1751
    %v1806 = vadd.f32 %v1723, %v1751
    %v1807 = vadd.f32 %v1726, %v1751
    %v1808 = vadd.f32 %v1729, %v1751
    %v1809 = vadd.f32 %v1732, %v1751
    %v1810 = vadd.f32 %v1735, %v1751
    %v1811 = vadd.f32 %v1738, %v1751
    %v1812 = vadd.f32 %v1741, %v1751
    %v1813 = vadd.f32 %v1744, %v1751
    %v1814 = vadd.f32 %v1747, %v1751
    %v1815 = vadd.f32 %v1750, %v1751
    %v1817 = vlaneseq
    %v1818 = vshrl.u32 %v1817, 7
    %v1819 = vsub.s32 0, %v1818
    %v1820 = vrot.slane %v251, %v1819
    %v1822 = vmul.f32 %v186, %v1820
    %v1823 = vmul.f32 %v187, %v1820
    %v1824 = vmul.f32 %v188, %v1820
    %v1825 = vmul.f32 %v189, %v1820
    %v1826 = vmul.f32 %v190, %v1820
    %v1827 = vmul.f32 %v191, %v1820
    %v1828 = vmul.f32 %v192, %v1820
    %v1829 = vmul.f32 %v193, %v1820
    %v1830 = vmul.f32 %v194, %v1820
    %v1831 = vmul.f32 %v195, %v1820
    %v1832 = vmul.f32 %v196, %v1820
    %v1833 = vmul.f32 %v197, %v1820
    %v1834 = vmul.f32 %v198, %v1820
    %v1835 = vmul.f32 %v199, %v1820
    %v1836 = vmul.f32 %v200, %v1820
    %v1837 = vmul.f32 %v201, %v1820
    %v1838 = vmul.f32 %v202, %v1820
    %v1839 = vmul.f32 %v203, %v1820
    %v1840 = vmul.f32 %v204, %v1820
    %v1841 = vmul.f32 %v205, %v1820
    %v1842 = vmul.f32 %v206, %v1820
    %v1843 = vmul.f32 %v207, %v1820
    %v1844 = vmul.f32 %v208, %v1820
    %v1845 = vmul.f32 %v209, %v1820
    %v1846 = vmul.f32 %v210, %v1820
    %v1847 = vmul.f32 %v211, %v1820
    %v1848 = vmul.f32 %v212, %v1820
    %v1849 = vmul.f32 %v213, %v1820
    %v1850 = vmul.f32 %v214, %v1820
    %v1851 = vmul.f32 %v215, %v1820
    %v1852 = vmul.f32 %v216, %v1820
    %v1853 = vmul.f32 %v217, %v1820
    %v1854 = vmul.f32 %v218, %v1820
    %v1855 = vmul.f32 %v219, %v1820
    %v1856 = vmul.f32 %v220, %v1820
    %v1857 = vmul.f32 %v221, %v1820
    %v1858 = vmul.f32 %v222, %v1820
    %v1859 = vmul.f32 %v223, %v1820
    %v1860 = vmul.f32 %v224, %v1820
    %v1861 = vmul.f32 %v225, %v1820
    %v1862 = vmul.f32 %v226, %v1820
    %v1863 = vmul.f32 %v227, %v1820
    %v1864 = vmul.f32 %v228, %v1820
    %v1865 = vmul.f32 %v229, %v1820
    %v1866 = vmul.f32 %v230, %v1820
    %v1867 = vmul.f32 %v231, %v1820
    %v1868 = vmul.f32 %v232, %v1820
    %v1869 = vmul.f32 %v233, %v1820
    %v1870 = vmul.f32 %v234, %v1820
    %v1871 = vmul.f32 %v235, %v1820
    %v1872 = vmul.f32 %v236, %v1820
    %v1873 = vmul.f32 %v237, %v1820
    %v1874 = vmul.f32 %v238, %v1820
    %v1875 = vmul.f32 %v239, %v1820
    %v1876 = vmul.f32 %v240, %v1820
    %v1877 = vmul.f32 %v241, %v1820
    %v1878 = vmul.f32 %v242, %v1820
    %v1879 = vmul.f32 %v243, %v1820
    %v1880 = vmul.f32 %v244, %v1820
    %v1881 = vmul.f32 %v245, %v1820
    %v1882 = vmul.f32 %v246, %v1820
    %v1883 = vmul.f32 %v247, %v1820
    %v1884 = vmul.f32 %v248, %v1820
    %v1885 = vmul.f32 %v249, %v1820
    %v1886 = vsel %vm264, %v1822, 0.0
    %1887 = vadd.xlane.f32.xlu0 %v1886
    %v1888 = vpop.xlane.xlu0 %1887
    %v1889 = vsel %vm264, %v1823, 0.0
    %1890 = vadd.xlane.f32.xlu0 %v1889
    %v1891 = vpop.xlane.xlu0 %1890
    %v1892 = vsel %vm264, %v1824, 0.0
    %1893 = vadd.xlane.f32.xlu0 %v1892
    %v1894 = vpop.xlane.xlu0 %1893
    %v1895 = vsel %vm264, %v1825, 0.0
    %1896 = vadd.xlane.f32.xlu0 %v1895
    %v1897 = vpop.xlane.xlu0 %1896
    %v1898 = vsel %vm264, %v1826, 0.0
    %1899 = vadd.xlane.f32.xlu0 %v1898
    %v1900 = vpop.xlane.xlu0 %1899
    %v1901 = vsel %vm264, %v1827, 0.0
    %1902 = vadd.xlane.f32.xlu0 %v1901
    %v1903 = vpop.xlane.xlu0 %1902
    %v1904 = vsel %vm264, %v1828, 0.0
    %1905 = vadd.xlane.f32.xlu0 %v1904
    %v1906 = vpop.xlane.xlu0 %1905
    %v1907 = vsel %vm264, %v1829, 0.0
    %1908 = vadd.xlane.f32.xlu0 %v1907
    %v1909 = vpop.xlane.xlu0 %1908
    %v1910 = vsel %vm264, %v1830, 0.0
    %1911 = vadd.xlane.f32.xlu0 %v1910
    %v1912 = vpop.xlane.xlu0 %1911
    %v1913 = vsel %vm264, %v1831, 0.0
    %1914 = vadd.xlane.f32.xlu0 %v1913
    %v1915 = vpop.xlane.xlu0 %1914
    %v1916 = vsel %vm264, %v1832, 0.0
    %1917 = vadd.xlane.f32.xlu0 %v1916
    %v1918 = vpop.xlane.xlu0 %1917
    %v1919 = vsel %vm264, %v1833, 0.0
    %1920 = vadd.xlane.f32.xlu0 %v1919
    %v1921 = vpop.xlane.xlu0 %1920
    %v1922 = vsel %vm264, %v1834, 0.0
    %1923 = vadd.xlane.f32.xlu0 %v1922
    %v1924 = vpop.xlane.xlu0 %1923
    %v1925 = vsel %vm264, %v1835, 0.0
    %1926 = vadd.xlane.f32.xlu0 %v1925
    %v1927 = vpop.xlane.xlu0 %1926
    %v1928 = vsel %vm264, %v1836, 0.0
    %1929 = vadd.xlane.f32.xlu0 %v1928
    %v1930 = vpop.xlane.xlu0 %1929
    %v1931 = vsel %vm264, %v1837, 0.0
    %1932 = vadd.xlane.f32.xlu0 %v1931
    %v1933 = vpop.xlane.xlu0 %1932
    %v1934 = vsel %vm264, %v1838, 0.0
    %1935 = vadd.xlane.f32.xlu0 %v1934
    %v1936 = vpop.xlane.xlu0 %1935
    %v1937 = vsel %vm264, %v1839, 0.0
    %1938 = vadd.xlane.f32.xlu0 %v1937
    %v1939 = vpop.xlane.xlu0 %1938
    %v1940 = vsel %vm264, %v1840, 0.0
    %1941 = vadd.xlane.f32.xlu0 %v1940
    %v1942 = vpop.xlane.xlu0 %1941
    %v1943 = vsel %vm264, %v1841, 0.0
    %1944 = vadd.xlane.f32.xlu0 %v1943
    %v1945 = vpop.xlane.xlu0 %1944
    %v1946 = vsel %vm264, %v1842, 0.0
    %1947 = vadd.xlane.f32.xlu0 %v1946
    %v1948 = vpop.xlane.xlu0 %1947
    %v1949 = vsel %vm264, %v1843, 0.0
    %1950 = vadd.xlane.f32.xlu0 %v1949
    %v1951 = vpop.xlane.xlu0 %1950
    %v1952 = vsel %vm264, %v1844, 0.0
    %1953 = vadd.xlane.f32.xlu0 %v1952
    %v1954 = vpop.xlane.xlu0 %1953
    %v1955 = vsel %vm264, %v1845, 0.0
    %1956 = vadd.xlane.f32.xlu0 %v1955
    %v1957 = vpop.xlane.xlu0 %1956
    %v1958 = vsel %vm264, %v1846, 0.0
    %1959 = vadd.xlane.f32.xlu0 %v1958
    %v1960 = vpop.xlane.xlu0 %1959
    %v1961 = vsel %vm264, %v1847, 0.0
    %1962 = vadd.xlane.f32.xlu0 %v1961
    %v1963 = vpop.xlane.xlu0 %1962
    %v1964 = vsel %vm264, %v1848, 0.0
    %1965 = vadd.xlane.f32.xlu0 %v1964
    %v1966 = vpop.xlane.xlu0 %1965
    %v1967 = vsel %vm264, %v1849, 0.0
    %1968 = vadd.xlane.f32.xlu0 %v1967
    %v1969 = vpop.xlane.xlu0 %1968
    %v1970 = vsel %vm264, %v1850, 0.0
    %1971 = vadd.xlane.f32.xlu0 %v1970
    %v1972 = vpop.xlane.xlu0 %1971
    %v1973 = vsel %vm264, %v1851, 0.0
    %1974 = vadd.xlane.f32.xlu0 %v1973
    %v1975 = vpop.xlane.xlu0 %1974
    %v1976 = vsel %vm264, %v1852, 0.0
    %1977 = vadd.xlane.f32.xlu0 %v1976
    %v1978 = vpop.xlane.xlu0 %1977
    %v1979 = vsel %vm264, %v1853, 0.0
    %1980 = vadd.xlane.f32.xlu0 %v1979
    %v1981 = vpop.xlane.xlu0 %1980
    %v1982 = vsel %vm264, %v1854, 0.0
    %1983 = vadd.xlane.f32.xlu0 %v1982
    %v1984 = vpop.xlane.xlu0 %1983
    %v1985 = vsel %vm264, %v1855, 0.0
    %1986 = vadd.xlane.f32.xlu0 %v1985
    %v1987 = vpop.xlane.xlu0 %1986
    %v1988 = vsel %vm264, %v1856, 0.0
    %1989 = vadd.xlane.f32.xlu0 %v1988
    %v1990 = vpop.xlane.xlu0 %1989
    %v1991 = vsel %vm264, %v1857, 0.0
    %1992 = vadd.xlane.f32.xlu0 %v1991
    %v1993 = vpop.xlane.xlu0 %1992
    %v1994 = vsel %vm264, %v1858, 0.0
    %1995 = vadd.xlane.f32.xlu0 %v1994
    %v1996 = vpop.xlane.xlu0 %1995
    %v1997 = vsel %vm264, %v1859, 0.0
    %1998 = vadd.xlane.f32.xlu0 %v1997
    %v1999 = vpop.xlane.xlu0 %1998
    %v2000 = vsel %vm264, %v1860, 0.0
    %2001 = vadd.xlane.f32.xlu0 %v2000
    %v2002 = vpop.xlane.xlu0 %2001
    %v2003 = vsel %vm264, %v1861, 0.0
    %2004 = vadd.xlane.f32.xlu0 %v2003
    %v2005 = vpop.xlane.xlu0 %2004
    %v2006 = vsel %vm264, %v1862, 0.0
    %2007 = vadd.xlane.f32.xlu0 %v2006
    %v2008 = vpop.xlane.xlu0 %2007
    %v2009 = vsel %vm264, %v1863, 0.0
    %2010 = vadd.xlane.f32.xlu0 %v2009
    %v2011 = vpop.xlane.xlu0 %2010
    %v2012 = vsel %vm264, %v1864, 0.0
    %2013 = vadd.xlane.f32.xlu0 %v2012
    %v2014 = vpop.xlane.xlu0 %2013
    %v2015 = vsel %vm264, %v1865, 0.0
    %2016 = vadd.xlane.f32.xlu0 %v2015
    %v2017 = vpop.xlane.xlu0 %2016
    %v2018 = vsel %vm264, %v1866, 0.0
    %2019 = vadd.xlane.f32.xlu0 %v2018
    %v2020 = vpop.xlane.xlu0 %2019
    %v2021 = vsel %vm264, %v1867, 0.0
    %2022 = vadd.xlane.f32.xlu0 %v2021
    %v2023 = vpop.xlane.xlu0 %2022
    %v2024 = vsel %vm264, %v1868, 0.0
    %2025 = vadd.xlane.f32.xlu0 %v2024
    %v2026 = vpop.xlane.xlu0 %2025
    %v2027 = vsel %vm264, %v1869, 0.0
    %2028 = vadd.xlane.f32.xlu0 %v2027
    %v2029 = vpop.xlane.xlu0 %2028
    %v2030 = vsel %vm264, %v1870, 0.0
    %2031 = vadd.xlane.f32.xlu0 %v2030
    %v2032 = vpop.xlane.xlu0 %2031
    %v2033 = vsel %vm264, %v1871, 0.0
    %2034 = vadd.xlane.f32.xlu0 %v2033
    %v2035 = vpop.xlane.xlu0 %2034
    %v2036 = vsel %vm264, %v1872, 0.0
    %2037 = vadd.xlane.f32.xlu0 %v2036
    %v2038 = vpop.xlane.xlu0 %2037
    %v2039 = vsel %vm264, %v1873, 0.0
    %2040 = vadd.xlane.f32.xlu0 %v2039
    %v2041 = vpop.xlane.xlu0 %2040
    %v2042 = vsel %vm264, %v1874, 0.0
    %2043 = vadd.xlane.f32.xlu0 %v2042
    %v2044 = vpop.xlane.xlu0 %2043
    %v2045 = vsel %vm264, %v1875, 0.0
    %2046 = vadd.xlane.f32.xlu0 %v2045
    %v2047 = vpop.xlane.xlu0 %2046
    %v2048 = vsel %vm264, %v1876, 0.0
    %2049 = vadd.xlane.f32.xlu0 %v2048
    %v2050 = vpop.xlane.xlu0 %2049
    %v2051 = vsel %vm264, %v1877, 0.0
    %2052 = vadd.xlane.f32.xlu0 %v2051
    %v2053 = vpop.xlane.xlu0 %2052
    %v2054 = vsel %vm264, %v1878, 0.0
    %2055 = vadd.xlane.f32.xlu0 %v2054
    %v2056 = vpop.xlane.xlu0 %2055
    %v2057 = vsel %vm264, %v1879, 0.0
    %2058 = vadd.xlane.f32.xlu0 %v2057
    %v2059 = vpop.xlane.xlu0 %2058
    %v2060 = vsel %vm264, %v1880, 0.0
    %2061 = vadd.xlane.f32.xlu0 %v2060
    %v2062 = vpop.xlane.xlu0 %2061
    %v2063 = vsel %vm264, %v1881, 0.0
    %2064 = vadd.xlane.f32.xlu0 %v2063
    %v2065 = vpop.xlane.xlu0 %2064
    %v2066 = vsel %vm264, %v1882, 0.0
    %2067 = vadd.xlane.f32.xlu0 %v2066
    %v2068 = vpop.xlane.xlu0 %2067
    %v2069 = vsel %vm264, %v1883, 0.0
    %2070 = vadd.xlane.f32.xlu0 %v2069
    %v2071 = vpop.xlane.xlu0 %2070
    %v2072 = vsel %vm264, %v1884, 0.0
    %2073 = vadd.xlane.f32.xlu0 %v2072
    %v2074 = vpop.xlane.xlu0 %2073
    %v2075 = vsel %vm264, %v1885, 0.0
    %2076 = vadd.xlane.f32.xlu0 %v2075
    %v2077 = vpop.xlane.xlu0 %2076
    %v2078 = vstv %s263
    %v2079 = vadd.f32 %v1888, %v2078
    %v2080 = vadd.f32 %v1891, %v2078
    %v2081 = vadd.f32 %v1894, %v2078
    %v2082 = vadd.f32 %v1897, %v2078
    %v2083 = vadd.f32 %v1900, %v2078
    %v2084 = vadd.f32 %v1903, %v2078
    %v2085 = vadd.f32 %v1906, %v2078
    %v2086 = vadd.f32 %v1909, %v2078
    %v2087 = vadd.f32 %v1912, %v2078
    %v2088 = vadd.f32 %v1915, %v2078
    %v2089 = vadd.f32 %v1918, %v2078
    %v2090 = vadd.f32 %v1921, %v2078
    %v2091 = vadd.f32 %v1924, %v2078
    %v2092 = vadd.f32 %v1927, %v2078
    %v2093 = vadd.f32 %v1930, %v2078
    %v2094 = vadd.f32 %v1933, %v2078
    %v2095 = vadd.f32 %v1936, %v2078
    %v2096 = vadd.f32 %v1939, %v2078
    %v2097 = vadd.f32 %v1942, %v2078
    %v2098 = vadd.f32 %v1945, %v2078
    %v2099 = vadd.f32 %v1948, %v2078
    %v2100 = vadd.f32 %v1951, %v2078
    %v2101 = vadd.f32 %v1954, %v2078
    %v2102 = vadd.f32 %v1957, %v2078
    %v2103 = vadd.f32 %v1960, %v2078
    %v2104 = vadd.f32 %v1963, %v2078
    %v2105 = vadd.f32 %v1966, %v2078
    %v2106 = vadd.f32 %v1969, %v2078
    %v2107 = vadd.f32 %v1972, %v2078
    %v2108 = vadd.f32 %v1975, %v2078
    %v2109 = vadd.f32 %v1978, %v2078
    %v2110 = vadd.f32 %v1981, %v2078
    %v2111 = vadd.f32 %v1984, %v2078
    %v2112 = vadd.f32 %v1987, %v2078
    %v2113 = vadd.f32 %v1990, %v2078
    %v2114 = vadd.f32 %v1993, %v2078
    %v2115 = vadd.f32 %v1996, %v2078
    %v2116 = vadd.f32 %v1999, %v2078
    %v2117 = vadd.f32 %v2002, %v2078
    %v2118 = vadd.f32 %v2005, %v2078
    %v2119 = vadd.f32 %v2008, %v2078
    %v2120 = vadd.f32 %v2011, %v2078
    %v2121 = vadd.f32 %v2014, %v2078
    %v2122 = vadd.f32 %v2017, %v2078
    %v2123 = vadd.f32 %v2020, %v2078
    %v2124 = vadd.f32 %v2023, %v2078
    %v2125 = vadd.f32 %v2026, %v2078
    %v2126 = vadd.f32 %v2029, %v2078
    %v2127 = vadd.f32 %v2032, %v2078
    %v2128 = vadd.f32 %v2035, %v2078
    %v2129 = vadd.f32 %v2038, %v2078
    %v2130 = vadd.f32 %v2041, %v2078
    %v2131 = vadd.f32 %v2044, %v2078
    %v2132 = vadd.f32 %v2047, %v2078
    %v2133 = vadd.f32 %v2050, %v2078
    %v2134 = vadd.f32 %v2053, %v2078
    %v2135 = vadd.f32 %v2056, %v2078
    %v2136 = vadd.f32 %v2059, %v2078
    %v2137 = vadd.f32 %v2062, %v2078
    %v2138 = vadd.f32 %v2065, %v2078
    %v2139 = vadd.f32 %v2068, %v2078
    %v2140 = vadd.f32 %v2071, %v2078
    %v2141 = vadd.f32 %v2074, %v2078
    %v2142 = vadd.f32 %v2077, %v2078
    %v2207 = vlaneseq
    %v2208 = vand.u32 %v2207, 127
    %v2209 = vlaneseq
    %v2210 = vshrl.u32 %v2209, 7
    %v2211 = vsub.s32 %v2208, %v2210
    %v2212 = vrot.slane %v2079, %v2211
    %v2213 = vadd.s32 %v2208, 4294967288
    %v2214 = vlaneseq
    %v2215 = vshrl.u32 %v2214, 7
    %v2216 = vsub.s32 %v2213, %v2215
    %v2217 = vrot.slane %v2080, %v2216
    %vm2218 = vcmask 130112
    %v2219 = vsel %vm2218, %v2217, %v2212
    %v2220 = vadd.s32 %v2208, 4294967280
    %v2221 = vlaneseq
    %v2222 = vshrl.u32 %v2221, 7
    %v2223 = vsub.s32 %v2220, %v2222
    %v2224 = vrot.slane %v2081, %v2223
    %vm2225 = vcmask 195712
    %v2226 = vsel %vm2225, %v2224, %v2219
    %v2227 = vadd.s32 %v2208, 4294967272
    %v2228 = vlaneseq
    %v2229 = vshrl.u32 %v2228, 7
    %v2230 = vsub.s32 %v2227, %v2229
    %v2231 = vrot.slane %v2082, %v2230
    %vm2232 = vcmask 261312
    %v2233 = vsel %vm2232, %v2231, %v2226
    %v2234 = vadd.s32 %v2208, 4294967264
    %v2235 = vlaneseq
    %v2236 = vshrl.u32 %v2235, 7
    %v2237 = vsub.s32 %v2234, %v2236
    %v2238 = vrot.slane %v2083, %v2237
    %vm2239 = vcmask 326912
    %v2240 = vsel %vm2239, %v2238, %v2233
    %v2241 = vadd.s32 %v2208, 4294967256
    %v2242 = vlaneseq
    %v2243 = vshrl.u32 %v2242, 7
    %v2244 = vsub.s32 %v2241, %v2243
    %v2245 = vrot.slane %v2084, %v2244
    %vm2246 = vcmask 392512
    %v2247 = vsel %vm2246, %v2245, %v2240
    %v2248 = vadd.s32 %v2208, 4294967248
    %v2249 = vlaneseq
    %v2250 = vshrl.u32 %v2249, 7
    %v2251 = vsub.s32 %v2248, %v2250
    %v2252 = vrot.slane %v2085, %v2251
    %vm2253 = vcmask 458112
    %v2254 = vsel %vm2253, %v2252, %v2247
    %v2255 = vadd.s32 %v2208, 4294967240
    %v2256 = vlaneseq
    %v2257 = vshrl.u32 %v2256, 7
    %v2258 = vsub.s32 %v2255, %v2257
    %v2259 = vrot.slane %v2086, %v2258
    %vm2260 = vcmask 523712
    %v2261 = vsel %vm2260, %v2259, %v2254
    %v2262 = vlaneseq
    %v2263 = vshrl.u32 %v2262, 7
    %v2264 = vsub.s32 %v2208, %v2263
    %v2265 = vrot.slane %v2087, %v2264
    %v2266 = vlaneseq
    %v2267 = vshrl.u32 %v2266, 7
    %v2268 = vsub.s32 %v2213, %v2267
    %v2269 = vrot.slane %v2088, %v2268
    %v2270 = vsel %vm2218, %v2269, %v2265
    %v2271 = vlaneseq
    %v2272 = vshrl.u32 %v2271, 7
    %v2273 = vsub.s32 %v2220, %v2272
    %v2274 = vrot.slane %v2089, %v2273
    %v2275 = vsel %vm2225, %v2274, %v2270
    %v2276 = vlaneseq
    %v2277 = vshrl.u32 %v2276, 7
    %v2278 = vsub.s32 %v2227, %v2277
    %v2279 = vrot.slane %v2090, %v2278
    %v2280 = vsel %vm2232, %v2279, %v2275
    %v2281 = vlaneseq
    %v2282 = vshrl.u32 %v2281, 7
    %v2283 = vsub.s32 %v2234, %v2282
    %v2284 = vrot.slane %v2091, %v2283
    %v2285 = vsel %vm2239, %v2284, %v2280
    %v2286 = vlaneseq
    %v2287 = vshrl.u32 %v2286, 7
    %v2288 = vsub.s32 %v2241, %v2287
    %v2289 = vrot.slane %v2092, %v2288
    %v2290 = vsel %vm2246, %v2289, %v2285
    %v2291 = vlaneseq
    %v2292 = vshrl.u32 %v2291, 7
    %v2293 = vsub.s32 %v2248, %v2292
    %v2294 = vrot.slane %v2093, %v2293
    %v2295 = vsel %vm2253, %v2294, %v2290
    %v2296 = vlaneseq
    %v2297 = vshrl.u32 %v2296, 7
    %v2298 = vsub.s32 %v2255, %v2297
    %v2299 = vrot.slane %v2094, %v2298
    %v2300 = vsel %vm2260, %v2299, %v2295
    %v2301 = vlaneseq
    %v2302 = vshrl.u32 %v2301, 7
    %v2303 = vsub.s32 %v2208, %v2302
    %v2304 = vrot.slane %v2095, %v2303
    %v2305 = vlaneseq
    %v2306 = vshrl.u32 %v2305, 7
    %v2307 = vsub.s32 %v2213, %v2306
    %v2308 = vrot.slane %v2096, %v2307
    %v2309 = vsel %vm2218, %v2308, %v2304
    %v2310 = vlaneseq
    %v2311 = vshrl.u32 %v2310, 7
    %v2312 = vsub.s32 %v2220, %v2311
    %v2313 = vrot.slane %v2097, %v2312
    %v2314 = vsel %vm2225, %v2313, %v2309
    %v2315 = vlaneseq
    %v2316 = vshrl.u32 %v2315, 7
    %v2317 = vsub.s32 %v2227, %v2316
    %v2318 = vrot.slane %v2098, %v2317
    %v2319 = vsel %vm2232, %v2318, %v2314
    %v2320 = vlaneseq
    %v2321 = vshrl.u32 %v2320, 7
    %v2322 = vsub.s32 %v2234, %v2321
    %v2323 = vrot.slane %v2099, %v2322
    %v2324 = vsel %vm2239, %v2323, %v2319
    %v2325 = vlaneseq
    %v2326 = vshrl.u32 %v2325, 7
    %v2327 = vsub.s32 %v2241, %v2326
    %v2328 = vrot.slane %v2100, %v2327
    %v2329 = vsel %vm2246, %v2328, %v2324
    %v2330 = vlaneseq
    %v2331 = vshrl.u32 %v2330, 7
    %v2332 = vsub.s32 %v2248, %v2331
    %v2333 = vrot.slane %v2101, %v2332
    %v2334 = vsel %vm2253, %v2333, %v2329
    %v2335 = vlaneseq
    %v2336 = vshrl.u32 %v2335, 7
    %v2337 = vsub.s32 %v2255, %v2336
    %v2338 = vrot.slane %v2102, %v2337
    %v2339 = vsel %vm2260, %v2338, %v2334
    %v2340 = vlaneseq
    %v2341 = vshrl.u32 %v2340, 7
    %v2342 = vsub.s32 %v2208, %v2341
    %v2343 = vrot.slane %v2103, %v2342
    %v2344 = vlaneseq
    %v2345 = vshrl.u32 %v2344, 7
    %v2346 = vsub.s32 %v2213, %v2345
    %v2347 = vrot.slane %v2104, %v2346
    %v2348 = vsel %vm2218, %v2347, %v2343
    %v2349 = vlaneseq
    %v2350 = vshrl.u32 %v2349, 7
    %v2351 = vsub.s32 %v2220, %v2350
    %v2352 = vrot.slane %v2105, %v2351
    %v2353 = vsel %vm2225, %v2352, %v2348
    %v2354 = vlaneseq
    %v2355 = vshrl.u32 %v2354, 7
    %v2356 = vsub.s32 %v2227, %v2355
    %v2357 = vrot.slane %v2106, %v2356
    %v2358 = vsel %vm2232, %v2357, %v2353
    %v2359 = vlaneseq
    %v2360 = vshrl.u32 %v2359, 7
    %v2361 = vsub.s32 %v2234, %v2360
    %v2362 = vrot.slane %v2107, %v2361
    %v2363 = vsel %vm2239, %v2362, %v2358
    %v2364 = vlaneseq
    %v2365 = vshrl.u32 %v2364, 7
    %v2366 = vsub.s32 %v2241, %v2365
    %v2367 = vrot.slane %v2108, %v2366
    %v2368 = vsel %vm2246, %v2367, %v2363
    %v2369 = vlaneseq
    %v2370 = vshrl.u32 %v2369, 7
    %v2371 = vsub.s32 %v2248, %v2370
    %v2372 = vrot.slane %v2109, %v2371
    %v2373 = vsel %vm2253, %v2372, %v2368
    %v2374 = vlaneseq
    %v2375 = vshrl.u32 %v2374, 7
    %v2376 = vsub.s32 %v2255, %v2375
    %v2377 = vrot.slane %v2110, %v2376
    %v2378 = vsel %vm2260, %v2377, %v2373
    %v2379 = vlaneseq
    %v2380 = vshrl.u32 %v2379, 7
    %v2381 = vsub.s32 %v2208, %v2380
    %v2382 = vrot.slane %v2111, %v2381
    %v2383 = vlaneseq
    %v2384 = vshrl.u32 %v2383, 7
    %v2385 = vsub.s32 %v2213, %v2384
    %v2386 = vrot.slane %v2112, %v2385
    %v2387 = vsel %vm2218, %v2386, %v2382
    %v2388 = vlaneseq
    %v2389 = vshrl.u32 %v2388, 7
    %v2390 = vsub.s32 %v2220, %v2389
    %v2391 = vrot.slane %v2113, %v2390
    %v2392 = vsel %vm2225, %v2391, %v2387
    %v2393 = vlaneseq
    %v2394 = vshrl.u32 %v2393, 7
    %v2395 = vsub.s32 %v2227, %v2394
    %v2396 = vrot.slane %v2114, %v2395
    %v2397 = vsel %vm2232, %v2396, %v2392
    %v2398 = vlaneseq
    %v2399 = vshrl.u32 %v2398, 7
    %v2400 = vsub.s32 %v2234, %v2399
    %v2401 = vrot.slane %v2115, %v2400
    %v2402 = vsel %vm2239, %v2401, %v2397
    %v2403 = vlaneseq
    %v2404 = vshrl.u32 %v2403, 7
    %v2405 = vsub.s32 %v2241, %v2404
    %v2406 = vrot.slane %v2116, %v2405
    %v2407 = vsel %vm2246, %v2406, %v2402
    %v2408 = vlaneseq
    %v2409 = vshrl.u32 %v2408, 7
    %v2410 = vsub.s32 %v2248, %v2409
    %v2411 = vrot.slane %v2117, %v2410
    %v2412 = vsel %vm2253, %v2411, %v2407
    %v2413 = vlaneseq
    %v2414 = vshrl.u32 %v2413, 7
    %v2415 = vsub.s32 %v2255, %v2414
    %v2416 = vrot.slane %v2118, %v2415
    %v2417 = vsel %vm2260, %v2416, %v2412
    %v2418 = vlaneseq
    %v2419 = vshrl.u32 %v2418, 7
    %v2420 = vsub.s32 %v2208, %v2419
    %v2421 = vrot.slane %v2119, %v2420
    %v2422 = vlaneseq
    %v2423 = vshrl.u32 %v2422, 7
    %v2424 = vsub.s32 %v2213, %v2423
    %v2425 = vrot.slane %v2120, %v2424
    %v2426 = vsel %vm2218, %v2425, %v2421
    %v2427 = vlaneseq
    %v2428 = vshrl.u32 %v2427, 7
    %v2429 = vsub.s32 %v2220, %v2428
    %v2430 = vrot.slane %v2121, %v2429
    %v2431 = vsel %vm2225, %v2430, %v2426
    %v2432 = vlaneseq
    %v2433 = vshrl.u32 %v2432, 7
    %v2434 = vsub.s32 %v2227, %v2433
    %v2435 = vrot.slane %v2122, %v2434
    %v2436 = vsel %vm2232, %v2435, %v2431
    %v2437 = vlaneseq
    %v2438 = vshrl.u32 %v2437, 7
    %v2439 = vsub.s32 %v2234, %v2438
    %v2440 = vrot.slane %v2123, %v2439
    %v2441 = vsel %vm2239, %v2440, %v2436
    %v2442 = vlaneseq
    %v2443 = vshrl.u32 %v2442, 7
    %v2444 = vsub.s32 %v2241, %v2443
    %v2445 = vrot.slane %v2124, %v2444
    %v2446 = vsel %vm2246, %v2445, %v2441
    %v2447 = vlaneseq
    %v2448 = vshrl.u32 %v2447, 7
    %v2449 = vsub.s32 %v2248, %v2448
    %v2450 = vrot.slane %v2125, %v2449
    %v2451 = vsel %vm2253, %v2450, %v2446
    %v2452 = vlaneseq
    %v2453 = vshrl.u32 %v2452, 7
    %v2454 = vsub.s32 %v2255, %v2453
    %v2455 = vrot.slane %v2126, %v2454
    %v2456 = vsel %vm2260, %v2455, %v2451
    %v2457 = vlaneseq
    %v2458 = vshrl.u32 %v2457, 7
    %v2459 = vsub.s32 %v2208, %v2458
    %v2460 = vrot.slane %v2127, %v2459
    %v2461 = vlaneseq
    %v2462 = vshrl.u32 %v2461, 7
    %v2463 = vsub.s32 %v2213, %v2462
    %v2464 = vrot.slane %v2128, %v2463
    %v2465 = vsel %vm2218, %v2464, %v2460
    %v2466 = vlaneseq
    %v2467 = vshrl.u32 %v2466, 7
    %v2468 = vsub.s32 %v2220, %v2467
    %v2469 = vrot.slane %v2129, %v2468
    %v2470 = vsel %vm2225, %v2469, %v2465
    %v2471 = vlaneseq
    %v2472 = vshrl.u32 %v2471, 7
    %v2473 = vsub.s32 %v2227, %v2472
    %v2474 = vrot.slane %v2130, %v2473
    %v2475 = vsel %vm2232, %v2474, %v2470
    %v2476 = vlaneseq
    %v2477 = vshrl.u32 %v2476, 7
    %v2478 = vsub.s32 %v2234, %v2477
    %v2479 = vrot.slane %v2131, %v2478
    %v2480 = vsel %vm2239, %v2479, %v2475
    %v2481 = vlaneseq
    %v2482 = vshrl.u32 %v2481, 7
    %v2483 = vsub.s32 %v2241, %v2482
    %v2484 = vrot.slane %v2132, %v2483
    %v2485 = vsel %vm2246, %v2484, %v2480
    %v2486 = vlaneseq
    %v2487 = vshrl.u32 %v2486, 7
    %v2488 = vsub.s32 %v2248, %v2487
    %v2489 = vrot.slane %v2133, %v2488
    %v2490 = vsel %vm2253, %v2489, %v2485
    %v2491 = vlaneseq
    %v2492 = vshrl.u32 %v2491, 7
    %v2493 = vsub.s32 %v2255, %v2492
    %v2494 = vrot.slane %v2134, %v2493
    %v2495 = vsel %vm2260, %v2494, %v2490
    %v2496 = vlaneseq
    %v2497 = vshrl.u32 %v2496, 7
    %v2498 = vsub.s32 %v2208, %v2497
    %v2499 = vrot.slane %v2135, %v2498
    %v2500 = vlaneseq
    %v2501 = vshrl.u32 %v2500, 7
    %v2502 = vsub.s32 %v2213, %v2501
    %v2503 = vrot.slane %v2136, %v2502
    %v2504 = vsel %vm2218, %v2503, %v2499
    %v2505 = vlaneseq
    %v2506 = vshrl.u32 %v2505, 7
    %v2507 = vsub.s32 %v2220, %v2506
    %v2508 = vrot.slane %v2137, %v2507
    %v2509 = vsel %vm2225, %v2508, %v2504
    %v2510 = vlaneseq
    %v2511 = vshrl.u32 %v2510, 7
    %v2512 = vsub.s32 %v2227, %v2511
    %v2513 = vrot.slane %v2138, %v2512
    %v2514 = vsel %vm2232, %v2513, %v2509
    %v2515 = vlaneseq
    %v2516 = vshrl.u32 %v2515, 7
    %v2517 = vsub.s32 %v2234, %v2516
    %v2518 = vrot.slane %v2139, %v2517
    %v2519 = vsel %vm2239, %v2518, %v2514
    %v2520 = vlaneseq
    %v2521 = vshrl.u32 %v2520, 7
    %v2522 = vsub.s32 %v2241, %v2521
    %v2523 = vrot.slane %v2140, %v2522
    %v2524 = vsel %vm2246, %v2523, %v2519
    %v2525 = vlaneseq
    %v2526 = vshrl.u32 %v2525, 7
    %v2527 = vsub.s32 %v2248, %v2526
    %v2528 = vrot.slane %v2141, %v2527
    %v2529 = vsel %vm2253, %v2528, %v2524
    %v2530 = vlaneseq
    %v2531 = vshrl.u32 %v2530, 7
    %v2532 = vsub.s32 %v2255, %v2531
    %v2533 = vrot.slane %v2142, %v2532
    %v2534 = vsel %vm2260, %v2533, %v2529
    %vm2535 = vcmask 1041409
    %vm2536 = vcmask 1042434
    %v2537 = vsel %vm2536, %v2261, %v2261
    %vm2538 = vcmask 1043459
    %v2539 = vsel %vm2538, %v2261, %v2537
    %vm2540 = vcmask 1044484
    %v2541 = vsel %vm2540, %v2261, %v2539
    %vm2542 = vcmask 1045509
    %v2543 = vsel %vm2542, %v2261, %v2541
    %vm2544 = vcmask 1046534
    %v2545 = vsel %vm2544, %v2261, %v2543
    %vm2546 = vcmask 1047559
    %v2547 = vsel %vm2546, %v2261, %v2545
    %v2548 = vsel %vm2536, %v2300, %v2300
    %v2549 = vsel %vm2538, %v2300, %v2548
    %v2550 = vsel %vm2540, %v2300, %v2549
    %v2551 = vsel %vm2542, %v2300, %v2550
    %v2552 = vsel %vm2544, %v2300, %v2551
    %v2553 = vsel %vm2546, %v2300, %v2552
    %v2554 = vsel %vm2536, %v2339, %v2339
    %v2555 = vsel %vm2538, %v2339, %v2554
    %v2556 = vsel %vm2540, %v2339, %v2555
    %v2557 = vsel %vm2542, %v2339, %v2556
    %v2558 = vsel %vm2544, %v2339, %v2557
    %v2559 = vsel %vm2546, %v2339, %v2558
    %v2560 = vsel %vm2536, %v2378, %v2378
    %v2561 = vsel %vm2538, %v2378, %v2560
    %v2562 = vsel %vm2540, %v2378, %v2561
    %v2563 = vsel %vm2542, %v2378, %v2562
    %v2564 = vsel %vm2544, %v2378, %v2563
    %v2565 = vsel %vm2546, %v2378, %v2564
    %v2566 = vsel %vm2536, %v2417, %v2417
    %v2567 = vsel %vm2538, %v2417, %v2566
    %v2568 = vsel %vm2540, %v2417, %v2567
    %v2569 = vsel %vm2542, %v2417, %v2568
    %v2570 = vsel %vm2544, %v2417, %v2569
    %v2571 = vsel %vm2546, %v2417, %v2570
    %v2572 = vsel %vm2536, %v2456, %v2456
    %v2573 = vsel %vm2538, %v2456, %v2572
    %v2574 = vsel %vm2540, %v2456, %v2573
    %v2575 = vsel %vm2542, %v2456, %v2574
    %v2576 = vsel %vm2544, %v2456, %v2575
    %v2577 = vsel %vm2546, %v2456, %v2576
    %v2578 = vsel %vm2536, %v2495, %v2495
    %v2579 = vsel %vm2538, %v2495, %v2578
    %v2580 = vsel %vm2540, %v2495, %v2579
    %v2581 = vsel %vm2542, %v2495, %v2580
    %v2582 = vsel %vm2544, %v2495, %v2581
    %v2583 = vsel %vm2546, %v2495, %v2582
    %v2584 = vsel %vm2536, %v2534, %v2534
    %v2585 = vsel %vm2538, %v2534, %v2584
    %v2586 = vsel %vm2540, %v2534, %v2585
    %v2587 = vsel %vm2542, %v2534, %v2586
    %v2588 = vsel %vm2544, %v2534, %v2587
    %v2589 = vsel %vm2546, %v2534, %v2588
    %v2598 = vmul.f32 %v1752, %v2547
    %v2599 = vmul.f32 %v1753, %v2547
    %v2600 = vmul.f32 %v1754, %v2547
    %v2601 = vmul.f32 %v1755, %v2547
    %v2602 = vmul.f32 %v1756, %v2547
    %v2603 = vmul.f32 %v1757, %v2547
    %v2604 = vmul.f32 %v1758, %v2547
    %v2605 = vmul.f32 %v1759, %v2547
    %v2606 = vmul.f32 %v1760, %v2553
    %v2607 = vmul.f32 %v1761, %v2553
    %v2608 = vmul.f32 %v1762, %v2553
    %v2609 = vmul.f32 %v1763, %v2553
    %v2610 = vmul.f32 %v1764, %v2553
    %v2611 = vmul.f32 %v1765, %v2553
    %v2612 = vmul.f32 %v1766, %v2553
    %v2613 = vmul.f32 %v1767, %v2553
    %v2614 = vmul.f32 %v1768, %v2559
    %v2615 = vmul.f32 %v1769, %v2559
    %v2616 = vmul.f32 %v1770, %v2559
    %v2617 = vmul.f32 %v1771, %v2559
    %v2618 = vmul.f32 %v1772, %v2559
    %v2619 = vmul.f32 %v1773, %v2559
    %v2620 = vmul.f32 %v1774, %v2559
    %v2621 = vmul.f32 %v1775, %v2559
    %v2622 = vmul.f32 %v1776, %v2565
    %v2623 = vmul.f32 %v1777, %v2565
    %v2624 = vmul.f32 %v1778, %v2565
    %v2625 = vmul.f32 %v1779, %v2565
    %v2626 = vmul.f32 %v1780, %v2565
    %v2627 = vmul.f32 %v1781, %v2565
    %v2628 = vmul.f32 %v1782, %v2565
    %v2629 = vmul.f32 %v1783, %v2565
    %v2630 = vmul.f32 %v1784, %v2571
    %v2631 = vmul.f32 %v1785, %v2571
    %v2632 = vmul.f32 %v1786, %v2571
    %v2633 = vmul.f32 %v1787, %v2571
    %v2634 = vmul.f32 %v1788, %v2571
    %v2635 = vmul.f32 %v1789, %v2571
    %v2636 = vmul.f32 %v1790, %v2571
    %v2637 = vmul.f32 %v1791, %v2571
    %v2638 = vmul.f32 %v1792, %v2577
    %v2639 = vmul.f32 %v1793, %v2577
    %v2640 = vmul.f32 %v1794, %v2577
    %v2641 = vmul.f32 %v1795, %v2577
    %v2642 = vmul.f32 %v1796, %v2577
    %v2643 = vmul.f32 %v1797, %v2577
    %v2644 = vmul.f32 %v1798, %v2577
    %v2645 = vmul.f32 %v1799, %v2577
    %v2646 = vmul.f32 %v1800, %v2583
    %v2647 = vmul.f32 %v1801, %v2583
    %v2648 = vmul.f32 %v1802, %v2583
    %v2649 = vmul.f32 %v1803, %v2583
    %v2650 = vmul.f32 %v1804, %v2583
    %v2651 = vmul.f32 %v1805, %v2583
    %v2652 = vmul.f32 %v1806, %v2583
    %v2653 = vmul.f32 %v1807, %v2583
    %v2654 = vmul.f32 %v1808, %v2589
    %v2655 = vmul.f32 %v1809, %v2589
    %v2656 = vmul.f32 %v1810, %v2589
    %v2657 = vmul.f32 %v1811, %v2589
    %v2658 = vmul.f32 %v1812, %v2589
    %v2659 = vmul.f32 %v1813, %v2589
    %v2660 = vmul.f32 %v1814, %v2589
    %v2661 = vmul.f32 %v1815, %v2589
    %v2662 = vlaneseq
    %v2663 = vshrl.u32 %v2662, 7
    %v2664 = vadd.s32 %v2663, 8
    %v2665 = vadd.s32 %v2663, 16
    %v2666 = vadd.s32 %v2663, 24
    %v2667 = vadd.s32 %v2663, 32
    %v2668 = vadd.s32 %v2663, 40
    %v2669 = vadd.s32 %v2663, 48
    %v2670 = vadd.s32 %v2663, 56
    %vm2671 = vcmp.eq.s32.totalorder %v2663, %v2208
    %vm2672 = vcmp.eq.s32.totalorder %v2664, %v2208
    %vm2673 = vcmp.eq.s32.totalorder %v2665, %v2208
    %vm2674 = vcmp.eq.s32.totalorder %v2666, %v2208
    %vm2675 = vcmp.eq.s32.totalorder %v2667, %v2208
    %vm2676 = vcmp.eq.s32.totalorder %v2668, %v2208
    %vm2677 = vcmp.eq.s32.totalorder %v2669, %v2208
    %vm2678 = vcmp.eq.s32.totalorder %v2670, %v2208
    %v2679 = vsel %vm2671, 1, 0
    %v2680 = vsel %vm2672, 1, 0
    %v2681 = vsel %vm2673, 1, 0
    %v2682 = vsel %vm2674, 1, 0
    %v2683 = vsel %vm2675, 1, 0
    %v2684 = vsel %vm2676, 1, 0
    %v2685 = vsel %vm2677, 1, 0
    %v2686 = vsel %vm2678, 1, 0
    %vm2687 = vcmp.eq.s32.totalorder %v2679, 1
    %vm2688 = vcmp.eq.s32.totalorder %v2680, 1
    %vm2689 = vcmp.eq.s32.totalorder %v2681, 1
    %vm2690 = vcmp.eq.s32.totalorder %v2682, 1
    %vm2691 = vcmp.eq.s32.totalorder %v2683, 1
    %vm2692 = vcmp.eq.s32.totalorder %v2684, 1
    %vm2693 = vcmp.eq.s32.totalorder %v2685, 1
    %vm2694 = vcmp.eq.s32.totalorder %v2686, 1
    %v2695 = vsel %vm2687, 0.0, %v380
    %v2696 = vsel %vm2688, 0.0, %v385
    %v2697 = vsel %vm2689, 0.0, %v390
    %v2698 = vsel %vm2690, 0.0, %v395
    %v2699 = vsel %vm2691, 0.0, %v400
    %v2700 = vsel %vm2692, 0.0, %v405
    %v2701 = vsel %vm2693, 0.0, %v410
    %v2702 = vsel %vm2694, 0.0, %v415
    %v2703 = vsel %vm2687, 0.0, %v533
    %v2704 = vsel %vm2688, 0.0, %v538
    %v2705 = vsel %vm2689, 0.0, %v543
    %v2706 = vsel %vm2690, 0.0, %v548
    %v2707 = vsel %vm2691, 0.0, %v553
    %v2708 = vsel %vm2692, 0.0, %v558
    %v2709 = vsel %vm2693, 0.0, %v563
    %v2710 = vsel %vm2694, 0.0, %v568
    %v2711 = vsel %vm2687, 0.0, %v686
    %v2712 = vsel %vm2688, 0.0, %v691
    %v2713 = vsel %vm2689, 0.0, %v696
    %v2714 = vsel %vm2690, 0.0, %v701
    %v2715 = vsel %vm2691, 0.0, %v706
    %v2716 = vsel %vm2692, 0.0, %v711
    %v2717 = vsel %vm2693, 0.0, %v716
    %v2718 = vsel %vm2694, 0.0, %v721
    %v2719 = vsel %vm2687, 0.0, %v839
    %v2720 = vsel %vm2688, 0.0, %v844
    %v2721 = vsel %vm2689, 0.0, %v849
    %v2722 = vsel %vm2690, 0.0, %v854
    %v2723 = vsel %vm2691, 0.0, %v859
    %v2724 = vsel %vm2692, 0.0, %v864
    %v2725 = vsel %vm2693, 0.0, %v869
    %v2726 = vsel %vm2694, 0.0, %v874
    %v2727 = vsel %vm2687, 0.0, %v992
    %v2728 = vsel %vm2688, 0.0, %v997
    %v2729 = vsel %vm2689, 0.0, %v1002
    %v2730 = vsel %vm2690, 0.0, %v1007
    %v2731 = vsel %vm2691, 0.0, %v1012
    %v2732 = vsel %vm2692, 0.0, %v1017
    %v2733 = vsel %vm2693, 0.0, %v1022
    %v2734 = vsel %vm2694, 0.0, %v1027
    %v2735 = vsel %vm2687, 0.0, %v1145
    %v2736 = vsel %vm2688, 0.0, %v1150
    %v2737 = vsel %vm2689, 0.0, %v1155
    %v2738 = vsel %vm2690, 0.0, %v1160
    %v2739 = vsel %vm2691, 0.0, %v1165
    %v2740 = vsel %vm2692, 0.0, %v1170
    %v2741 = vsel %vm2693, 0.0, %v1175
    %v2742 = vsel %vm2694, 0.0, %v1180
    %v2743 = vsel %vm2687, 0.0, %v1298
    %v2744 = vsel %vm2688, 0.0, %v1303
    %v2745 = vsel %vm2689, 0.0, %v1308
    %v2746 = vsel %vm2690, 0.0, %v1313
    %v2747 = vsel %vm2691, 0.0, %v1318
    %v2748 = vsel %vm2692, 0.0, %v1323
    %v2749 = vsel %vm2693, 0.0, %v1328
    %v2750 = vsel %vm2694, 0.0, %v1333
    %v2751 = vsel %vm2687, 0.0, %v1451
    %v2752 = vsel %vm2688, 0.0, %v1456
    %v2753 = vsel %vm2689, 0.0, %v1461
    %v2754 = vsel %vm2690, 0.0, %v1466
    %v2755 = vsel %vm2691, 0.0, %v1471
    %v2756 = vsel %vm2692, 0.0, %v1476
    %v2757 = vsel %vm2693, 0.0, %v1481
    %v2758 = vsel %vm2694, 0.0, %v1486
    %v2760 = vlaneseq
    %v2761 = vshrl.u32 %v2760, 7
    %v2762 = vsub.s32 0, %v2761
    %v2763 = vrot.slane %v252, %v2762
    %v2765 = vmul.f32 %v2695, %v2763
    %v2766 = vmul.f32 %v2696, %v2763
    %v2767 = vmul.f32 %v2697, %v2763
    %v2768 = vmul.f32 %v2698, %v2763
    %v2769 = vmul.f32 %v2699, %v2763
    %v2770 = vmul.f32 %v2700, %v2763
    %v2771 = vmul.f32 %v2701, %v2763
    %v2772 = vmul.f32 %v2702, %v2763
    %v2773 = vmul.f32 %v2703, %v2763
    %v2774 = vmul.f32 %v2704, %v2763
    %v2775 = vmul.f32 %v2705, %v2763
    %v2776 = vmul.f32 %v2706, %v2763
    %v2777 = vmul.f32 %v2707, %v2763
    %v2778 = vmul.f32 %v2708, %v2763
    %v2779 = vmul.f32 %v2709, %v2763
    %v2780 = vmul.f32 %v2710, %v2763
    %v2781 = vmul.f32 %v2711, %v2763
    %v2782 = vmul.f32 %v2712, %v2763
    %v2783 = vmul.f32 %v2713, %v2763
    %v2784 = vmul.f32 %v2714, %v2763
    %v2785 = vmul.f32 %v2715, %v2763
    %v2786 = vmul.f32 %v2716, %v2763
    %v2787 = vmul.f32 %v2717, %v2763
    %v2788 = vmul.f32 %v2718, %v2763
    %v2789 = vmul.f32 %v2719, %v2763
    %v2790 = vmul.f32 %v2720, %v2763
    %v2791 = vmul.f32 %v2721, %v2763
    %v2792 = vmul.f32 %v2722, %v2763
    %v2793 = vmul.f32 %v2723, %v2763
    %v2794 = vmul.f32 %v2724, %v2763
    %v2795 = vmul.f32 %v2725, %v2763
    %v2796 = vmul.f32 %v2726, %v2763
    %v2797 = vmul.f32 %v2727, %v2763
    %v2798 = vmul.f32 %v2728, %v2763
    %v2799 = vmul.f32 %v2729, %v2763
    %v2800 = vmul.f32 %v2730, %v2763
    %v2801 = vmul.f32 %v2731, %v2763
    %v2802 = vmul.f32 %v2732, %v2763
    %v2803 = vmul.f32 %v2733, %v2763
    %v2804 = vmul.f32 %v2734, %v2763
    %v2805 = vmul.f32 %v2735, %v2763
    %v2806 = vmul.f32 %v2736, %v2763
    %v2807 = vmul.f32 %v2737, %v2763
    %v2808 = vmul.f32 %v2738, %v2763
    %v2809 = vmul.f32 %v2739, %v2763
    %v2810 = vmul.f32 %v2740, %v2763
    %v2811 = vmul.f32 %v2741, %v2763
    %v2812 = vmul.f32 %v2742, %v2763
    %v2813 = vmul.f32 %v2743, %v2763
    %v2814 = vmul.f32 %v2744, %v2763
    %v2815 = vmul.f32 %v2745, %v2763
    %v2816 = vmul.f32 %v2746, %v2763
    %v2817 = vmul.f32 %v2747, %v2763
    %v2818 = vmul.f32 %v2748, %v2763
    %v2819 = vmul.f32 %v2749, %v2763
    %v2820 = vmul.f32 %v2750, %v2763
    %v2821 = vmul.f32 %v2751, %v2763
    %v2822 = vmul.f32 %v2752, %v2763
    %v2823 = vmul.f32 %v2753, %v2763
    %v2824 = vmul.f32 %v2754, %v2763
    %v2825 = vmul.f32 %v2755, %v2763
    %v2826 = vmul.f32 %v2756, %v2763
    %v2827 = vmul.f32 %v2757, %v2763
    %v2828 = vmul.f32 %v2758, %v2763
    %vm2829 = vcmask 523264
    %v2830 = vsel %vm2829, %v2765, 0.0
    %2831 = vadd.xlane.f32.xlu0 %v2830
    %v2832 = vpop.xlane.xlu0 %2831
    %v2833 = vsel %vm2829, %v2766, 0.0
    %2834 = vadd.xlane.f32.xlu0 %v2833
    %v2835 = vpop.xlane.xlu0 %2834
    %v2836 = vsel %vm2829, %v2767, 0.0
    %2837 = vadd.xlane.f32.xlu0 %v2836
    %v2838 = vpop.xlane.xlu0 %2837
    %v2839 = vsel %vm2829, %v2768, 0.0
    %2840 = vadd.xlane.f32.xlu0 %v2839
    %v2841 = vpop.xlane.xlu0 %2840
    %v2842 = vsel %vm2829, %v2769, 0.0
    %2843 = vadd.xlane.f32.xlu0 %v2842
    %v2844 = vpop.xlane.xlu0 %2843
    %v2845 = vsel %vm2829, %v2770, 0.0
    %2846 = vadd.xlane.f32.xlu0 %v2845
    %v2847 = vpop.xlane.xlu0 %2846
    %v2848 = vsel %vm2829, %v2771, 0.0
    %2849 = vadd.xlane.f32.xlu0 %v2848
    %v2850 = vpop.xlane.xlu0 %2849
    %v2851 = vsel %vm2829, %v2772, 0.0
    %2852 = vadd.xlane.f32.xlu0 %v2851
    %v2853 = vpop.xlane.xlu0 %2852
    %v2854 = vsel %vm2829, %v2773, 0.0
    %2855 = vadd.xlane.f32.xlu0 %v2854
    %v2856 = vpop.xlane.xlu0 %2855
    %v2857 = vsel %vm2829, %v2774, 0.0
    %2858 = vadd.xlane.f32.xlu0 %v2857
    %v2859 = vpop.xlane.xlu0 %2858
    %v2860 = vsel %vm2829, %v2775, 0.0
    %2861 = vadd.xlane.f32.xlu0 %v2860
    %v2862 = vpop.xlane.xlu0 %2861
    %v2863 = vsel %vm2829, %v2776, 0.0
    %2864 = vadd.xlane.f32.xlu0 %v2863
    %v2865 = vpop.xlane.xlu0 %2864
    %v2866 = vsel %vm2829, %v2777, 0.0
    %2867 = vadd.xlane.f32.xlu0 %v2866
    %v2868 = vpop.xlane.xlu0 %2867
    %v2869 = vsel %vm2829, %v2778, 0.0
    %2870 = vadd.xlane.f32.xlu0 %v2869
    %v2871 = vpop.xlane.xlu0 %2870
    %v2872 = vsel %vm2829, %v2779, 0.0
    %2873 = vadd.xlane.f32.xlu0 %v2872
    %v2874 = vpop.xlane.xlu0 %2873
    %v2875 = vsel %vm2829, %v2780, 0.0
    %2876 = vadd.xlane.f32.xlu0 %v2875
    %v2877 = vpop.xlane.xlu0 %2876
    %v2878 = vsel %vm2829, %v2781, 0.0
    %2879 = vadd.xlane.f32.xlu0 %v2878
    %v2880 = vpop.xlane.xlu0 %2879
    %v2881 = vsel %vm2829, %v2782, 0.0
    %2882 = vadd.xlane.f32.xlu0 %v2881
    %v2883 = vpop.xlane.xlu0 %2882
    %v2884 = vsel %vm2829, %v2783, 0.0
    %2885 = vadd.xlane.f32.xlu0 %v2884
    %v2886 = vpop.xlane.xlu0 %2885
    %v2887 = vsel %vm2829, %v2784, 0.0
    %2888 = vadd.xlane.f32.xlu0 %v2887
    %v2889 = vpop.xlane.xlu0 %2888
    %v2890 = vsel %vm2829, %v2785, 0.0
    %2891 = vadd.xlane.f32.xlu0 %v2890
    %v2892 = vpop.xlane.xlu0 %2891
    %v2893 = vsel %vm2829, %v2786, 0.0
    %2894 = vadd.xlane.f32.xlu0 %v2893
    %v2895 = vpop.xlane.xlu0 %2894
    %v2896 = vsel %vm2829, %v2787, 0.0
    %2897 = vadd.xlane.f32.xlu0 %v2896
    %v2898 = vpop.xlane.xlu0 %2897
    %v2899 = vsel %vm2829, %v2788, 0.0
    %2900 = vadd.xlane.f32.xlu0 %v2899
    %v2901 = vpop.xlane.xlu0 %2900
    %v2902 = vsel %vm2829, %v2789, 0.0
    %2903 = vadd.xlane.f32.xlu0 %v2902
    %v2904 = vpop.xlane.xlu0 %2903
    %v2905 = vsel %vm2829, %v2790, 0.0
    %2906 = vadd.xlane.f32.xlu0 %v2905
    %v2907 = vpop.xlane.xlu0 %2906
    %v2908 = vsel %vm2829, %v2791, 0.0
    %2909 = vadd.xlane.f32.xlu0 %v2908
    %v2910 = vpop.xlane.xlu0 %2909
    %v2911 = vsel %vm2829, %v2792, 0.0
    %2912 = vadd.xlane.f32.xlu0 %v2911
    %v2913 = vpop.xlane.xlu0 %2912
    %v2914 = vsel %vm2829, %v2793, 0.0
    %2915 = vadd.xlane.f32.xlu0 %v2914
    %v2916 = vpop.xlane.xlu0 %2915
    %v2917 = vsel %vm2829, %v2794, 0.0
    %2918 = vadd.xlane.f32.xlu0 %v2917
    %v2919 = vpop.xlane.xlu0 %2918
    %v2920 = vsel %vm2829, %v2795, 0.0
    %2921 = vadd.xlane.f32.xlu0 %v2920
    %v2922 = vpop.xlane.xlu0 %2921
    %v2923 = vsel %vm2829, %v2796, 0.0
    %2924 = vadd.xlane.f32.xlu0 %v2923
    %v2925 = vpop.xlane.xlu0 %2924
    %v2926 = vsel %vm2829, %v2797, 0.0
    %2927 = vadd.xlane.f32.xlu0 %v2926
    %v2928 = vpop.xlane.xlu0 %2927
    %v2929 = vsel %vm2829, %v2798, 0.0
    %2930 = vadd.xlane.f32.xlu0 %v2929
    %v2931 = vpop.xlane.xlu0 %2930
    %v2932 = vsel %vm2829, %v2799, 0.0
    %2933 = vadd.xlane.f32.xlu0 %v2932
    %v2934 = vpop.xlane.xlu0 %2933
    %v2935 = vsel %vm2829, %v2800, 0.0
    %2936 = vadd.xlane.f32.xlu0 %v2935
    %v2937 = vpop.xlane.xlu0 %2936
    %v2938 = vsel %vm2829, %v2801, 0.0
    %2939 = vadd.xlane.f32.xlu0 %v2938
    %v2940 = vpop.xlane.xlu0 %2939
    %v2941 = vsel %vm2829, %v2802, 0.0
    %2942 = vadd.xlane.f32.xlu0 %v2941
    %v2943 = vpop.xlane.xlu0 %2942
    %v2944 = vsel %vm2829, %v2803, 0.0
    %2945 = vadd.xlane.f32.xlu0 %v2944
    %v2946 = vpop.xlane.xlu0 %2945
    %v2947 = vsel %vm2829, %v2804, 0.0
    %2948 = vadd.xlane.f32.xlu0 %v2947
    %v2949 = vpop.xlane.xlu0 %2948
    %v2950 = vsel %vm2829, %v2805, 0.0
    %2951 = vadd.xlane.f32.xlu0 %v2950
    %v2952 = vpop.xlane.xlu0 %2951
    %v2953 = vsel %vm2829, %v2806, 0.0
    %2954 = vadd.xlane.f32.xlu0 %v2953
    %v2955 = vpop.xlane.xlu0 %2954
    %v2956 = vsel %vm2829, %v2807, 0.0
    %2957 = vadd.xlane.f32.xlu0 %v2956
    %v2958 = vpop.xlane.xlu0 %2957
    %v2959 = vsel %vm2829, %v2808, 0.0
    %2960 = vadd.xlane.f32.xlu0 %v2959
    %v2961 = vpop.xlane.xlu0 %2960
    %v2962 = vsel %vm2829, %v2809, 0.0
    %2963 = vadd.xlane.f32.xlu0 %v2962
    %v2964 = vpop.xlane.xlu0 %2963
    %v2965 = vsel %vm2829, %v2810, 0.0
    %2966 = vadd.xlane.f32.xlu0 %v2965
    %v2967 = vpop.xlane.xlu0 %2966
    %v2968 = vsel %vm2829, %v2811, 0.0
    %2969 = vadd.xlane.f32.xlu0 %v2968
    %v2970 = vpop.xlane.xlu0 %2969
    %v2971 = vsel %vm2829, %v2812, 0.0
    %2972 = vadd.xlane.f32.xlu0 %v2971
    %v2973 = vpop.xlane.xlu0 %2972
    %v2974 = vsel %vm2829, %v2813, 0.0
    %2975 = vadd.xlane.f32.xlu0 %v2974
    %v2976 = vpop.xlane.xlu0 %2975
    %v2977 = vsel %vm2829, %v2814, 0.0
    %2978 = vadd.xlane.f32.xlu0 %v2977
    %v2979 = vpop.xlane.xlu0 %2978
    %v2980 = vsel %vm2829, %v2815, 0.0
    %2981 = vadd.xlane.f32.xlu0 %v2980
    %v2982 = vpop.xlane.xlu0 %2981
    %v2983 = vsel %vm2829, %v2816, 0.0
    %2984 = vadd.xlane.f32.xlu0 %v2983
    %v2985 = vpop.xlane.xlu0 %2984
    %v2986 = vsel %vm2829, %v2817, 0.0
    %2987 = vadd.xlane.f32.xlu0 %v2986
    %v2988 = vpop.xlane.xlu0 %2987
    %v2989 = vsel %vm2829, %v2818, 0.0
    %2990 = vadd.xlane.f32.xlu0 %v2989
    %v2991 = vpop.xlane.xlu0 %2990
    %v2992 = vsel %vm2829, %v2819, 0.0
    %2993 = vadd.xlane.f32.xlu0 %v2992
    %v2994 = vpop.xlane.xlu0 %2993
    %v2995 = vsel %vm2829, %v2820, 0.0
    %2996 = vadd.xlane.f32.xlu0 %v2995
    %v2997 = vpop.xlane.xlu0 %2996
    %v2998 = vsel %vm2829, %v2821, 0.0
    %2999 = vadd.xlane.f32.xlu0 %v2998
    %v3000 = vpop.xlane.xlu0 %2999
    %v3001 = vsel %vm2829, %v2822, 0.0
    %3002 = vadd.xlane.f32.xlu0 %v3001
    %v3003 = vpop.xlane.xlu0 %3002
    %v3004 = vsel %vm2829, %v2823, 0.0
    %3005 = vadd.xlane.f32.xlu0 %v3004
    %v3006 = vpop.xlane.xlu0 %3005
    %v3007 = vsel %vm2829, %v2824, 0.0
    %3008 = vadd.xlane.f32.xlu0 %v3007
    %v3009 = vpop.xlane.xlu0 %3008
    %v3010 = vsel %vm2829, %v2825, 0.0
    %3011 = vadd.xlane.f32.xlu0 %v3010
    %v3012 = vpop.xlane.xlu0 %3011
    %v3013 = vsel %vm2829, %v2826, 0.0
    %3014 = vadd.xlane.f32.xlu0 %v3013
    %v3015 = vpop.xlane.xlu0 %3014
    %v3016 = vsel %vm2829, %v2827, 0.0
    %3017 = vadd.xlane.f32.xlu0 %v3016
    %v3018 = vpop.xlane.xlu0 %3017
    %v3019 = vsel %vm2829, %v2828, 0.0
    %3020 = vadd.xlane.f32.xlu0 %v3019
    %v3021 = vpop.xlane.xlu0 %3020
    %v3086 = vlaneseq
    %v3087 = vshrl.u32 %v3086, 7
    %v3088 = vsub.s32 %v2208, %v3087
    %v3089 = vrot.slane %v2832, %v3088
    %v3090 = vlaneseq
    %v3091 = vshrl.u32 %v3090, 7
    %v3092 = vsub.s32 %v2213, %v3091
    %v3093 = vrot.slane %v2835, %v3092
    %v3094 = vsel %vm2218, %v3093, %v3089
    %v3095 = vlaneseq
    %v3096 = vshrl.u32 %v3095, 7
    %v3097 = vsub.s32 %v2220, %v3096
    %v3098 = vrot.slane %v2838, %v3097
    %v3099 = vsel %vm2225, %v3098, %v3094
    %v3100 = vlaneseq
    %v3101 = vshrl.u32 %v3100, 7
    %v3102 = vsub.s32 %v2227, %v3101
    %v3103 = vrot.slane %v2841, %v3102
    %v3104 = vsel %vm2232, %v3103, %v3099
    %v3105 = vlaneseq
    %v3106 = vshrl.u32 %v3105, 7
    %v3107 = vsub.s32 %v2234, %v3106
    %v3108 = vrot.slane %v2844, %v3107
    %v3109 = vsel %vm2239, %v3108, %v3104
    %v3110 = vlaneseq
    %v3111 = vshrl.u32 %v3110, 7
    %v3112 = vsub.s32 %v2241, %v3111
    %v3113 = vrot.slane %v2847, %v3112
    %v3114 = vsel %vm2246, %v3113, %v3109
    %v3115 = vlaneseq
    %v3116 = vshrl.u32 %v3115, 7
    %v3117 = vsub.s32 %v2248, %v3116
    %v3118 = vrot.slane %v2850, %v3117
    %v3119 = vsel %vm2253, %v3118, %v3114
    %v3120 = vlaneseq
    %v3121 = vshrl.u32 %v3120, 7
    %v3122 = vsub.s32 %v2255, %v3121
    %v3123 = vrot.slane %v2853, %v3122
    %v3124 = vsel %vm2260, %v3123, %v3119
    %v3125 = vlaneseq
    %v3126 = vshrl.u32 %v3125, 7
    %v3127 = vsub.s32 %v2208, %v3126
    %v3128 = vrot.slane %v2856, %v3127
    %v3129 = vlaneseq
    %v3130 = vshrl.u32 %v3129, 7
    %v3131 = vsub.s32 %v2213, %v3130
    %v3132 = vrot.slane %v2859, %v3131
    %v3133 = vsel %vm2218, %v3132, %v3128
    %v3134 = vlaneseq
    %v3135 = vshrl.u32 %v3134, 7
    %v3136 = vsub.s32 %v2220, %v3135
    %v3137 = vrot.slane %v2862, %v3136
    %v3138 = vsel %vm2225, %v3137, %v3133
    %v3139 = vlaneseq
    %v3140 = vshrl.u32 %v3139, 7
    %v3141 = vsub.s32 %v2227, %v3140
    %v3142 = vrot.slane %v2865, %v3141
    %v3143 = vsel %vm2232, %v3142, %v3138
    %v3144 = vlaneseq
    %v3145 = vshrl.u32 %v3144, 7
    %v3146 = vsub.s32 %v2234, %v3145
    %v3147 = vrot.slane %v2868, %v3146
    %v3148 = vsel %vm2239, %v3147, %v3143
    %v3149 = vlaneseq
    %v3150 = vshrl.u32 %v3149, 7
    %v3151 = vsub.s32 %v2241, %v3150
    %v3152 = vrot.slane %v2871, %v3151
    %v3153 = vsel %vm2246, %v3152, %v3148
    %v3154 = vlaneseq
    %v3155 = vshrl.u32 %v3154, 7
    %v3156 = vsub.s32 %v2248, %v3155
    %v3157 = vrot.slane %v2874, %v3156
    %v3158 = vsel %vm2253, %v3157, %v3153
    %v3159 = vlaneseq
    %v3160 = vshrl.u32 %v3159, 7
    %v3161 = vsub.s32 %v2255, %v3160
    %v3162 = vrot.slane %v2877, %v3161
    %v3163 = vsel %vm2260, %v3162, %v3158
    %v3164 = vlaneseq
    %v3165 = vshrl.u32 %v3164, 7
    %v3166 = vsub.s32 %v2208, %v3165
    %v3167 = vrot.slane %v2880, %v3166
    %v3168 = vlaneseq
    %v3169 = vshrl.u32 %v3168, 7
    %v3170 = vsub.s32 %v2213, %v3169
    %v3171 = vrot.slane %v2883, %v3170
    %v3172 = vsel %vm2218, %v3171, %v3167
    %v3173 = vlaneseq
    %v3174 = vshrl.u32 %v3173, 7
    %v3175 = vsub.s32 %v2220, %v3174
    %v3176 = vrot.slane %v2886, %v3175
    %v3177 = vsel %vm2225, %v3176, %v3172
    %v3178 = vlaneseq
    %v3179 = vshrl.u32 %v3178, 7
    %v3180 = vsub.s32 %v2227, %v3179
    %v3181 = vrot.slane %v2889, %v3180
    %v3182 = vsel %vm2232, %v3181, %v3177
    %v3183 = vlaneseq
    %v3184 = vshrl.u32 %v3183, 7
    %v3185 = vsub.s32 %v2234, %v3184
    %v3186 = vrot.slane %v2892, %v3185
    %v3187 = vsel %vm2239, %v3186, %v3182
    %v3188 = vlaneseq
    %v3189 = vshrl.u32 %v3188, 7
    %v3190 = vsub.s32 %v2241, %v3189
    %v3191 = vrot.slane %v2895, %v3190
    %v3192 = vsel %vm2246, %v3191, %v3187
    %v3193 = vlaneseq
    %v3194 = vshrl.u32 %v3193, 7
    %v3195 = vsub.s32 %v2248, %v3194
    %v3196 = vrot.slane %v2898, %v3195
    %v3197 = vsel %vm2253, %v3196, %v3192
    %v3198 = vlaneseq
    %v3199 = vshrl.u32 %v3198, 7
    %v3200 = vsub.s32 %v2255, %v3199
    %v3201 = vrot.slane %v2901, %v3200
    %v3202 = vsel %vm2260, %v3201, %v3197
    %v3203 = vlaneseq
    %v3204 = vshrl.u32 %v3203, 7
    %v3205 = vsub.s32 %v2208, %v3204
    %v3206 = vrot.slane %v2904, %v3205
    %v3207 = vlaneseq
    %v3208 = vshrl.u32 %v3207, 7
    %v3209 = vsub.s32 %v2213, %v3208
    %v3210 = vrot.slane %v2907, %v3209
    %v3211 = vsel %vm2218, %v3210, %v3206
    %v3212 = vlaneseq
    %v3213 = vshrl.u32 %v3212, 7
    %v3214 = vsub.s32 %v2220, %v3213
    %v3215 = vrot.slane %v2910, %v3214
    %v3216 = vsel %vm2225, %v3215, %v3211
    %v3217 = vlaneseq
    %v3218 = vshrl.u32 %v3217, 7
    %v3219 = vsub.s32 %v2227, %v3218
    %v3220 = vrot.slane %v2913, %v3219
    %v3221 = vsel %vm2232, %v3220, %v3216
    %v3222 = vlaneseq
    %v3223 = vshrl.u32 %v3222, 7
    %v3224 = vsub.s32 %v2234, %v3223
    %v3225 = vrot.slane %v2916, %v3224
    %v3226 = vsel %vm2239, %v3225, %v3221
    %v3227 = vlaneseq
    %v3228 = vshrl.u32 %v3227, 7
    %v3229 = vsub.s32 %v2241, %v3228
    %v3230 = vrot.slane %v2919, %v3229
    %v3231 = vsel %vm2246, %v3230, %v3226
    %v3232 = vlaneseq
    %v3233 = vshrl.u32 %v3232, 7
    %v3234 = vsub.s32 %v2248, %v3233
    %v3235 = vrot.slane %v2922, %v3234
    %v3236 = vsel %vm2253, %v3235, %v3231
    %v3237 = vlaneseq
    %v3238 = vshrl.u32 %v3237, 7
    %v3239 = vsub.s32 %v2255, %v3238
    %v3240 = vrot.slane %v2925, %v3239
    %v3241 = vsel %vm2260, %v3240, %v3236
    %v3242 = vlaneseq
    %v3243 = vshrl.u32 %v3242, 7
    %v3244 = vsub.s32 %v2208, %v3243
    %v3245 = vrot.slane %v2928, %v3244
    %v3246 = vlaneseq
    %v3247 = vshrl.u32 %v3246, 7
    %v3248 = vsub.s32 %v2213, %v3247
    %v3249 = vrot.slane %v2931, %v3248
    %v3250 = vsel %vm2218, %v3249, %v3245
    %v3251 = vlaneseq
    %v3252 = vshrl.u32 %v3251, 7
    %v3253 = vsub.s32 %v2220, %v3252
    %v3254 = vrot.slane %v2934, %v3253
    %v3255 = vsel %vm2225, %v3254, %v3250
    %v3256 = vlaneseq
    %v3257 = vshrl.u32 %v3256, 7
    %v3258 = vsub.s32 %v2227, %v3257
    %v3259 = vrot.slane %v2937, %v3258
    %v3260 = vsel %vm2232, %v3259, %v3255
    %v3261 = vlaneseq
    %v3262 = vshrl.u32 %v3261, 7
    %v3263 = vsub.s32 %v2234, %v3262
    %v3264 = vrot.slane %v2940, %v3263
    %v3265 = vsel %vm2239, %v3264, %v3260
    %v3266 = vlaneseq
    %v3267 = vshrl.u32 %v3266, 7
    %v3268 = vsub.s32 %v2241, %v3267
    %v3269 = vrot.slane %v2943, %v3268
    %v3270 = vsel %vm2246, %v3269, %v3265
    %v3271 = vlaneseq
    %v3272 = vshrl.u32 %v3271, 7
    %v3273 = vsub.s32 %v2248, %v3272
    %v3274 = vrot.slane %v2946, %v3273
    %v3275 = vsel %vm2253, %v3274, %v3270
    %v3276 = vlaneseq
    %v3277 = vshrl.u32 %v3276, 7
    %v3278 = vsub.s32 %v2255, %v3277
    %v3279 = vrot.slane %v2949, %v3278
    %v3280 = vsel %vm2260, %v3279, %v3275
    %v3281 = vlaneseq
    %v3282 = vshrl.u32 %v3281, 7
    %v3283 = vsub.s32 %v2208, %v3282
    %v3284 = vrot.slane %v2952, %v3283
    %v3285 = vlaneseq
    %v3286 = vshrl.u32 %v3285, 7
    %v3287 = vsub.s32 %v2213, %v3286
    %v3288 = vrot.slane %v2955, %v3287
    %v3289 = vsel %vm2218, %v3288, %v3284
    %v3290 = vlaneseq
    %v3291 = vshrl.u32 %v3290, 7
    %v3292 = vsub.s32 %v2220, %v3291
    %v3293 = vrot.slane %v2958, %v3292
    %v3294 = vsel %vm2225, %v3293, %v3289
    %v3295 = vlaneseq
    %v3296 = vshrl.u32 %v3295, 7
    %v3297 = vsub.s32 %v2227, %v3296
    %v3298 = vrot.slane %v2961, %v3297
    %v3299 = vsel %vm2232, %v3298, %v3294
    %v3300 = vlaneseq
    %v3301 = vshrl.u32 %v3300, 7
    %v3302 = vsub.s32 %v2234, %v3301
    %v3303 = vrot.slane %v2964, %v3302
    %v3304 = vsel %vm2239, %v3303, %v3299
    %v3305 = vlaneseq
    %v3306 = vshrl.u32 %v3305, 7
    %v3307 = vsub.s32 %v2241, %v3306
    %v3308 = vrot.slane %v2967, %v3307
    %v3309 = vsel %vm2246, %v3308, %v3304
    %v3310 = vlaneseq
    %v3311 = vshrl.u32 %v3310, 7
    %v3312 = vsub.s32 %v2248, %v3311
    %v3313 = vrot.slane %v2970, %v3312
    %v3314 = vsel %vm2253, %v3313, %v3309
    %v3315 = vlaneseq
    %v3316 = vshrl.u32 %v3315, 7
    %v3317 = vsub.s32 %v2255, %v3316
    %v3318 = vrot.slane %v2973, %v3317
    %v3319 = vsel %vm2260, %v3318, %v3314
    %v3320 = vlaneseq
    %v3321 = vshrl.u32 %v3320, 7
    %v3322 = vsub.s32 %v2208, %v3321
    %v3323 = vrot.slane %v2976, %v3322
    %v3324 = vlaneseq
    %v3325 = vshrl.u32 %v3324, 7
    %v3326 = vsub.s32 %v2213, %v3325
    %v3327 = vrot.slane %v2979, %v3326
    %v3328 = vsel %vm2218, %v3327, %v3323
    %v3329 = vlaneseq
    %v3330 = vshrl.u32 %v3329, 7
    %v3331 = vsub.s32 %v2220, %v3330
    %v3332 = vrot.slane %v2982, %v3331
    %v3333 = vsel %vm2225, %v3332, %v3328
    %v3334 = vlaneseq
    %v3335 = vshrl.u32 %v3334, 7
    %v3336 = vsub.s32 %v2227, %v3335
    %v3337 = vrot.slane %v2985, %v3336
    %v3338 = vsel %vm2232, %v3337, %v3333
    %v3339 = vlaneseq
    %v3340 = vshrl.u32 %v3339, 7
    %v3341 = vsub.s32 %v2234, %v3340
    %v3342 = vrot.slane %v2988, %v3341
    %v3343 = vsel %vm2239, %v3342, %v3338
    %v3344 = vlaneseq
    %v3345 = vshrl.u32 %v3344, 7
    %v3346 = vsub.s32 %v2241, %v3345
    %v3347 = vrot.slane %v2991, %v3346
    %v3348 = vsel %vm2246, %v3347, %v3343
    %v3349 = vlaneseq
    %v3350 = vshrl.u32 %v3349, 7
    %v3351 = vsub.s32 %v2248, %v3350
    %v3352 = vrot.slane %v2994, %v3351
    %v3353 = vsel %vm2253, %v3352, %v3348
    %v3354 = vlaneseq
    %v3355 = vshrl.u32 %v3354, 7
    %v3356 = vsub.s32 %v2255, %v3355
    %v3357 = vrot.slane %v2997, %v3356
    %v3358 = vsel %vm2260, %v3357, %v3353
    %v3359 = vlaneseq
    %v3360 = vshrl.u32 %v3359, 7
    %v3361 = vsub.s32 %v2208, %v3360
    %v3362 = vrot.slane %v3000, %v3361
    %v3363 = vlaneseq
    %v3364 = vshrl.u32 %v3363, 7
    %v3365 = vsub.s32 %v2213, %v3364
    %v3366 = vrot.slane %v3003, %v3365
    %v3367 = vsel %vm2218, %v3366, %v3362
    %v3368 = vlaneseq
    %v3369 = vshrl.u32 %v3368, 7
    %v3370 = vsub.s32 %v2220, %v3369
    %v3371 = vrot.slane %v3006, %v3370
    %v3372 = vsel %vm2225, %v3371, %v3367
    %v3373 = vlaneseq
    %v3374 = vshrl.u32 %v3373, 7
    %v3375 = vsub.s32 %v2227, %v3374
    %v3376 = vrot.slane %v3009, %v3375
    %v3377 = vsel %vm2232, %v3376, %v3372
    %v3378 = vlaneseq
    %v3379 = vshrl.u32 %v3378, 7
    %v3380 = vsub.s32 %v2234, %v3379
    %v3381 = vrot.slane %v3012, %v3380
    %v3382 = vsel %vm2239, %v3381, %v3377
    %v3383 = vlaneseq
    %v3384 = vshrl.u32 %v3383, 7
    %v3385 = vsub.s32 %v2241, %v3384
    %v3386 = vrot.slane %v3015, %v3385
    %v3387 = vsel %vm2246, %v3386, %v3382
    %v3388 = vlaneseq
    %v3389 = vshrl.u32 %v3388, 7
    %v3390 = vsub.s32 %v2248, %v3389
    %v3391 = vrot.slane %v3018, %v3390
    %v3392 = vsel %vm2253, %v3391, %v3387
    %v3393 = vlaneseq
    %v3394 = vshrl.u32 %v3393, 7
    %v3395 = vsub.s32 %v2255, %v3394
    %v3396 = vrot.slane %v3021, %v3395
    %v3397 = vsel %vm2260, %v3396, %v3392
    %v3398 = vsel %vm2535, %v3163, %v3124
    %v3399 = vsel %vm2536, %v3202, %v3398
    %v3400 = vsel %vm2538, %v3241, %v3399
    %v3401 = vsel %vm2540, %v3280, %v3400
    %v3402 = vsel %vm2542, %v3319, %v3401
    %v3403 = vsel %vm2544, %v3358, %v3402
    %v3404 = vsel %vm2546, %v3397, %v3403
    %v3405 = vsel %vm2829, %v3404, 0
    %3407 = vmatprep.subr.mxu0 0.0
    %3408 = vmatpush1.msra.mxu0 %v253
    %3409 = vmatprep.subr.mxu0 0.0
    %3410 = vmatpush1.msra.mxu0 %v254
    %3411 = vmatprep.subr.mxu0 0.0
    %3412 = vmatpush1.msra.mxu0 %v255
    %3413 = vmatprep.subr.mxu0 0.0
    %3414 = vmatpush1.msra.mxu0 %v256
    %3415 = vmatprep.subr.mxu0 0.0
    %3416 = vmatpush1.msra.mxu0 %v257
    %3417 = vmatprep.subr.mxu0 0.0
    %3418 = vmatpush1.msra.mxu0 %v258
    %3419 = vmatprep.subr.mxu0 0.0
    %3420 = vmatpush1.msra.mxu0 %v259
    %3421 = vmatprep.subr.mxu0 0.0
    %3422 = vmatpush1.msra.mxu0 %v260
    %3423 = vmatprep.subr.mxu0 0.0
    %3424 = vmatpush1.msra.mxu0 0.0
    %3425 = vmatprep.subr.mxu0 0.0
    %3426 = vmatpush1.msra.mxu0 0.0
    %3427 = vmatprep.subr.mxu0 0.0
    %3428 = vmatpush1.msra.mxu0 0.0
    %3429 = vmatprep.subr.mxu0 0.0
    %3430 = vmatpush1.msra.mxu0 0.0
    %3431 = vmatprep.subr.mxu0 0.0
    %3432 = vmatpush1.msra.mxu0 0.0
    %3433 = vmatprep.subr.mxu0 0.0
    %3434 = vmatpush1.msra.mxu0 0.0
    %3435 = vmatprep.subr.mxu0 0.0
    %3436 = vmatpush1.msra.mxu0 0.0
    %3437 = vmatprep.subr.mxu0 0.0
    %3438 = vmatpush1.msra.mxu0 0.0
    %3439 = vmatprep.subr.mxu0 0.0
    %3440 = vmatpush1.msra.mxu0 0.0
    %3441 = vmatprep.subr.mxu0 0.0
    %3442 = vmatpush1.msra.mxu0 0.0
    %3443 = vmatprep.subr.mxu0 0.0
    %3444 = vmatpush1.msra.mxu0 0.0
    %3445 = vmatprep.subr.mxu0 0.0
    %3446 = vmatpush1.msra.mxu0 0.0
    %3447 = vmatprep.subr.mxu0 0.0
    %3448 = vmatpush1.msra.mxu0 0.0
    %3449 = vmatprep.subr.mxu0 0.0
    %3450 = vmatpush1.msra.mxu0 0.0
    %3451 = vmatprep.subr.mxu0 0.0
    %3452 = vmatpush1.msra.mxu0 0.0
    %3453 = vmatprep.subr.mxu0 0.0
    %3454 = vmatpush1.msra.mxu0 0.0
    %3455 = vmatprep.subr.mxu0 0.0
    %3456 = vmatpush1.msra.mxu0 0.0
    %3457 = vmatprep.subr.mxu0 0.0
    %3458 = vmatpush1.msra.mxu0 0.0
    %3459 = vmatprep.subr.mxu0 0.0
    %3460 = vmatpush1.msra.mxu0 0.0
    %3461 = vmatprep.subr.mxu0 0.0
    %3462 = vmatpush1.msra.mxu0 0.0
    %3463 = vmatprep.subr.mxu0 0.0
    %3464 = vmatpush1.msra.mxu0 0.0
    %3465 = vmatprep.subr.mxu0 0.0
    %3466 = vmatpush1.msra.mxu0 0.0
    %3467 = vmatprep.subr.mxu0 0.0
    %3468 = vmatpush1.msra.mxu0 0.0
    %3469 = vmatprep.subr.mxu0 0.0
    %3470 = vmatpush1.msra.mxu0 0.0
    %3471 = vmatprep.mubr.f32.mxu0 0.0
    %3472 = vmatmul.mubr.f32.gmra.mrb[0].mxu0 %v3405
    %v3473 = vpop.f32.mrb[0].mxu0
    %v3474 = vadd.f32 0.0, %v3473
    %v3475 = vpop.f32.mrb[0].mxu0
    %3476 = vdwg.mxu0
    %vm3477 = vcmp.ge.f32.partialorder %v3474, 0.0
    %v3478 = vmul.f32 %v3474, 0.1
    %v3479 = vsel %vm3477, %v3474, %v3478
    %v3481 = vlaneseq
    %v3482 = vshrl.u32 %v3481, 7
    %v3483 = vsub.s32 0, %v3482
    %v3484 = vrot.slane %v261, %v3483
    %v3486 = vmul.f32 %v3479, %v3484
    %v3487 = vsel %vm2829, %v3486, 0.0
    %3488 = vadd.xlane.f32.xlu0 %v3487
    %v3489 = vpop.xlane.xlu0 %3488
    %v3491 = vlaneseq
    %v3492 = vshrl.u32 %v3491, 7
    %v3493 = vsub.s32 0, %v3492
    %v3494 = vrot.slane %v3489, %v3493
    %v3495 = vlaneseq
    %v3496 = vshrl.u32 %v3495, 7
    %v3497 = vsub.s32 1, %v3496
    %v3498 = vrot.slane %v3489, %v3497
    %v3499 = vlaneseq
    %v3500 = vshrl.u32 %v3499, 7
    %v3501 = vsub.s32 2, %v3500
    %v3502 = vrot.slane %v3489, %v3501
    %v3503 = vlaneseq
    %v3504 = vshrl.u32 %v3503, 7
    %v3505 = vsub.s32 3, %v3504
    %v3506 = vrot.slane %v3489, %v3505
    %v3507 = vlaneseq
    %v3508 = vshrl.u32 %v3507, 7
    %v3509 = vsub.s32 4, %v3508
    %v3510 = vrot.slane %v3489, %v3509
    %v3511 = vlaneseq
    %v3512 = vshrl.u32 %v3511, 7
    %v3513 = vsub.s32 5, %v3512
    %v3514 = vrot.slane %v3489, %v3513
    %v3515 = vlaneseq
    %v3516 = vshrl.u32 %v3515, 7
    %v3517 = vsub.s32 6, %v3516
    %v3518 = vrot.slane %v3489, %v3517
    %v3519 = vlaneseq
    %v3520 = vshrl.u32 %v3519, 7
    %v3521 = vsub.s32 7, %v3520
    %v3522 = vrot.slane %v3489, %v3521
    %v3531 = vmul.f32 %v380, %v2598
    %v3532 = vmul.f32 %v385, %v2599
    %v3533 = vmul.f32 %v390, %v2600
    %v3534 = vmul.f32 %v395, %v2601
    %v3535 = vmul.f32 %v400, %v2602
    %v3536 = vmul.f32 %v405, %v2603
    %v3537 = vmul.f32 %v410, %v2604
    %v3538 = vmul.f32 %v415, %v2605
    %v3539 = vmul.f32 %v533, %v2606
    %v3540 = vmul.f32 %v538, %v2607
    %v3541 = vmul.f32 %v543, %v2608
    %v3542 = vmul.f32 %v548, %v2609
    %v3543 = vmul.f32 %v553, %v2610
    %v3544 = vmul.f32 %v558, %v2611
    %v3545 = vmul.f32 %v563, %v2612
    %v3546 = vmul.f32 %v568, %v2613
    %v3547 = vmul.f32 %v686, %v2614
    %v3548 = vmul.f32 %v691, %v2615
    %v3549 = vmul.f32 %v696, %v2616
    %v3550 = vmul.f32 %v701, %v2617
    %v3551 = vmul.f32 %v706, %v2618
    %v3552 = vmul.f32 %v711, %v2619
    %v3553 = vmul.f32 %v716, %v2620
    %v3554 = vmul.f32 %v721, %v2621
    %v3555 = vmul.f32 %v839, %v2622
    %v3556 = vmul.f32 %v844, %v2623
    %v3557 = vmul.f32 %v849, %v2624
    %v3558 = vmul.f32 %v854, %v2625
    %v3559 = vmul.f32 %v859, %v2626
    %v3560 = vmul.f32 %v864, %v2627
    %v3561 = vmul.f32 %v869, %v2628
    %v3562 = vmul.f32 %v874, %v2629
    %v3563 = vmul.f32 %v992, %v2630
    %v3564 = vmul.f32 %v997, %v2631
    %v3565 = vmul.f32 %v1002, %v2632
    %v3566 = vmul.f32 %v1007, %v2633
    %v3567 = vmul.f32 %v1012, %v2634
    %v3568 = vmul.f32 %v1017, %v2635
    %v3569 = vmul.f32 %v1022, %v2636
    %v3570 = vmul.f32 %v1027, %v2637
    %v3571 = vmul.f32 %v1145, %v2638
    %v3572 = vmul.f32 %v1150, %v2639
    %v3573 = vmul.f32 %v1155, %v2640
    %v3574 = vmul.f32 %v1160, %v2641
    %v3575 = vmul.f32 %v1165, %v2642
    %v3576 = vmul.f32 %v1170, %v2643
    %v3577 = vmul.f32 %v1175, %v2644
    %v3578 = vmul.f32 %v1180, %v2645
    %v3579 = vmul.f32 %v1298, %v2646
    %v3580 = vmul.f32 %v1303, %v2647
    %v3581 = vmul.f32 %v1308, %v2648
    %v3582 = vmul.f32 %v1313, %v2649
    %v3583 = vmul.f32 %v1318, %v2650
    %v3584 = vmul.f32 %v1323, %v2651
    %v3585 = vmul.f32 %v1328, %v2652
    %v3586 = vmul.f32 %v1333, %v2653
    %v3587 = vmul.f32 %v1451, %v2654
    %v3588 = vmul.f32 %v1456, %v2655
    %v3589 = vmul.f32 %v1461, %v2656
    %v3590 = vmul.f32 %v1466, %v2657
    %v3591 = vmul.f32 %v1471, %v2658
    %v3592 = vmul.f32 %v1476, %v2659
    %v3593 = vmul.f32 %v1481, %v2660
    %v3594 = vmul.f32 %v1486, %v2661
    %v3595 = vsel %vm2829, %v3531, -inf
    %3596 = vmax.xlane.f32.xlu0 %v3595
    %v3597 = vpop.xlane.xlu0 %3596
    %v3598 = vsel %vm2829, %v3532, -inf
    %3599 = vmax.xlane.f32.xlu0 %v3598
    %v3600 = vpop.xlane.xlu0 %3599
    %v3601 = vsel %vm2829, %v3533, -inf
    %3602 = vmax.xlane.f32.xlu0 %v3601
    %v3603 = vpop.xlane.xlu0 %3602
    %v3604 = vsel %vm2829, %v3534, -inf
    %3605 = vmax.xlane.f32.xlu0 %v3604
    %v3606 = vpop.xlane.xlu0 %3605
    %v3607 = vsel %vm2829, %v3535, -inf
    %3608 = vmax.xlane.f32.xlu0 %v3607
    %v3609 = vpop.xlane.xlu0 %3608
    %v3610 = vsel %vm2829, %v3536, -inf
    %3611 = vmax.xlane.f32.xlu0 %v3610
    %v3612 = vpop.xlane.xlu0 %3611
    %v3613 = vsel %vm2829, %v3537, -inf
    %3614 = vmax.xlane.f32.xlu0 %v3613
    %v3615 = vpop.xlane.xlu0 %3614
    %v3616 = vsel %vm2829, %v3538, -inf
    %3617 = vmax.xlane.f32.xlu0 %v3616
    %v3618 = vpop.xlane.xlu0 %3617
    %v3619 = vsel %vm2829, %v3539, -inf
    %3620 = vmax.xlane.f32.xlu0 %v3619
    %v3621 = vpop.xlane.xlu0 %3620
    %v3622 = vsel %vm2829, %v3540, -inf
    %3623 = vmax.xlane.f32.xlu0 %v3622
    %v3624 = vpop.xlane.xlu0 %3623
    %v3625 = vsel %vm2829, %v3541, -inf
    %3626 = vmax.xlane.f32.xlu0 %v3625
    %v3627 = vpop.xlane.xlu0 %3626
    %v3628 = vsel %vm2829, %v3542, -inf
    %3629 = vmax.xlane.f32.xlu0 %v3628
    %v3630 = vpop.xlane.xlu0 %3629
    %v3631 = vsel %vm2829, %v3543, -inf
    %3632 = vmax.xlane.f32.xlu0 %v3631
    %v3633 = vpop.xlane.xlu0 %3632
    %v3634 = vsel %vm2829, %v3544, -inf
    %3635 = vmax.xlane.f32.xlu0 %v3634
    %v3636 = vpop.xlane.xlu0 %3635
    %v3637 = vsel %vm2829, %v3545, -inf
    %3638 = vmax.xlane.f32.xlu0 %v3637
    %v3639 = vpop.xlane.xlu0 %3638
    %v3640 = vsel %vm2829, %v3546, -inf
    %3641 = vmax.xlane.f32.xlu0 %v3640
    %v3642 = vpop.xlane.xlu0 %3641
    %v3643 = vsel %vm2829, %v3547, -inf
    %3644 = vmax.xlane.f32.xlu0 %v3643
    %v3645 = vpop.xlane.xlu0 %3644
    %v3646 = vsel %vm2829, %v3548, -inf
    %3647 = vmax.xlane.f32.xlu0 %v3646
    %v3648 = vpop.xlane.xlu0 %3647
    %v3649 = vsel %vm2829, %v3549, -inf
    %3650 = vmax.xlane.f32.xlu0 %v3649
    %v3651 = vpop.xlane.xlu0 %3650
    %v3652 = vsel %vm2829, %v3550, -inf
    %3653 = vmax.xlane.f32.xlu0 %v3652
    %v3654 = vpop.xlane.xlu0 %3653
    %v3655 = vsel %vm2829, %v3551, -inf
    %3656 = vmax.xlane.f32.xlu0 %v3655
    %v3657 = vpop.xlane.xlu0 %3656
    %v3658 = vsel %vm2829, %v3552, -inf
    %3659 = vmax.xlane.f32.xlu0 %v3658
    %v3660 = vpop.xlane.xlu0 %3659
    %v3661 = vsel %vm2829, %v3553, -inf
    %3662 = vmax.xlane.f32.xlu0 %v3661
    %v3663 = vpop.xlane.xlu0 %3662
    %v3664 = vsel %vm2829, %v3554, -inf
    %3665 = vmax.xlane.f32.xlu0 %v3664
    %v3666 = vpop.xlane.xlu0 %3665
    %v3667 = vsel %vm2829, %v3555, -inf
    %3668 = vmax.xlane.f32.xlu0 %v3667
    %v3669 = vpop.xlane.xlu0 %3668
    %v3670 = vsel %vm2829, %v3556, -inf
    %3671 = vmax.xlane.f32.xlu0 %v3670
    %v3672 = vpop.xlane.xlu0 %3671
    %v3673 = vsel %vm2829, %v3557, -inf
    %3674 = vmax.xlane.f32.xlu0 %v3673
    %v3675 = vpop.xlane.xlu0 %3674
    %v3676 = vsel %vm2829, %v3558, -inf
    %3677 = vmax.xlane.f32.xlu0 %v3676
    %v3678 = vpop.xlane.xlu0 %3677
    %v3679 = vsel %vm2829, %v3559, -inf
    %3680 = vmax.xlane.f32.xlu0 %v3679
    %v3681 = vpop.xlane.xlu0 %3680
    %v3682 = vsel %vm2829, %v3560, -inf
    %3683 = vmax.xlane.f32.xlu0 %v3682
    %v3684 = vpop.xlane.xlu0 %3683
    %v3685 = vsel %vm2829, %v3561, -inf
    %3686 = vmax.xlane.f32.xlu0 %v3685
    %v3687 = vpop.xlane.xlu0 %3686
    %v3688 = vsel %vm2829, %v3562, -inf
    %3689 = vmax.xlane.f32.xlu0 %v3688
    %v3690 = vpop.xlane.xlu0 %3689
    %v3691 = vsel %vm2829, %v3563, -inf
    %3692 = vmax.xlane.f32.xlu0 %v3691
    %v3693 = vpop.xlane.xlu0 %3692
    %v3694 = vsel %vm2829, %v3564, -inf
    %3695 = vmax.xlane.f32.xlu0 %v3694
    %v3696 = vpop.xlane.xlu0 %3695
    %v3697 = vsel %vm2829, %v3565, -inf
    %3698 = vmax.xlane.f32.xlu0 %v3697
    %v3699 = vpop.xlane.xlu0 %3698
    %v3700 = vsel %vm2829, %v3566, -inf
    %3701 = vmax.xlane.f32.xlu0 %v3700
    %v3702 = vpop.xlane.xlu0 %3701
    %v3703 = vsel %vm2829, %v3567, -inf
    %3704 = vmax.xlane.f32.xlu0 %v3703
    %v3705 = vpop.xlane.xlu0 %3704
    %v3706 = vsel %vm2829, %v3568, -inf
    %3707 = vmax.xlane.f32.xlu0 %v3706
    %v3708 = vpop.xlane.xlu0 %3707
    %v3709 = vsel %vm2829, %v3569, -inf
    %3710 = vmax.xlane.f32.xlu0 %v3709
    %v3711 = vpop.xlane.xlu0 %3710
    %v3712 = vsel %vm2829, %v3570, -inf
    %3713 = vmax.xlane.f32.xlu0 %v3712
    %v3714 = vpop.xlane.xlu0 %3713
    %v3715 = vsel %vm2829, %v3571, -inf
    %3716 = vmax.xlane.f32.xlu0 %v3715
    %v3717 = vpop.xlane.xlu0 %3716
    %v3718 = vsel %vm2829, %v3572, -inf
    %3719 = vmax.xlane.f32.xlu0 %v3718
    %v3720 = vpop.xlane.xlu0 %3719
    %v3721 = vsel %vm2829, %v3573, -inf
    %3722 = vmax.xlane.f32.xlu0 %v3721
    %v3723 = vpop.xlane.xlu0 %3722
    %v3724 = vsel %vm2829, %v3574, -inf
    %3725 = vmax.xlane.f32.xlu0 %v3724
    %v3726 = vpop.xlane.xlu0 %3725
    %v3727 = vsel %vm2829, %v3575, -inf
    %3728 = vmax.xlane.f32.xlu0 %v3727
    %v3729 = vpop.xlane.xlu0 %3728
    %v3730 = vsel %vm2829, %v3576, -inf
    %3731 = vmax.xlane.f32.xlu0 %v3730
    %v3732 = vpop.xlane.xlu0 %3731
    %v3733 = vsel %vm2829, %v3577, -inf
    %3734 = vmax.xlane.f32.xlu0 %v3733
    %v3735 = vpop.xlane.xlu0 %3734
    %v3736 = vsel %vm2829, %v3578, -inf
    %3737 = vmax.xlane.f32.xlu0 %v3736
    %v3738 = vpop.xlane.xlu0 %3737
    %v3739 = vsel %vm2829, %v3579, -inf
    %3740 = vmax.xlane.f32.xlu0 %v3739
    %v3741 = vpop.xlane.xlu0 %3740
    %v3742 = vsel %vm2829, %v3580, -inf
    %3743 = vmax.xlane.f32.xlu0 %v3742
    %v3744 = vpop.xlane.xlu0 %3743
    %v3745 = vsel %vm2829, %v3581, -inf
    %3746 = vmax.xlane.f32.xlu0 %v3745
    %v3747 = vpop.xlane.xlu0 %3746
    %v3748 = vsel %vm2829, %v3582, -inf
    %3749 = vmax.xlane.f32.xlu0 %v3748
    %v3750 = vpop.xlane.xlu0 %3749
    %v3751 = vsel %vm2829, %v3583, -inf
    %3752 = vmax.xlane.f32.xlu0 %v3751
    %v3753 = vpop.xlane.xlu0 %3752
    %v3754 = vsel %vm2829, %v3584, -inf
    %3755 = vmax.xlane.f32.xlu0 %v3754
    %v3756 = vpop.xlane.xlu0 %3755
    %v3757 = vsel %vm2829, %v3585, -inf
    %3758 = vmax.xlane.f32.xlu0 %v3757
    %v3759 = vpop.xlane.xlu0 %3758
    %v3760 = vsel %vm2829, %v3586, -inf
    %3761 = vmax.xlane.f32.xlu0 %v3760
    %v3762 = vpop.xlane.xlu0 %3761
    %v3763 = vsel %vm2829, %v3587, -inf
    %3764 = vmax.xlane.f32.xlu0 %v3763
    %v3765 = vpop.xlane.xlu0 %3764
    %v3766 = vsel %vm2829, %v3588, -inf
    %3767 = vmax.xlane.f32.xlu0 %v3766
    %v3768 = vpop.xlane.xlu0 %3767
    %v3769 = vsel %vm2829, %v3589, -inf
    %3770 = vmax.xlane.f32.xlu0 %v3769
    %v3771 = vpop.xlane.xlu0 %3770
    %v3772 = vsel %vm2829, %v3590, -inf
    %3773 = vmax.xlane.f32.xlu0 %v3772
    %v3774 = vpop.xlane.xlu0 %3773
    %v3775 = vsel %vm2829, %v3591, -inf
    %3776 = vmax.xlane.f32.xlu0 %v3775
    %v3777 = vpop.xlane.xlu0 %3776
    %v3778 = vsel %vm2829, %v3592, -inf
    %3779 = vmax.xlane.f32.xlu0 %v3778
    %v3780 = vpop.xlane.xlu0 %3779
    %v3781 = vsel %vm2829, %v3593, -inf
    %3782 = vmax.xlane.f32.xlu0 %v3781
    %v3783 = vpop.xlane.xlu0 %3782
    %v3784 = vsel %vm2829, %v3594, -inf
    %3785 = vmax.xlane.f32.xlu0 %v3784
    %v3786 = vpop.xlane.xlu0 %3785
    %v3787 = vsub.f32 %v3531, %v3597
    %v3788 = vsub.f32 %v3532, %v3600
    %v3789 = vsub.f32 %v3533, %v3603
    %v3790 = vsub.f32 %v3534, %v3606
    %v3791 = vsub.f32 %v3535, %v3609
    %v3792 = vsub.f32 %v3536, %v3612
    %v3793 = vsub.f32 %v3537, %v3615
    %v3794 = vsub.f32 %v3538, %v3618
    %v3795 = vsub.f32 %v3539, %v3621
    %v3796 = vsub.f32 %v3540, %v3624
    %v3797 = vsub.f32 %v3541, %v3627
    %v3798 = vsub.f32 %v3542, %v3630
    %v3799 = vsub.f32 %v3543, %v3633
    %v3800 = vsub.f32 %v3544, %v3636
    %v3801 = vsub.f32 %v3545, %v3639
    %v3802 = vsub.f32 %v3546, %v3642
    %v3803 = vsub.f32 %v3547, %v3645
    %v3804 = vsub.f32 %v3548, %v3648
    %v3805 = vsub.f32 %v3549, %v3651
    %v3806 = vsub.f32 %v3550, %v3654
    %v3807 = vsub.f32 %v3551, %v3657
    %v3808 = vsub.f32 %v3552, %v3660
    %v3809 = vsub.f32 %v3553, %v3663
    %v3810 = vsub.f32 %v3554, %v3666
    %v3811 = vsub.f32 %v3555, %v3669
    %v3812 = vsub.f32 %v3556, %v3672
    %v3813 = vsub.f32 %v3557, %v3675
    %v3814 = vsub.f32 %v3558, %v3678
    %v3815 = vsub.f32 %v3559, %v3681
    %v3816 = vsub.f32 %v3560, %v3684
    %v3817 = vsub.f32 %v3561, %v3687
    %v3818 = vsub.f32 %v3562, %v3690
    %v3819 = vsub.f32 %v3563, %v3693
    %v3820 = vsub.f32 %v3564, %v3696
    %v3821 = vsub.f32 %v3565, %v3699
    %v3822 = vsub.f32 %v3566, %v3702
    %v3823 = vsub.f32 %v3567, %v3705
    %v3824 = vsub.f32 %v3568, %v3708
    %v3825 = vsub.f32 %v3569, %v3711
    %v3826 = vsub.f32 %v3570, %v3714
    %v3827 = vsub.f32 %v3571, %v3717
    %v3828 = vsub.f32 %v3572, %v3720
    %v3829 = vsub.f32 %v3573, %v3723
    %v3830 = vsub.f32 %v3574, %v3726
    %v3831 = vsub.f32 %v3575, %v3729
    %v3832 = vsub.f32 %v3576, %v3732
    %v3833 = vsub.f32 %v3577, %v3735
    %v3834 = vsub.f32 %v3578, %v3738
    %v3835 = vsub.f32 %v3579, %v3741
    %v3836 = vsub.f32 %v3580, %v3744
    %v3837 = vsub.f32 %v3581, %v3747
    %v3838 = vsub.f32 %v3582, %v3750
    %v3839 = vsub.f32 %v3583, %v3753
    %v3840 = vsub.f32 %v3584, %v3756
    %v3841 = vsub.f32 %v3585, %v3759
    %v3842 = vsub.f32 %v3586, %v3762
    %v3843 = vsub.f32 %v3587, %v3765
    %v3844 = vsub.f32 %v3588, %v3768
    %v3845 = vsub.f32 %v3589, %v3771
    %v3846 = vsub.f32 %v3590, %v3774
    %v3847 = vsub.f32 %v3591, %v3777
    %v3848 = vsub.f32 %v3592, %v3780
    %v3849 = vsub.f32 %v3593, %v3783
    %v3850 = vsub.f32 %v3594, %v3786
    %v3851 = vmul.f32 %v3787, 1.442695
    %v3852 = vpow.pop %v3851
    %v3853 = vmul.f32 %v3788, 1.442695
    %v3854 = vpow.pop %v3853
    %v3855 = vmul.f32 %v3789, 1.442695
    %v3856 = vpow.pop %v3855
    %v3857 = vmul.f32 %v3790, 1.442695
    %v3858 = vpow.pop %v3857
    %v3859 = vmul.f32 %v3791, 1.442695
    %v3860 = vpow.pop %v3859
    %v3861 = vmul.f32 %v3792, 1.442695
    %v3862 = vpow.pop %v3861
    %v3863 = vmul.f32 %v3793, 1.442695
    %v3864 = vpow.pop %v3863
    %v3865 = vmul.f32 %v3794, 1.442695
    %v3866 = vpow.pop %v3865
    %v3867 = vmul.f32 %v3795, 1.442695
    %v3868 = vpow.pop %v3867
    %v3869 = vmul.f32 %v3796, 1.442695
    %v3870 = vpow.pop %v3869
    %v3871 = vmul.f32 %v3797, 1.442695
    %v3872 = vpow.pop %v3871
    %v3873 = vmul.f32 %v3798, 1.442695
    %v3874 = vpow.pop %v3873
    %v3875 = vmul.f32 %v3799, 1.442695
    %v3876 = vpow.pop %v3875
    %v3877 = vmul.f32 %v3800, 1.442695
    %v3878 = vpow.pop %v3877
    %v3879 = vmul.f32 %v3801, 1.442695
    %v3880 = vpow.pop %v3879
    %v3881 = vmul.f32 %v3802, 1.442695
    %v3882 = vpow.pop %v3881
    %v3883 = vmul.f32 %v3803, 1.442695
    %v3884 = vpow.pop %v3883
    %v3885 = vmul.f32 %v3804, 1.442695
    %v3886 = vpow.pop %v3885
    %v3887 = vmul.f32 %v3805, 1.442695
    %v3888 = vpow.pop %v3887
    %v3889 = vmul.f32 %v3806, 1.442695
    %v3890 = vpow.pop %v3889
    %v3891 = vmul.f32 %v3807, 1.442695
    %v3892 = vpow.pop %v3891
    %v3893 = vmul.f32 %v3808, 1.442695
    %v3894 = vpow.pop %v3893
    %v3895 = vmul.f32 %v3809, 1.442695
    %v3896 = vpow.pop %v3895
    %v3897 = vmul.f32 %v3810, 1.442695
    %v3898 = vpow.pop %v3897
    %v3899 = vmul.f32 %v3811, 1.442695
    %v3900 = vpow.pop %v3899
    %v3901 = vmul.f32 %v3812, 1.442695
    %v3902 = vpow.pop %v3901
    %v3903 = vmul.f32 %v3813, 1.442695
    %v3904 = vpow.pop %v3903
    %v3905 = vmul.f32 %v3814, 1.442695
    %v3906 = vpow.pop %v3905
    %v3907 = vmul.f32 %v3815, 1.442695
    %v3908 = vpow.pop %v3907
    %v3909 = vmul.f32 %v3816, 1.442695
    %v3910 = vpow.pop %v3909
    %v3911 = vmul.f32 %v3817, 1.442695
    %v3912 = vpow.pop %v3911
    %v3913 = vmul.f32 %v3818, 1.442695
    %v3914 = vpow.pop %v3913
    %v3915 = vmul.f32 %v3819, 1.442695
    %v3916 = vpow.pop %v3915
    %v3917 = vmul.f32 %v3820, 1.442695
    %v3918 = vpow.pop %v3917
    %v3919 = vmul.f32 %v3821, 1.442695
    %v3920 = vpow.pop %v3919
    %v3921 = vmul.f32 %v3822, 1.442695
    %v3922 = vpow.pop %v3921
    %v3923 = vmul.f32 %v3823, 1.442695
    %v3924 = vpow.pop %v3923
    %v3925 = vmul.f32 %v3824, 1.442695
    %v3926 = vpow.pop %v3925
    %v3927 = vmul.f32 %v3825, 1.442695
    %v3928 = vpow.pop %v3927
    %v3929 = vmul.f32 %v3826, 1.442695
    %v3930 = vpow.pop %v3929
    %v3931 = vmul.f32 %v3827, 1.442695
    %v3932 = vpow.pop %v3931
    %v3933 = vmul.f32 %v3828, 1.442695
    %v3934 = vpow.pop %v3933
    %v3935 = vmul.f32 %v3829, 1.442695
    %v3936 = vpow.pop %v3935
    %v3937 = vmul.f32 %v3830, 1.442695
    %v3938 = vpow.pop %v3937
    %v3939 = vmul.f32 %v3831, 1.442695
    %v3940 = vpow.pop %v3939
    %v3941 = vmul.f32 %v3832, 1.442695
    %v3942 = vpow.pop %v3941
    %v3943 = vmul.f32 %v3833, 1.442695
    %v3944 = vpow.pop %v3943
    %v3945 = vmul.f32 %v3834, 1.442695
    %v3946 = vpow.pop %v3945
    %v3947 = vmul.f32 %v3835, 1.442695
    %v3948 = vpow.pop %v3947
    %v3949 = vmul.f32 %v3836, 1.442695
    %v3950 = vpow.pop %v3949
    %v3951 = vmul.f32 %v3837, 1.442695
    %v3952 = vpow.pop %v3951
    %v3953 = vmul.f32 %v3838, 1.442695
    %v3954 = vpow.pop %v3953
    %v3955 = vmul.f32 %v3839, 1.442695
    %v3956 = vpow.pop %v3955
    %v3957 = vmul.f32 %v3840, 1.442695
    %v3958 = vpow.pop %v3957
    %v3959 = vmul.f32 %v3841, 1.442695
    %v3960 = vpow.pop %v3959
    %v3961 = vmul.f32 %v3842, 1.442695
    %v3962 = vpow.pop %v3961
    %v3963 = vmul.f32 %v3843, 1.442695
    %v3964 = vpow.pop %v3963
    %v3965 = vmul.f32 %v3844, 1.442695
    %v3966 = vpow.pop %v3965
    %v3967 = vmul.f32 %v3845, 1.442695
    %v3968 = vpow.pop %v3967
    %v3969 = vmul.f32 %v3846, 1.442695
    %v3970 = vpow.pop %v3969
    %v3971 = vmul.f32 %v3847, 1.442695
    %v3972 = vpow.pop %v3971
    %v3973 = vmul.f32 %v3848, 1.442695
    %v3974 = vpow.pop %v3973
    %v3975 = vmul.f32 %v3849, 1.442695
    %v3976 = vpow.pop %v3975
    %v3977 = vmul.f32 %v3850, 1.442695
    %v3978 = vpow.pop %v3977
    %v3979 = vsel %vm2829, %v3852, 0.0
    %3980 = vadd.xlane.f32.xlu0 %v3979
    %v3981 = vpop.xlane.xlu0 %3980
    %v3982 = vsel %vm2829, %v3854, 0.0
    %3983 = vadd.xlane.f32.xlu0 %v3982
    %v3984 = vpop.xlane.xlu0 %3983
    %v3985 = vsel %vm2829, %v3856, 0.0
    %3986 = vadd.xlane.f32.xlu0 %v3985
    %v3987 = vpop.xlane.xlu0 %3986
    %v3988 = vsel %vm2829, %v3858, 0.0
    %3989 = vadd.xlane.f32.xlu0 %v3988
    %v3990 = vpop.xlane.xlu0 %3989
    %v3991 = vsel %vm2829, %v3860, 0.0
    %3992 = vadd.xlane.f32.xlu0 %v3991
    %v3993 = vpop.xlane.xlu0 %3992
    %v3994 = vsel %vm2829, %v3862, 0.0
    %3995 = vadd.xlane.f32.xlu0 %v3994
    %v3996 = vpop.xlane.xlu0 %3995
    %v3997 = vsel %vm2829, %v3864, 0.0
    %3998 = vadd.xlane.f32.xlu0 %v3997
    %v3999 = vpop.xlane.xlu0 %3998
    %v4000 = vsel %vm2829, %v3866, 0.0
    %4001 = vadd.xlane.f32.xlu0 %v4000
    %v4002 = vpop.xlane.xlu0 %4001
    %v4003 = vsel %vm2829, %v3868, 0.0
    %4004 = vadd.xlane.f32.xlu0 %v4003
    %v4005 = vpop.xlane.xlu0 %4004
    %v4006 = vsel %vm2829, %v3870, 0.0
    %4007 = vadd.xlane.f32.xlu0 %v4006
    %v4008 = vpop.xlane.xlu0 %4007
    %v4009 = vsel %vm2829, %v3872, 0.0
    %4010 = vadd.xlane.f32.xlu0 %v4009
    %v4011 = vpop.xlane.xlu0 %4010
    %v4012 = vsel %vm2829, %v3874, 0.0
    %4013 = vadd.xlane.f32.xlu0 %v4012
    %v4014 = vpop.xlane.xlu0 %4013
    %v4015 = vsel %vm2829, %v3876, 0.0
    %4016 = vadd.xlane.f32.xlu0 %v4015
    %v4017 = vpop.xlane.xlu0 %4016
    %v4018 = vsel %vm2829, %v3878, 0.0
    %4019 = vadd.xlane.f32.xlu0 %v4018
    %v4020 = vpop.xlane.xlu0 %4019
    %v4021 = vsel %vm2829, %v3880, 0.0
    %4022 = vadd.xlane.f32.xlu0 %v4021
    %v4023 = vpop.xlane.xlu0 %4022
    %v4024 = vsel %vm2829, %v3882, 0.0
    %4025 = vadd.xlane.f32.xlu0 %v4024
    %v4026 = vpop.xlane.xlu0 %4025
    %v4027 = vsel %vm2829, %v3884, 0.0
    %4028 = vadd.xlane.f32.xlu0 %v4027
    %v4029 = vpop.xlane.xlu0 %4028
    %v4030 = vsel %vm2829, %v3886, 0.0
    %4031 = vadd.xlane.f32.xlu0 %v4030
    %v4032 = vpop.xlane.xlu0 %4031
    %v4033 = vsel %vm2829, %v3888, 0.0
    %4034 = vadd.xlane.f32.xlu0 %v4033
    %v4035 = vpop.xlane.xlu0 %4034
    %v4036 = vsel %vm2829, %v3890, 0.0
    %4037 = vadd.xlane.f32.xlu0 %v4036
    %v4038 = vpop.xlane.xlu0 %4037
    %v4039 = vsel %vm2829, %v3892, 0.0
    %4040 = vadd.xlane.f32.xlu0 %v4039
    %v4041 = vpop.xlane.xlu0 %4040
    %v4042 = vsel %vm2829, %v3894, 0.0
    %4043 = vadd.xlane.f32.xlu0 %v4042
    %v4044 = vpop.xlane.xlu0 %4043
    %v4045 = vsel %vm2829, %v3896, 0.0
    %4046 = vadd.xlane.f32.xlu0 %v4045
    %v4047 = vpop.xlane.xlu0 %4046
    %v4048 = vsel %vm2829, %v3898, 0.0
    %4049 = vadd.xlane.f32.xlu0 %v4048
    %v4050 = vpop.xlane.xlu0 %4049
    %v4051 = vsel %vm2829, %v3900, 0.0
    %4052 = vadd.xlane.f32.xlu0 %v4051
    %v4053 = vpop.xlane.xlu0 %4052
    %v4054 = vsel %vm2829, %v3902, 0.0
    %4055 = vadd.xlane.f32.xlu0 %v4054
    %v4056 = vpop.xlane.xlu0 %4055
    %v4057 = vsel %vm2829, %v3904, 0.0
    %4058 = vadd.xlane.f32.xlu0 %v4057
    %v4059 = vpop.xlane.xlu0 %4058
    %v4060 = vsel %vm2829, %v3906, 0.0
    %4061 = vadd.xlane.f32.xlu0 %v4060
    %v4062 = vpop.xlane.xlu0 %4061
    %v4063 = vsel %vm2829, %v3908, 0.0
    %4064 = vadd.xlane.f32.xlu0 %v4063
    %v4065 = vpop.xlane.xlu0 %4064
    %v4066 = vsel %vm2829, %v3910, 0.0
    %4067 = vadd.xlane.f32.xlu0 %v4066
    %v4068 = vpop.xlane.xlu0 %4067
    %v4069 = vsel %vm2829, %v3912, 0.0
    %4070 = vadd.xlane.f32.xlu0 %v4069
    %v4071 = vpop.xlane.xlu0 %4070
    %v4072 = vsel %vm2829, %v3914, 0.0
    %4073 = vadd.xlane.f32.xlu0 %v4072
    %v4074 = vpop.xlane.xlu0 %4073
    %v4075 = vsel %vm2829, %v3916, 0.0
    %4076 = vadd.xlane.f32.xlu0 %v4075
    %v4077 = vpop.xlane.xlu0 %4076
    %v4078 = vsel %vm2829, %v3918, 0.0
    %4079 = vadd.xlane.f32.xlu0 %v4078
    %v4080 = vpop.xlane.xlu0 %4079
    %v4081 = vsel %vm2829, %v3920, 0.0
    %4082 = vadd.xlane.f32.xlu0 %v4081
    %v4083 = vpop.xlane.xlu0 %4082
    %v4084 = vsel %vm2829, %v3922, 0.0
    %4085 = vadd.xlane.f32.xlu0 %v4084
    %v4086 = vpop.xlane.xlu0 %4085
    %v4087 = vsel %vm2829, %v3924, 0.0
    %4088 = vadd.xlane.f32.xlu0 %v4087
    %v4089 = vpop.xlane.xlu0 %4088
    %v4090 = vsel %vm2829, %v3926, 0.0
    %4091 = vadd.xlane.f32.xlu0 %v4090
    %v4092 = vpop.xlane.xlu0 %4091
    %v4093 = vsel %vm2829, %v3928, 0.0
    %4094 = vadd.xlane.f32.xlu0 %v4093
    %v4095 = vpop.xlane.xlu0 %4094
    %v4096 = vsel %vm2829, %v3930, 0.0
    %4097 = vadd.xlane.f32.xlu0 %v4096
    %v4098 = vpop.xlane.xlu0 %4097
    %v4099 = vsel %vm2829, %v3932, 0.0
    %4100 = vadd.xlane.f32.xlu0 %v4099
    %v4101 = vpop.xlane.xlu0 %4100
    %v4102 = vsel %vm2829, %v3934, 0.0
    %4103 = vadd.xlane.f32.xlu0 %v4102
    %v4104 = vpop.xlane.xlu0 %4103
    %v4105 = vsel %vm2829, %v3936, 0.0
    %4106 = vadd.xlane.f32.xlu0 %v4105
    %v4107 = vpop.xlane.xlu0 %4106
    %v4108 = vsel %vm2829, %v3938, 0.0
    %4109 = vadd.xlane.f32.xlu0 %v4108
    %v4110 = vpop.xlane.xlu0 %4109
    %v4111 = vsel %vm2829, %v3940, 0.0
    %4112 = vadd.xlane.f32.xlu0 %v4111
    %v4113 = vpop.xlane.xlu0 %4112
    %v4114 = vsel %vm2829, %v3942, 0.0
    %4115 = vadd.xlane.f32.xlu0 %v4114
    %v4116 = vpop.xlane.xlu0 %4115
    %v4117 = vsel %vm2829, %v3944, 0.0
    %4118 = vadd.xlane.f32.xlu0 %v4117
    %v4119 = vpop.xlane.xlu0 %4118
    %v4120 = vsel %vm2829, %v3946, 0.0
    %4121 = vadd.xlane.f32.xlu0 %v4120
    %v4122 = vpop.xlane.xlu0 %4121
    %v4123 = vsel %vm2829, %v3948, 0.0
    %4124 = vadd.xlane.f32.xlu0 %v4123
    %v4125 = vpop.xlane.xlu0 %4124
    %v4126 = vsel %vm2829, %v3950, 0.0
    %4127 = vadd.xlane.f32.xlu0 %v4126
    %v4128 = vpop.xlane.xlu0 %4127
    %v4129 = vsel %vm2829, %v3952, 0.0
    %4130 = vadd.xlane.f32.xlu0 %v4129
    %v4131 = vpop.xlane.xlu0 %4130
    %v4132 = vsel %vm2829, %v3954, 0.0
    %4133 = vadd.xlane.f32.xlu0 %v4132
    %v4134 = vpop.xlane.xlu0 %4133
    %v4135 = vsel %vm2829, %v3956, 0.0
    %4136 = vadd.xlane.f32.xlu0 %v4135
    %v4137 = vpop.xlane.xlu0 %4136
    %v4138 = vsel %vm2829, %v3958, 0.0
    %4139 = vadd.xlane.f32.xlu0 %v4138
    %v4140 = vpop.xlane.xlu0 %4139
    %v4141 = vsel %vm2829, %v3960, 0.0
    %4142 = vadd.xlane.f32.xlu0 %v4141
    %v4143 = vpop.xlane.xlu0 %4142
    %v4144 = vsel %vm2829, %v3962, 0.0
    %4145 = vadd.xlane.f32.xlu0 %v4144
    %v4146 = vpop.xlane.xlu0 %4145
    %v4147 = vsel %vm2829, %v3964, 0.0
    %4148 = vadd.xlane.f32.xlu0 %v4147
    %v4149 = vpop.xlane.xlu0 %4148
    %v4150 = vsel %vm2829, %v3966, 0.0
    %4151 = vadd.xlane.f32.xlu0 %v4150
    %v4152 = vpop.xlane.xlu0 %4151
    %v4153 = vsel %vm2829, %v3968, 0.0
    %4154 = vadd.xlane.f32.xlu0 %v4153
    %v4155 = vpop.xlane.xlu0 %4154
    %v4156 = vsel %vm2829, %v3970, 0.0
    %4157 = vadd.xlane.f32.xlu0 %v4156
    %v4158 = vpop.xlane.xlu0 %4157
    %v4159 = vsel %vm2829, %v3972, 0.0
    %4160 = vadd.xlane.f32.xlu0 %v4159
    %v4161 = vpop.xlane.xlu0 %4160
    %v4162 = vsel %vm2829, %v3974, 0.0
    %4163 = vadd.xlane.f32.xlu0 %v4162
    %v4164 = vpop.xlane.xlu0 %4163
    %v4165 = vsel %vm2829, %v3976, 0.0
    %4166 = vadd.xlane.f32.xlu0 %v4165
    %v4167 = vpop.xlane.xlu0 %4166
    %v4168 = vsel %vm2829, %v3978, 0.0
    %4169 = vadd.xlane.f32.xlu0 %v4168
    %v4170 = vpop.xlane.xlu0 %4169
    %v4171 = vrcp.pop %v3981
    %v4172 = vrcp.pop %v3984
    %v4173 = vrcp.pop %v3987
    %v4174 = vrcp.pop %v3990
    %v4175 = vrcp.pop %v3993
    %v4176 = vrcp.pop %v3996
    %v4177 = vrcp.pop %v3999
    %v4178 = vrcp.pop %v4002
    %v4179 = vrcp.pop %v4005
    %v4180 = vrcp.pop %v4008
    %v4181 = vrcp.pop %v4011
    %v4182 = vrcp.pop %v4014
    %v4183 = vrcp.pop %v4017
    %v4184 = vrcp.pop %v4020
    %v4185 = vrcp.pop %v4023
    %v4186 = vrcp.pop %v4026
    %v4187 = vrcp.pop %v4029
    %v4188 = vrcp.pop %v4032
    %v4189 = vrcp.pop %v4035
    %v4190 = vrcp.pop %v4038
    %v4191 = vrcp.pop %v4041
    %v4192 = vrcp.pop %v4044
    %v4193 = vrcp.pop %v4047
    %v4194 = vrcp.pop %v4050
    %v4195 = vrcp.pop %v4053
    %v4196 = vrcp.pop %v4056
    %v4197 = vrcp.pop %v4059
    %v4198 = vrcp.pop %v4062
    %v4199 = vrcp.pop %v4065
    %v4200 = vrcp.pop %v4068
    %v4201 = vrcp.pop %v4071
    %v4202 = vrcp.pop %v4074
    %v4203 = vrcp.pop %v4077
    %v4204 = vrcp.pop %v4080
    %v4205 = vrcp.pop %v4083
    %v4206 = vrcp.pop %v4086
    %v4207 = vrcp.pop %v4089
    %v4208 = vrcp.pop %v4092
    %v4209 = vrcp.pop %v4095
    %v4210 = vrcp.pop %v4098
    %v4211 = vrcp.pop %v4101
    %v4212 = vrcp.pop %v4104
    %v4213 = vrcp.pop %v4107
    %v4214 = vrcp.pop %v4110
    %v4215 = vrcp.pop %v4113
    %v4216 = vrcp.pop %v4116
    %v4217 = vrcp.pop %v4119
    %v4218 = vrcp.pop %v4122
    %v4219 = vrcp.pop %v4125
    %v4220 = vrcp.pop %v4128
    %v4221 = vrcp.pop %v4131
    %v4222 = vrcp.pop %v4134
    %v4223 = vrcp.pop %v4137
    %v4224 = vrcp.pop %v4140
    %v4225 = vrcp.pop %v4143
    %v4226 = vrcp.pop %v4146
    %v4227 = vrcp.pop %v4149
    %v4228 = vrcp.pop %v4152
    %v4229 = vrcp.pop %v4155
    %v4230 = vrcp.pop %v4158
    %v4231 = vrcp.pop %v4161
    %v4232 = vrcp.pop %v4164
    %v4233 = vrcp.pop %v4167
    %v4234 = vrcp.pop %v4170
    %v4235 = vmul.f32 %v3852, %v4171
    %v4236 = vmul.f32 %v3854, %v4172
    %v4237 = vmul.f32 %v3856, %v4173
    %v4238 = vmul.f32 %v3858, %v4174
    %v4239 = vmul.f32 %v3860, %v4175
    %v4240 = vmul.f32 %v3862, %v4176
    %v4241 = vmul.f32 %v3864, %v4177
    %v4242 = vmul.f32 %v3866, %v4178
    %v4243 = vmul.f32 %v3868, %v4179
    %v4244 = vmul.f32 %v3870, %v4180
    %v4245 = vmul.f32 %v3872, %v4181
    %v4246 = vmul.f32 %v3874, %v4182
    %v4247 = vmul.f32 %v3876, %v4183
    %v4248 = vmul.f32 %v3878, %v4184
    %v4249 = vmul.f32 %v3880, %v4185
    %v4250 = vmul.f32 %v3882, %v4186
    %v4251 = vmul.f32 %v3884, %v4187
    %v4252 = vmul.f32 %v3886, %v4188
    %v4253 = vmul.f32 %v3888, %v4189
    %v4254 = vmul.f32 %v3890, %v4190
    %v4255 = vmul.f32 %v3892, %v4191
    %v4256 = vmul.f32 %v3894, %v4192
    %v4257 = vmul.f32 %v3896, %v4193
    %v4258 = vmul.f32 %v3898, %v4194
    %v4259 = vmul.f32 %v3900, %v4195
    %v4260 = vmul.f32 %v3902, %v4196
    %v4261 = vmul.f32 %v3904, %v4197
    %v4262 = vmul.f32 %v3906, %v4198
    %v4263 = vmul.f32 %v3908, %v4199
    %v4264 = vmul.f32 %v3910, %v4200
    %v4265 = vmul.f32 %v3912, %v4201
    %v4266 = vmul.f32 %v3914, %v4202
    %v4267 = vmul.f32 %v3916, %v4203
    %v4268 = vmul.f32 %v3918, %v4204
    %v4269 = vmul.f32 %v3920, %v4205
    %v4270 = vmul.f32 %v3922, %v4206
    %v4271 = vmul.f32 %v3924, %v4207
    %v4272 = vmul.f32 %v3926, %v4208
    %v4273 = vmul.f32 %v3928, %v4209
    %v4274 = vmul.f32 %v3930, %v4210
    %v4275 = vmul.f32 %v3932, %v4211
    %v4276 = vmul.f32 %v3934, %v4212
    %v4277 = vmul.f32 %v3936, %v4213
    %v4278 = vmul.f32 %v3938, %v4214
    %v4279 = vmul.f32 %v3940, %v4215
    %v4280 = vmul.f32 %v3942, %v4216
    %v4281 = vmul.f32 %v3944, %v4217
    %v4282 = vmul.f32 %v3946, %v4218
    %v4283 = vmul.f32 %v3948, %v4219
    %v4284 = vmul.f32 %v3950, %v4220
    %v4285 = vmul.f32 %v3952, %v4221
    %v4286 = vmul.f32 %v3954, %v4222
    %v4287 = vmul.f32 %v3956, %v4223
    %v4288 = vmul.f32 %v3958, %v4224
    %v4289 = vmul.f32 %v3960, %v4225
    %v4290 = vmul.f32 %v3962, %v4226
    %v4291 = vmul.f32 %v3964, %v4227
    %v4292 = vmul.f32 %v3966, %v4228
    %v4293 = vmul.f32 %v3968, %v4229
    %v4294 = vmul.f32 %v3970, %v4230
    %v4295 = vmul.f32 %v3972, %v4231
    %v4296 = vmul.f32 %v3974, %v4232
    %v4297 = vmul.f32 %v3976, %v4233
    %v4298 = vmul.f32 %v3978, %v4234
    %vm4299 = vcmp.gt.f32.partialorder %v3531, %v3494
    %vm4300 = vcmp.gt.f32.partialorder %v3532, %v3494
    %vm4301 = vcmp.gt.f32.partialorder %v3533, %v3494
    %vm4302 = vcmp.gt.f32.partialorder %v3534, %v3494
    %vm4303 = vcmp.gt.f32.partialorder %v3535, %v3494
    %vm4304 = vcmp.gt.f32.partialorder %v3536, %v3494
    %vm4305 = vcmp.gt.f32.partialorder %v3537, %v3494
    %vm4306 = vcmp.gt.f32.partialorder %v3538, %v3494
    %vm4307 = vcmp.gt.f32.partialorder %v3539, %v3498
    %vm4308 = vcmp.gt.f32.partialorder %v3540, %v3498
    %vm4309 = vcmp.gt.f32.partialorder %v3541, %v3498
    %vm4310 = vcmp.gt.f32.partialorder %v3542, %v3498
    %vm4311 = vcmp.gt.f32.partialorder %v3543, %v3498
    %vm4312 = vcmp.gt.f32.partialorder %v3544, %v3498
    %vm4313 = vcmp.gt.f32.partialorder %v3545, %v3498
    %vm4314 = vcmp.gt.f32.partialorder %v3546, %v3498
    %vm4315 = vcmp.gt.f32.partialorder %v3547, %v3502
    %vm4316 = vcmp.gt.f32.partialorder %v3548, %v3502
    %vm4317 = vcmp.gt.f32.partialorder %v3549, %v3502
    %vm4318 = vcmp.gt.f32.partialorder %v3550, %v3502
    %vm4319 = vcmp.gt.f32.partialorder %v3551, %v3502
    %vm4320 = vcmp.gt.f32.partialorder %v3552, %v3502
    %vm4321 = vcmp.gt.f32.partialorder %v3553, %v3502
    %vm4322 = vcmp.gt.f32.partialorder %v3554, %v3502
    %vm4323 = vcmp.gt.f32.partialorder %v3555, %v3506
    %vm4324 = vcmp.gt.f32.partialorder %v3556, %v3506
    %vm4325 = vcmp.gt.f32.partialorder %v3557, %v3506
    %vm4326 = vcmp.gt.f32.partialorder %v3558, %v3506
    %vm4327 = vcmp.gt.f32.partialorder %v3559, %v3506
    %vm4328 = vcmp.gt.f32.partialorder %v3560, %v3506
    %vm4329 = vcmp.gt.f32.partialorder %v3561, %v3506
    %vm4330 = vcmp.gt.f32.partialorder %v3562, %v3506
    %vm4331 = vcmp.gt.f32.partialorder %v3563, %v3510
    %vm4332 = vcmp.gt.f32.partialorder %v3564, %v3510
    %vm4333 = vcmp.gt.f32.partialorder %v3565, %v3510
    %vm4334 = vcmp.gt.f32.partialorder %v3566, %v3510
    %vm4335 = vcmp.gt.f32.partialorder %v3567, %v3510
    %vm4336 = vcmp.gt.f32.partialorder %v3568, %v3510
    %vm4337 = vcmp.gt.f32.partialorder %v3569, %v3510
    %vm4338 = vcmp.gt.f32.partialorder %v3570, %v3510
    %vm4339 = vcmp.gt.f32.partialorder %v3571, %v3514
    %vm4340 = vcmp.gt.f32.partialorder %v3572, %v3514
    %vm4341 = vcmp.gt.f32.partialorder %v3573, %v3514
    %vm4342 = vcmp.gt.f32.partialorder %v3574, %v3514
    %vm4343 = vcmp.gt.f32.partialorder %v3575, %v3514
    %vm4344 = vcmp.gt.f32.partialorder %v3576, %v3514
    %vm4345 = vcmp.gt.f32.partialorder %v3577, %v3514
    %vm4346 = vcmp.gt.f32.partialorder %v3578, %v3514
    %vm4347 = vcmp.gt.f32.partialorder %v3579, %v3518
    %vm4348 = vcmp.gt.f32.partialorder %v3580, %v3518
    %vm4349 = vcmp.gt.f32.partialorder %v3581, %v3518
    %vm4350 = vcmp.gt.f32.partialorder %v3582, %v3518
    %vm4351 = vcmp.gt.f32.partialorder %v3583, %v3518
    %vm4352 = vcmp.gt.f32.partialorder %v3584, %v3518
    %vm4353 = vcmp.gt.f32.partialorder %v3585, %v3518
    %vm4354 = vcmp.gt.f32.partialorder %v3586, %v3518
    %vm4355 = vcmp.gt.f32.partialorder %v3587, %v3522
    %vm4356 = vcmp.gt.f32.partialorder %v3588, %v3522
    %vm4357 = vcmp.gt.f32.partialorder %v3589, %v3522
    %vm4358 = vcmp.gt.f32.partialorder %v3590, %v3522
    %vm4359 = vcmp.gt.f32.partialorder %v3591, %v3522
    %vm4360 = vcmp.gt.f32.partialorder %v3592, %v3522
    %vm4361 = vcmp.gt.f32.partialorder %v3593, %v3522
    %vm4362 = vcmp.gt.f32.partialorder %v3594, %v3522
    %v4363 = vsel %vm4299, 1, 0
    %v4364 = vsel %vm4300, 1, 0
    %v4365 = vsel %vm4301, 1, 0
    %v4366 = vsel %vm4302, 1, 0
    %v4367 = vsel %vm4303, 1, 0
    %v4368 = vsel %vm4304, 1, 0
    %v4369 = vsel %vm4305, 1, 0
    %v4370 = vsel %vm4306, 1, 0
    %v4371 = vsel %vm4307, 1, 0
    %v4372 = vsel %vm4308, 1, 0
    %v4373 = vsel %vm4309, 1, 0
    %v4374 = vsel %vm4310, 1, 0
    %v4375 = vsel %vm4311, 1, 0
    %v4376 = vsel %vm4312, 1, 0
    %v4377 = vsel %vm4313, 1, 0
    %v4378 = vsel %vm4314, 1, 0
    %v4379 = vsel %vm4315, 1, 0
    %v4380 = vsel %vm4316, 1, 0
    %v4381 = vsel %vm4317, 1, 0
    %v4382 = vsel %vm4318, 1, 0
    %v4383 = vsel %vm4319, 1, 0
    %v4384 = vsel %vm4320, 1, 0
    %v4385 = vsel %vm4321, 1, 0
    %v4386 = vsel %vm4322, 1, 0
    %v4387 = vsel %vm4323, 1, 0
    %v4388 = vsel %vm4324, 1, 0
    %v4389 = vsel %vm4325, 1, 0
    %v4390 = vsel %vm4326, 1, 0
    %v4391 = vsel %vm4327, 1, 0
    %v4392 = vsel %vm4328, 1, 0
    %v4393 = vsel %vm4329, 1, 0
    %v4394 = vsel %vm4330, 1, 0
    %v4395 = vsel %vm4331, 1, 0
    %v4396 = vsel %vm4332, 1, 0
    %v4397 = vsel %vm4333, 1, 0
    %v4398 = vsel %vm4334, 1, 0
    %v4399 = vsel %vm4335, 1, 0
    %v4400 = vsel %vm4336, 1, 0
    %v4401 = vsel %vm4337, 1, 0
    %v4402 = vsel %vm4338, 1, 0
    %v4403 = vsel %vm4339, 1, 0
    %v4404 = vsel %vm4340, 1, 0
    %v4405 = vsel %vm4341, 1, 0
    %v4406 = vsel %vm4342, 1, 0
    %v4407 = vsel %vm4343, 1, 0
    %v4408 = vsel %vm4344, 1, 0
    %v4409 = vsel %vm4345, 1, 0
    %v4410 = vsel %vm4346, 1, 0
    %v4411 = vsel %vm4347, 1, 0
    %v4412 = vsel %vm4348, 1, 0
    %v4413 = vsel %vm4349, 1, 0
    %v4414 = vsel %vm4350, 1, 0
    %v4415 = vsel %vm4351, 1, 0
    %v4416 = vsel %vm4352, 1, 0
    %v4417 = vsel %vm4353, 1, 0
    %v4418 = vsel %vm4354, 1, 0
    %v4419 = vsel %vm4355, 1, 0
    %v4420 = vsel %vm4356, 1, 0
    %v4421 = vsel %vm4357, 1, 0
    %v4422 = vsel %vm4358, 1, 0
    %v4423 = vsel %vm4359, 1, 0
    %v4424 = vsel %vm4360, 1, 0
    %v4425 = vsel %vm4361, 1, 0
    %v4426 = vsel %vm4362, 1, 0
    %v4427 = vcvt.s32.f32 %v4363
    %v4428 = vcvt.s32.f32 %v4364
    %v4429 = vcvt.s32.f32 %v4365
    %v4430 = vcvt.s32.f32 %v4366
    %v4431 = vcvt.s32.f32 %v4367
    %v4432 = vcvt.s32.f32 %v4368
    %v4433 = vcvt.s32.f32 %v4369
    %v4434 = vcvt.s32.f32 %v4370
    %v4435 = vcvt.s32.f32 %v4371
    %v4436 = vcvt.s32.f32 %v4372
    %v4437 = vcvt.s32.f32 %v4373
    %v4438 = vcvt.s32.f32 %v4374
    %v4439 = vcvt.s32.f32 %v4375
    %v4440 = vcvt.s32.f32 %v4376
    %v4441 = vcvt.s32.f32 %v4377
    %v4442 = vcvt.s32.f32 %v4378
    %v4443 = vcvt.s32.f32 %v4379
    %v4444 = vcvt.s32.f32 %v4380
    %v4445 = vcvt.s32.f32 %v4381
    %v4446 = vcvt.s32.f32 %v4382
    %v4447 = vcvt.s32.f32 %v4383
    %v4448 = vcvt.s32.f32 %v4384
    %v4449 = vcvt.s32.f32 %v4385
    %v4450 = vcvt.s32.f32 %v4386
    %v4451 = vcvt.s32.f32 %v4387
    %v4452 = vcvt.s32.f32 %v4388
    %v4453 = vcvt.s32.f32 %v4389
    %v4454 = vcvt.s32.f32 %v4390
    %v4455 = vcvt.s32.f32 %v4391
    %v4456 = vcvt.s32.f32 %v4392
    %v4457 = vcvt.s32.f32 %v4393
    %v4458 = vcvt.s32.f32 %v4394
    %v4459 = vcvt.s32.f32 %v4395
    %v4460 = vcvt.s32.f32 %v4396
    %v4461 = vcvt.s32.f32 %v4397
    %v4462 = vcvt.s32.f32 %v4398
    %v4463 = vcvt.s32.f32 %v4399
    %v4464 = vcvt.s32.f32 %v4400
    %v4465 = vcvt.s32.f32 %v4401
    %v4466 = vcvt.s32.f32 %v4402
    %v4467 = vcvt.s32.f32 %v4403
    %v4468 = vcvt.s32.f32 %v4404
    %v4469 = vcvt.s32.f32 %v4405
    %v4470 = vcvt.s32.f32 %v4406
    %v4471 = vcvt.s32.f32 %v4407
    %v4472 = vcvt.s32.f32 %v4408
    %v4473 = vcvt.s32.f32 %v4409
    %v4474 = vcvt.s32.f32 %v4410
    %v4475 = vcvt.s32.f32 %v4411
    %v4476 = vcvt.s32.f32 %v4412
    %v4477 = vcvt.s32.f32 %v4413
    %v4478 = vcvt.s32.f32 %v4414
    %v4479 = vcvt.s32.f32 %v4415
    %v4480 = vcvt.s32.f32 %v4416
    %v4481 = vcvt.s32.f32 %v4417
    %v4482 = vcvt.s32.f32 %v4418
    %v4483 = vcvt.s32.f32 %v4419
    %v4484 = vcvt.s32.f32 %v4420
    %v4485 = vcvt.s32.f32 %v4421
    %v4486 = vcvt.s32.f32 %v4422
    %v4487 = vcvt.s32.f32 %v4423
    %v4488 = vcvt.s32.f32 %v4424
    %v4489 = vcvt.s32.f32 %v4425
    %v4490 = vcvt.s32.f32 %v4426
    %v4491 = vmul.f32 %v4235, %v4427
    %v4492 = vmul.f32 %v4236, %v4428
    %v4493 = vmul.f32 %v4237, %v4429
    %v4494 = vmul.f32 %v4238, %v4430
    %v4495 = vmul.f32 %v4239, %v4431
    %v4496 = vmul.f32 %v4240, %v4432
    %v4497 = vmul.f32 %v4241, %v4433
    %v4498 = vmul.f32 %v4242, %v4434
    %v4499 = vmul.f32 %v4243, %v4435
    %v4500 = vmul.f32 %v4244, %v4436
    %v4501 = vmul.f32 %v4245, %v4437
    %v4502 = vmul.f32 %v4246, %v4438
    %v4503 = vmul.f32 %v4247, %v4439
    %v4504 = vmul.f32 %v4248, %v4440
    %v4505 = vmul.f32 %v4249, %v4441
    %v4506 = vmul.f32 %v4250, %v4442
    %v4507 = vmul.f32 %v4251, %v4443
    %v4508 = vmul.f32 %v4252, %v4444
    %v4509 = vmul.f32 %v4253, %v4445
    %v4510 = vmul.f32 %v4254, %v4446
    %v4511 = vmul.f32 %v4255, %v4447
    %v4512 = vmul.f32 %v4256, %v4448
    %v4513 = vmul.f32 %v4257, %v4449
    %v4514 = vmul.f32 %v4258, %v4450
    %v4515 = vmul.f32 %v4259, %v4451
    %v4516 = vmul.f32 %v4260, %v4452
    %v4517 = vmul.f32 %v4261, %v4453
    %v4518 = vmul.f32 %v4262, %v4454
    %v4519 = vmul.f32 %v4263, %v4455
    %v4520 = vmul.f32 %v4264, %v4456
    %v4521 = vmul.f32 %v4265, %v4457
    %v4522 = vmul.f32 %v4266, %v4458
    %v4523 = vmul.f32 %v4267, %v4459
    %v4524 = vmul.f32 %v4268, %v4460
    %v4525 = vmul.f32 %v4269, %v4461
    %v4526 = vmul.f32 %v4270, %v4462
    %v4527 = vmul.f32 %v4271, %v4463
    %v4528 = vmul.f32 %v4272, %v4464
    %v4529 = vmul.f32 %v4273, %v4465
    %v4530 = vmul.f32 %v4274, %v4466
    %v4531 = vmul.f32 %v4275, %v4467
    %v4532 = vmul.f32 %v4276, %v4468
    %v4533 = vmul.f32 %v4277, %v4469
    %v4534 = vmul.f32 %v4278, %v4470
    %v4535 = vmul.f32 %v4279, %v4471
    %v4536 = vmul.f32 %v4280, %v4472
    %v4537 = vmul.f32 %v4281, %v4473
    %v4538 = vmul.f32 %v4282, %v4474
    %v4539 = vmul.f32 %v4283, %v4475
    %v4540 = vmul.f32 %v4284, %v4476
    %v4541 = vmul.f32 %v4285, %v4477
    %v4542 = vmul.f32 %v4286, %v4478
    %v4543 = vmul.f32 %v4287, %v4479
    %v4544 = vmul.f32 %v4288, %v4480
    %v4545 = vmul.f32 %v4289, %v4481
    %v4546 = vmul.f32 %v4290, %v4482
    %v4547 = vmul.f32 %v4291, %v4483
    %v4548 = vmul.f32 %v4292, %v4484
    %v4549 = vmul.f32 %v4293, %v4485
    %v4550 = vmul.f32 %v4294, %v4486
    %v4551 = vmul.f32 %v4295, %v4487
    %v4552 = vmul.f32 %v4296, %v4488
    %v4553 = vmul.f32 %v4297, %v4489
    %v4554 = vmul.f32 %v4298, %v4490
    %4555 = vst.msk [vmem:[#allocation16] sm:$0xff] %vm2829, %v4491
    %4556 = vst.msk [vmem:[#allocation16 + $0x8] sm:$0xff] %vm2829, %v4492
    %4557 = vst.msk [vmem:[#allocation16 + $0x10] sm:$0xff] %vm2829, %v4493
    %4558 = vst.msk [vmem:[#allocation16 + $0x18] sm:$0xff] %vm2829, %v4494
    %4559 = vst.msk [vmem:[#allocation16 + $0x20] sm:$0xff] %vm2829, %v4495
    %4560 = vst.msk [vmem:[#allocation16 + $0x28] sm:$0xff] %vm2829, %v4496
    %4561 = vst.msk [vmem:[#allocation16 + $0x30] sm:$0xff] %vm2829, %v4497
    %4562 = vst.msk [vmem:[#allocation16 + $0x38] sm:$0xff] %vm2829, %v4498
    %4563 = vst.msk [vmem:[#allocation16 + $0x40] sm:$0xff] %vm2829, %v4499
    %4564 = vst.msk [vmem:[#allocation16 + $0x48] sm:$0xff] %vm2829, %v4500
    %4565 = vst.msk [vmem:[#allocation16 + $0x50] sm:$0xff] %vm2829, %v4501
    %4566 = vst.msk [vmem:[#allocation16 + $0x58] sm:$0xff] %vm2829, %v4502
    %4567 = vst.msk [vmem:[#allocation16 + $0x60] sm:$0xff] %vm2829, %v4503
    %4568 = vst.msk [vmem:[#allocation16 + $0x68] sm:$0xff] %vm2829, %v4504
    %4569 = vst.msk [vmem:[#allocation16 + $0x70] sm:$0xff] %vm2829, %v4505
    %4570 = vst.msk [vmem:[#allocation16 + $0x78] sm:$0xff] %vm2829, %v4506
    %4571 = vst.msk [vmem:[#allocation16 + $0x80] sm:$0xff] %vm2829, %v4507
    %4572 = vst.msk [vmem:[#allocation16 + $0x88] sm:$0xff] %vm2829, %v4508
    %4573 = vst.msk [vmem:[#allocation16 + $0x90] sm:$0xff] %vm2829, %v4509
    %4574 = vst.msk [vmem:[#allocation16 + $0x98] sm:$0xff] %vm2829, %v4510
    %4575 = vst.msk [vmem:[#allocation16 + $0xa0] sm:$0xff] %vm2829, %v4511
    %4576 = vst.msk [vmem:[#allocation16 + $0xa8] sm:$0xff] %vm2829, %v4512
    %4577 = vst.msk [vmem:[#allocation16 + $0xb0] sm:$0xff] %vm2829, %v4513
    %4578 = vst.msk [vmem:[#allocation16 + $0xb8] sm:$0xff] %vm2829, %v4514
    %4579 = vst.msk [vmem:[#allocation16 + $0xc0] sm:$0xff] %vm2829, %v4515
    %4580 = vst.msk [vmem:[#allocation16 + $0xc8] sm:$0xff] %vm2829, %v4516
    %4581 = vst.msk [vmem:[#allocation16 + $0xd0] sm:$0xff] %vm2829, %v4517
    %4582 = vst.msk [vmem:[#allocation16 + $0xd8] sm:$0xff] %vm2829, %v4518
    %4583 = vst.msk [vmem:[#allocation16 + $0xe0] sm:$0xff] %vm2829, %v4519
    %4584 = vst.msk [vmem:[#allocation16 + $0xe8] sm:$0xff] %vm2829, %v4520
    %4585 = vst.msk [vmem:[#allocation16 + $0xf0] sm:$0xff] %vm2829, %v4521
    %4586 = vst.msk [vmem:[#allocation16 + $0xf8] sm:$0xff] %vm2829, %v4522
    %4587 = vst.msk [vmem:[#allocation16 + $0x100] sm:$0xff] %vm2829, %v4523
    %4588 = vst.msk [vmem:[#allocation16 + $0x108] sm:$0xff] %vm2829, %v4524
    %4589 = vst.msk [vmem:[#allocation16 + $0x110] sm:$0xff] %vm2829, %v4525
    %4590 = vst.msk [vmem:[#allocation16 + $0x118] sm:$0xff] %vm2829, %v4526
    %4591 = vst.msk [vmem:[#allocation16 + $0x120] sm:$0xff] %vm2829, %v4527
    %4592 = vst.msk [vmem:[#allocation16 + $0x128] sm:$0xff] %vm2829, %v4528
    %4593 = vst.msk [vmem:[#allocation16 + $0x130] sm:$0xff] %vm2829, %v4529
    %4594 = vst.msk [vmem:[#allocation16 + $0x138] sm:$0xff] %vm2829, %v4530
    %4595 = vst.msk [vmem:[#allocation16 + $0x140] sm:$0xff] %vm2829, %v4531
    %4596 = vst.msk [vmem:[#allocation16 + $0x148] sm:$0xff] %vm2829, %v4532
    %4597 = vst.msk [vmem:[#allocation16 + $0x150] sm:$0xff] %vm2829, %v4533
    %4598 = vst.msk [vmem:[#allocation16 + $0x158] sm:$0xff] %vm2829, %v4534
    %4599 = vst.msk [vmem:[#allocation16 + $0x160] sm:$0xff] %vm2829, %v4535
    %4600 = vst.msk [vmem:[#allocation16 + $0x168] sm:$0xff] %vm2829, %v4536
    %4601 = vst.msk [vmem:[#allocation16 + $0x170] sm:$0xff] %vm2829, %v4537
    %4602 = vst.msk [vmem:[#allocation16 + $0x178] sm:$0xff] %vm2829, %v4538
    %4603 = vst.msk [vmem:[#allocation16 + $0x180] sm:$0xff] %vm2829, %v4539
    %4604 = vst.msk [vmem:[#allocation16 + $0x188] sm:$0xff] %vm2829, %v4540
    %4605 = vst.msk [vmem:[#allocation16 + $0x190] sm:$0xff] %vm2829, %v4541
    %4606 = vst.msk [vmem:[#allocation16 + $0x198] sm:$0xff] %vm2829, %v4542
    %4607 = vst.msk [vmem:[#allocation16 + $0x1a0] sm:$0xff] %vm2829, %v4543
    %4608 = vst.msk [vmem:[#allocation16 + $0x1a8] sm:$0xff] %vm2829, %v4544
    %4609 = vst.msk [vmem:[#allocation16 + $0x1b0] sm:$0xff] %vm2829, %v4545
    %4610 = vst.msk [vmem:[#allocation16 + $0x1b8] sm:$0xff] %vm2829, %v4546
    %4611 = vst.msk [vmem:[#allocation16 + $0x1c0] sm:$0xff] %vm2829, %v4547
    %4612 = vst.msk [vmem:[#allocation16 + $0x1c8] sm:$0xff] %vm2829, %v4548
    %4613 = vst.msk [vmem:[#allocation16 + $0x1d0] sm:$0xff] %vm2829, %v4549
    %4614 = vst.msk [vmem:[#allocation16 + $0x1d8] sm:$0xff] %vm2829, %v4550
    %4615 = vst.msk [vmem:[#allocation16 + $0x1e0] sm:$0xff] %vm2829, %v4551
    %4616 = vst.msk [vmem:[#allocation16 + $0x1e8] sm:$0xff] %vm2829, %v4552
    %4617 = vst.msk [vmem:[#allocation16 + $0x1f0] sm:$0xff] %vm2829, %v4553
    %4618 = vst.msk [vmem:[#allocation16 + $0x1f8] sm:$0xff] %vm2829, %v4554
    // Predicated region
    $region66: #{tpu_custom_call.1} parent=1 // pred_check
      _
    $region67: #{tpu_custom_call.1} parent=1 // pred_check_branch
      %4620 = sbr.rel (0) target = $region69
    $region68: #{tpu_custom_call.1} parent=1 // pred_region
      %s4622 = ssub.s32 8192, 8192
      %4623 = vsyncadd [#allocation6], %s4622
      %s4624 = sshll.u32 [#allocation16], 4
      %s4625 = int_to_ptr.vmem [resolvable:$true] %s4624
      %4630 = dma.vmem_to_hbm [thread:$0]  %s4625, 8192, %s9, [#allocation6], 128, 128, 8
    $region69: #{tpu_custom_call.1} parent=1 // pred_fallthru
      _
    // Predicated region
    $region70: #{tpu_custom_call.1} parent=1 // pred_check
      _
    $region71: #{tpu_custom_call.1} parent=1 // pred_check_branch
      %4632 = sbr.rel (0) target = $region73
    $region72: #{tpu_custom_call.1} parent=1 // pred_region
      %4633 = dma.done [#allocation6], 8192
    $region73: #{tpu_custom_call.1} parent=1 // pred_fallthru
      _
    %4634 = vsyncpa [#allocation5], 1
    %4635 = vsyncpa [#allocation8], 1
    %4636 = vsyncpa [#allocation11], 1
    %4637 = vsyncpa [#allocation14], 1
    %4638 = vsyncpa [#allocation6], 1

</llo_original>
